<compile_context>
chip_gen: v7x
topology: tpu7x:2x2x1
jax: 0.10.0
libtpu: 0.0.40
codegen_flags: <defaults>
</compile_context>

<pallas_src>
import jax
import jax.numpy as jnp
from jax.experimental import pallas as pl
from jax.experimental.pallas import tpu as pltpu


def _down_kernel(x_ref, w1_ref, w2_ref, o_ref, pad1_ref, pad2_ref, patches_ref):
    # x_ref      : (B, H, W, Cin)        batch-block of NHWC inputs
    # w1_ref     : (9*Cin,  Cout)        conv1 weights, rows ordered (kh, kw, cin)
    # w2_ref     : (9*Cout, Cout)        conv2 weights
    # o_ref      : (B, Cout, Hp*Wp)      lane-dense transposed output slab
    # pad1_ref   : (B, Hp+2, Wp+2, Cin)  scratch: zero-padded input of conv1
    # pad2_ref   : (B, Hp+2, Wp+2, Cout) scratch: zero-padded input of conv2
    # patches_ref: (B*Hp*Wp, 9*Cmax)     scratch: im2col rows for both convs
    B, H, W, Cin = x_ref.shape
    Hp, Wp = H // 2, W // 2
    Cout = o_ref.shape[1]
    eps = 1e-5
    inv_n = 1.0 / float(Hp * Wp)

    # ---- MaxPool2d(2): no scratch round trip ----------------------------------
    # W-pooling: sublane-strided ref loads (stride-2 on the second-minor dim).
    col_max = jnp.maximum(x_ref[:, :, pl.ds(0, Wp, 2), :],
                          x_ref[:, :, pl.ds(1, Wp, 2), :])            # (B, H, Wp, Cin)
    # H-pooling: split the (outer) H dim on the value — layout-free reshape.
    cm5 = col_max.reshape(B, Hp, 2, Wp, Cin)
    pooled = jnp.maximum(cm5[:, :, 0], cm5[:, :, 1])                  # (B, Hp, Wp, Cin)

    def conv3x3_in_relu(pad_ref, inp, w_ref, cin):
        # Zero only the 1-pixel border; the interior is fully overwritten below.
        # Done every step so it stays correct if the batch axis is ever split
        # across TensorCores (per-core scratch, "parallel" grid axis).
        pad_ref[:, pl.ds(0, 1)] = jnp.zeros((B, 1, Wp + 2, cin), jnp.float32)
        pad_ref[:, pl.ds(Hp + 1, 1)] = jnp.zeros((B, 1, Wp + 2, cin), jnp.float32)
        pad_ref[:, :, pl.ds(0, 1), :] = jnp.zeros((B, Hp + 2, 1, cin), jnp.float32)
        pad_ref[:, :, pl.ds(Wp + 1, 1), :] = jnp.zeros((B, Hp + 2, 1, cin), jnp.float32)
        pad_ref[:, pl.ds(1, Hp), pl.ds(1, Wp), :] = inp

        # im2col into the patches scratch: one lane-offset store per tap, then
        # ONE MXU matmul with K = 9*cin and M = B*Hp*Wp (all samples stacked).
        for k in range(9):
            dh, dw = k // 3, k % 3
            col = pad_ref[:, pl.ds(dh, Hp), pl.ds(dw, Wp), :]          # (B, Hp, Wp, cin)
            patches_ref[:, pl.ds(k * cin, cin)] = col.reshape(B * Hp * Wp, cin)

        acc = jnp.dot(patches_ref[:, pl.ds(0, 9 * cin)], w_ref[...],
                      preferred_element_type=jnp.float32)              # (B*Hp*Wp, Cout)
        acc = acc.reshape(B, Hp * Wp, Cout)

        # InstanceNorm2d (affine=False, biased var), per-sample / per-channel
        # stats; single-pass sum / sum-sq with a non-negativity clamp.
        mean = jnp.sum(acc, axis=1, keepdims=True) * inv_n             # (B, 1, Cout)
        var = jnp.sum(acc * acc, axis=1, keepdims=True) * inv_n - mean * mean
        var = jnp.maximum(var, 0.0)
        y = (acc - mean) * jax.lax.rsqrt(var + eps)
        return jnp.maximum(y, 0.0)                                     # ReLU

    h1 = conv3x3_in_relu(pad1_ref, pooled, w1_ref, Cin)                # (B, Hp*Wp, Cout)
    h2 = conv3x3_in_relu(pad2_ref, h1.reshape(B, Hp, Wp, Cout), w2_ref, Cout)

    # Lane-dense transposed output: lane dim is Hp*Wp (>= 128 at real sizes),
    # and the wrapper's NCHW conversion becomes a pure reshape.
    for b in range(B):
        o_ref[b] = h2[b].T.astype(o_ref.dtype)


def down_pallas(x_nchw, w1_hwio, w2_hwio, batch_block=None):
    N, Cin, H, W = x_nchw.shape
    Cout = w1_hwio.shape[-1]
    Hp, Wp = H // 2, W // 2

    # Batch-block the grid: amortize the ~0.35 us per-step overhead and fill the
    # MXU M dimension. For the toy shape this is the whole batch in one step.
    if batch_block is None:
        batch_block = N
    B = batch_block
    assert N % B == 0, "batch_block must divide N"

    x_nhwc = jnp.transpose(x_nchw, (0, 2, 3, 1)).astype(jnp.float32)
    # HWIO -> (9*Cin, Cout): row index = (kh*3 + kw)*Cin + cin, matching the
    # (dh, dw, c) ordering of the in-kernel im2col stores.
    w1_r = w1_hwio.astype(jnp.float32).reshape(9 * Cin, Cout)
    w2_r = w2_hwio.astype(jnp.float32).reshape(9 * Cout, Cout)

    cmax = max(Cin, Cout)

    out_t = pl.pallas_call(
        _down_kernel,
        out_shape=jax.ShapeDtypeStruct((N, Cout, Hp * Wp), jnp.float32),
        grid_spec=pltpu.PrefetchScalarGridSpec(
            num_scalar_prefetch=0,
            grid=(N // B,),
            in_specs=[
                pl.BlockSpec((B, H, W, Cin), lambda n: (n, 0, 0, 0)),
                pl.BlockSpec((9 * Cin, Cout), lambda n: (0, 0)),
                pl.BlockSpec((9 * Cout, Cout), lambda n: (0, 0)),
            ],
            out_specs=pl.BlockSpec((B, Cout, Hp * Wp), lambda n: (n, 0, 0)),
            scratch_shapes=[
                pltpu.VMEM((B, Hp + 2, Wp + 2, Cin), jnp.float32),
                pltpu.VMEM((B, Hp + 2, Wp + 2, Cout), jnp.float32),
                pltpu.VMEM((B * Hp * Wp, 9 * cmax), jnp.float32),
            ],
        ),
        compiler_params=pltpu.CompilerParams(
            dimension_semantics=("parallel",),   # batch blocks independent
            vmem_limit_bytes=32 * 1024 * 1024,   # toy shape; retune per-gen when tiled
        ),
    )(x_nhwc, w1_r, w2_r)

    # (N, Cout, Hp*Wp) -> NCHW is a pure reshape (no transpose, no HBM round trip).
    return out_t.reshape(N, Cout, Hp, Wp)


def down_reference(x_nchw, w1_hwio, w2_hwio):
    # Pure-JAX reference matching PyTorch semantics (NCHW).
    p = jax.lax.reduce_window(x_nchw, -jnp.inf, jax.lax.max,
                              (1, 1, 2, 2), (1, 1, 2, 2), "VALID")

    def block(h, w_hwio):
        w_oihw = jnp.transpose(w_hwio, (3, 2, 0, 1))
        y = jax.lax.conv_general_dilated(
            h, w_oihw, window_strides=(1, 1), padding=((1, 1), (1, 1)),
            dimension_numbers=("NCHW", "OIHW", "NCHW"),
            precision=jax.lax.Precision.HIGHEST)
        mean = jnp.mean(y, axis=(2, 3), keepdims=True)
        var = jnp.var(y, axis=(2, 3), keepdims=True)  # biased, like InstanceNorm2d
        return jnp.maximum((y - mean) / jnp.sqrt(var + 1e-5), 0.0)

    return block(block(p, w1_hwio), w2_hwio)


if __name__ == "__main__":
    key = jax.random.PRNGKey(0)
    kx, k1, k2 = jax.random.split(key, 3)
    N, Cin, H, W, Cout = 2, 4, 16, 16, 8

    x = jax.random.normal(kx, (N, Cin, H, W), jnp.float32)
    # Deterministic Kaiming-style init; shapes follow nn.Conv2d(Cin,Cout,3,bias=False).
    w1 = jax.random.normal(k1, (3, 3, Cin, Cout), jnp.float32) * (2.0 / (9 * Cin)) ** 0.5
    w2 = jax.random.normal(k2, (3, 3, Cout, Cout), jnp.float32) * (2.0 / (9 * Cout)) ** 0.5

    out = down_pallas(x, w1, w2)
    jax.block_until_ready(out)

    ref = down_reference(x, w1, w2)
    assert out.shape == (N, Cout, H // 2, W // 2), out.shape
    max_err = float(jnp.max(jnp.abs(out - ref)))
    assert jnp.allclose(out, ref, atol=1e-3, rtol=1e-3), max_err
    print("KERNEL_OK")
</pallas_src>

<mosaic_0001>
module attributes {stable_mosaic.version = 11 : i64} {
  func.func @_down_kernel(%arg0: i32, %arg1: memref<2x16x16x4xf32, #tpu.memory_space<vmem>>, %arg2: memref<36x8xf32, #tpu.memory_space<vmem>>, %arg3: memref<72x8xf32, #tpu.memory_space<vmem>>, %arg4: memref<2x8x64xf32, #tpu.memory_space<vmem>>, %arg5: memref<2x10x10x4xf32, #tpu.memory_space<vmem>>, %arg6: memref<2x10x10x8xf32, #tpu.memory_space<vmem>>, %arg7: memref<128x72xf32, #tpu.memory_space<vmem>>) attributes {dimension_semantics = [#tpu.dimension_semantics<parallel>], iteration_bounds = array<i64: 1>, scalar_prefetch = 0 : i64, scratch_operands = 3 : i64, tpu.core_type = #tpu.core_type<tc>, window_params = [{transform_indices = @transform_0, window_bounds = array<i64: 2, 16, 16, 4>}, {pipeline_mode = #tpu.pipeline_mode<synchronous>, transform_indices = @transform_1, window_bounds = array<i64: 36, 8>}, {pipeline_mode = #tpu.pipeline_mode<synchronous>, transform_indices = @transform_2, window_bounds = array<i64: 72, 8>}, {transform_indices = @transform_3, window_bounds = array<i64: 2, 8, 64>}]} {
    %c0 = arith.constant 0 : index
    %c0_0 = arith.constant 0 : index
    %c0_1 = arith.constant 0 : index
    %c0_2 = arith.constant 0 : index
    %0 = tpu.strided_load %arg1[%c0, %c0_0, %c0_1, %c0_2] {strides = array<i32: 1, 1, 2, 1>} : memref<2x16x16x4xf32, #tpu.memory_space<vmem>>, vector<2x16x8x4xf32>
    %c0_3 = arith.constant 0 : index
    %c0_4 = arith.constant 0 : index
    %c1 = arith.constant 1 : index
    %c0_5 = arith.constant 0 : index
    %1 = tpu.strided_load %arg1[%c0_3, %c0_4, %c1, %c0_5] {strides = array<i32: 1, 1, 2, 1>} : memref<2x16x16x4xf32, #tpu.memory_space<vmem>>, vector<2x16x8x4xf32>
    %2 = arith.maximumf %0, %1 : vector<2x16x8x4xf32>
    %3 = vector.shape_cast %2 : vector<2x16x8x4xf32> to vector<2x8x2x8x4xf32>
    %4 = vector.extract_strided_slice %3 {offsets = [0, 0, 0, 0, 0], sizes = [2, 8, 1, 8, 4], strides = [1, 1, 1, 1, 1]} : vector<2x8x2x8x4xf32> to vector<2x8x1x8x4xf32>
    %5 = vector.shape_cast %4 : vector<2x8x1x8x4xf32> to vector<2x8x8x4xf32>
    %6 = vector.extract_strided_slice %3 {offsets = [0, 0, 1, 0, 0], sizes = [2, 8, 1, 8, 4], strides = [1, 1, 1, 1, 1]} : vector<2x8x2x8x4xf32> to vector<2x8x1x8x4xf32>
    %7 = vector.shape_cast %6 : vector<2x8x1x8x4xf32> to vector<2x8x8x4xf32>
    %8 = arith.maximumf %5, %7 : vector<2x8x8x4xf32>
    %cst = arith.constant 0.000000e+00 : f32
    %9 = vector.broadcast %cst : f32 to vector<2x1x10x4xf32>
    %c0_6 = arith.constant 0 : index
    %c0_7 = arith.constant 0 : index
    %c0_8 = arith.constant 0 : index
    %c0_9 = arith.constant 0 : index
    %10 = vector.load %arg5[%c0_6, %c0_7, %c0_8, %c0_9] : memref<2x10x10x4xf32, #tpu.memory_space<vmem>>, vector<2x1x10x4xf32>
    tpu.vector_store %arg5[%c0_6, %c0_7, %c0_8, %c0_9], %9 {strides = array<i32>} : memref<2x10x10x4xf32, #tpu.memory_space<vmem>>, vector<2x1x10x4xf32>,
    %cst_10 = arith.constant 0.000000e+00 : f32
    %11 = vector.broadcast %cst_10 : f32 to vector<2x1x10x4xf32>
    %c0_11 = arith.constant 0 : index
    %c9 = arith.constant 9 : index
    %c0_12 = arith.constant 0 : index
    %c0_13 = arith.constant 0 : index
    %12 = vector.load %arg5[%c0_11, %c9, %c0_12, %c0_13] : memref<2x10x10x4xf32, #tpu.memory_space<vmem>>, vector<2x1x10x4xf32>
    tpu.vector_store %arg5[%c0_11, %c9, %c0_12, %c0_13], %11 {strides = array<i32>} : memref<2x10x10x4xf32, #tpu.memory_space<vmem>>, vector<2x1x10x4xf32>,
    %cst_14 = arith.constant 0.000000e+00 : f32
    %13 = vector.broadcast %cst_14 : f32 to vector<2x10x1x4xf32>
    %c0_15 = arith.constant 0 : index
    %c0_16 = arith.constant 0 : index
    %c0_17 = arith.constant 0 : index
    %c0_18 = arith.constant 0 : index
    %14 = vector.load %arg5[%c0_15, %c0_16, %c0_17, %c0_18] : memref<2x10x10x4xf32, #tpu.memory_space<vmem>>, vector<2x10x1x4xf32>
    tpu.vector_store %arg5[%c0_15, %c0_16, %c0_17, %c0_18], %13 {strides = array<i32>} : memref<2x10x10x4xf32, #tpu.memory_space<vmem>>, vector<2x10x1x4xf32>,
    %cst_19 = arith.constant 0.000000e+00 : f32
    %15 = vector.broadcast %cst_19 : f32 to vector<2x10x1x4xf32>
    %c0_20 = arith.constant 0 : index
    %c0_21 = arith.constant 0 : index
    %c9_22 = arith.constant 9 : index
    %c0_23 = arith.constant 0 : index
    %16 = vector.load %arg5[%c0_20, %c0_21, %c9_22, %c0_23] : memref<2x10x10x4xf32, #tpu.memory_space<vmem>>, vector<2x10x1x4xf32>
    tpu.vector_store %arg5[%c0_20, %c0_21, %c9_22, %c0_23], %15 {strides = array<i32>} : memref<2x10x10x4xf32, #tpu.memory_space<vmem>>, vector<2x10x1x4xf32>,
    %c0_24 = arith.constant 0 : index
    %c1_25 = arith.constant 1 : index
    %c1_26 = arith.constant 1 : index
    %c0_27 = arith.constant 0 : index
    %17 = vector.load %arg5[%c0_24, %c1_25, %c1_26, %c0_27] : memref<2x10x10x4xf32, #tpu.memory_space<vmem>>, vector<2x8x8x4xf32>
    tpu.vector_store %arg5[%c0_24, %c1_25, %c1_26, %c0_27], %8 {strides = array<i32>} : memref<2x10x10x4xf32, #tpu.memory_space<vmem>>, vector<2x8x8x4xf32>,
    %c0_28 = arith.constant 0 : index
    %c0_29 = arith.constant 0 : index
    %c0_30 = arith.constant 0 : index
    %c0_31 = arith.constant 0 : index
    %18 = vector.load %arg5[%c0_28, %c0_29, %c0_30, %c0_31] : memref<2x10x10x4xf32, #tpu.memory_space<vmem>>, vector<2x8x8x4xf32>
    %19 = vector.shape_cast %18 : vector<2x8x8x4xf32> to vector<128x4xf32>
    %c0_32 = arith.constant 0 : index
    %c0_33 = arith.constant 0 : index
    %20 = vector.load %arg7[%c0_32, %c0_33] : memref<128x72xf32, #tpu.memory_space<vmem>>, vector<128x4xf32>
    tpu.vector_store %arg7[%c0_32, %c0_33], %19 {strides = array<i32>} : memref<128x72xf32, #tpu.memory_space<vmem>>, vector<128x4xf32>,
    %c0_34 = arith.constant 0 : index
    %c0_35 = arith.constant 0 : index
    %c1_36 = arith.constant 1 : index
    %c0_37 = arith.constant 0 : index
    %21 = vector.load %arg5[%c0_34, %c0_35, %c1_36, %c0_37] : memref<2x10x10x4xf32, #tpu.memory_space<vmem>>, vector<2x8x8x4xf32>
    %22 = vector.shape_cast %21 : vector<2x8x8x4xf32> to vector<128x4xf32>
    %c0_38 = arith.constant 0 : index
    %c4 = arith.constant 4 : index
    %23 = vector.load %arg7[%c0_38, %c4] : memref<128x72xf32, #tpu.memory_space<vmem>>, vector<128x4xf32>
    tpu.vector_store %arg7[%c0_38, %c4], %22 {strides = array<i32>} : memref<128x72xf32, #tpu.memory_space<vmem>>, vector<128x4xf32>,
    %c0_39 = arith.constant 0 : index
    %c0_40 = arith.constant 0 : index
    %c2 = arith.constant 2 : index
    %c0_41 = arith.constant 0 : index
    %24 = vector.load %arg5[%c0_39, %c0_40, %c2, %c0_41] : memref<2x10x10x4xf32, #tpu.memory_space<vmem>>, vector<2x8x8x4xf32>
    %25 = vector.shape_cast %24 : vector<2x8x8x4xf32> to vector<128x4xf32>
    %c0_42 = arith.constant 0 : index
    %c8 = arith.constant 8 : index
    %26 = vector.load %arg7[%c0_42, %c8] : memref<128x72xf32, #tpu.memory_space<vmem>>, vector<128x4xf32>
    tpu.vector_store %arg7[%c0_42, %c8], %25 {strides = array<i32>} : memref<128x72xf32, #tpu.memory_space<vmem>>, vector<128x4xf32>,
    %c0_43 = arith.constant 0 : index
    %c1_44 = arith.constant 1 : index
    %c0_45 = arith.constant 0 : index
    %c0_46 = arith.constant 0 : index
    %27 = vector.load %arg5[%c0_43, %c1_44, %c0_45, %c0_46] : memref<2x10x10x4xf32, #tpu.memory_space<vmem>>, vector<2x8x8x4xf32>
    %28 = vector.shape_cast %27 : vector<2x8x8x4xf32> to vector<128x4xf32>
    %c0_47 = arith.constant 0 : index
    %c12 = arith.constant 12 : index
    %29 = vector.load %arg7[%c0_47, %c12] : memref<128x72xf32, #tpu.memory_space<vmem>>, vector<128x4xf32>
    tpu.vector_store %arg7[%c0_47, %c12], %28 {strides = array<i32>} : memref<128x72xf32, #tpu.memory_space<vmem>>, vector<128x4xf32>,
    %c0_48 = arith.constant 0 : index
    %c1_49 = arith.constant 1 : index
    %c1_50 = arith.constant 1 : index
    %c0_51 = arith.constant 0 : index
    %30 = vector.load %arg5[%c0_48, %c1_49, %c1_50, %c0_51] : memref<2x10x10x4xf32, #tpu.memory_space<vmem>>, vector<2x8x8x4xf32>
    %31 = vector.shape_cast %30 : vector<2x8x8x4xf32> to vector<128x4xf32>
    %c0_52 = arith.constant 0 : index
    %c16 = arith.constant 16 : index
    %32 = vector.load %arg7[%c0_52, %c16] : memref<128x72xf32, #tpu.memory_space<vmem>>, vector<128x4xf32>
    tpu.vector_store %arg7[%c0_52, %c16], %31 {strides = array<i32>} : memref<128x72xf32, #tpu.memory_space<vmem>>, vector<128x4xf32>,
    %c0_53 = arith.constant 0 : index
    %c1_54 = arith.constant 1 : index
    %c2_55 = arith.constant 2 : index
    %c0_56 = arith.constant 0 : index
    %33 = vector.load %arg5[%c0_53, %c1_54, %c2_55, %c0_56] : memref<2x10x10x4xf32, #tpu.memory_space<vmem>>, vector<2x8x8x4xf32>
    %34 = vector.shape_cast %33 : vector<2x8x8x4xf32> to vector<128x4xf32>
    %c0_57 = arith.constant 0 : index
    %c20 = arith.constant 20 : index
    %35 = vector.load %arg7[%c0_57, %c20] : memref<128x72xf32, #tpu.memory_space<vmem>>, vector<128x4xf32>
    tpu.vector_store %arg7[%c0_57, %c20], %34 {strides = array<i32>} : memref<128x72xf32, #tpu.memory_space<vmem>>, vector<128x4xf32>,
    %c0_58 = arith.constant 0 : index
    %c2_59 = arith.constant 2 : index
    %c0_60 = arith.constant 0 : index
    %c0_61 = arith.constant 0 : index
    %36 = vector.load %arg5[%c0_58, %c2_59, %c0_60, %c0_61] : memref<2x10x10x4xf32, #tpu.memory_space<vmem>>, vector<2x8x8x4xf32>
    %37 = vector.shape_cast %36 : vector<2x8x8x4xf32> to vector<128x4xf32>
    %c0_62 = arith.constant 0 : index
    %c24 = arith.constant 24 : index
    %38 = vector.load %arg7[%c0_62, %c24] : memref<128x72xf32, #tpu.memory_space<vmem>>, vector<128x4xf32>
    tpu.vector_store %arg7[%c0_62, %c24], %37 {strides = array<i32>} : memref<128x72xf32, #tpu.memory_space<vmem>>, vector<128x4xf32>,
    %c0_63 = arith.constant 0 : index
    %c2_64 = arith.constant 2 : index
    %c1_65 = arith.constant 1 : index
    %c0_66 = arith.constant 0 : index
    %39 = vector.load %arg5[%c0_63, %c2_64, %c1_65, %c0_66] : memref<2x10x10x4xf32, #tpu.memory_space<vmem>>, vector<2x8x8x4xf32>
    %40 = vector.shape_cast %39 : vector<2x8x8x4xf32> to vector<128x4xf32>
    %c0_67 = arith.constant 0 : index
    %c28 = arith.constant 28 : index
    %41 = vector.load %arg7[%c0_67, %c28] : memref<128x72xf32, #tpu.memory_space<vmem>>, vector<128x4xf32>
    tpu.vector_store %arg7[%c0_67, %c28], %40 {strides = array<i32>} : memref<128x72xf32, #tpu.memory_space<vmem>>, vector<128x4xf32>,
    %c0_68 = arith.constant 0 : index
    %c2_69 = arith.constant 2 : index
    %c2_70 = arith.constant 2 : index
    %c0_71 = arith.constant 0 : index
    %42 = vector.load %arg5[%c0_68, %c2_69, %c2_70, %c0_71] : memref<2x10x10x4xf32, #tpu.memory_space<vmem>>, vector<2x8x8x4xf32>
    %43 = vector.shape_cast %42 : vector<2x8x8x4xf32> to vector<128x4xf32>
    %c0_72 = arith.constant 0 : index
    %c32 = arith.constant 32 : index
    %44 = vector.load %arg7[%c0_72, %c32] : memref<128x72xf32, #tpu.memory_space<vmem>>, vector<128x4xf32>
    tpu.vector_store %arg7[%c0_72, %c32], %43 {strides = array<i32>} : memref<128x72xf32, #tpu.memory_space<vmem>>, vector<128x4xf32>,
    %c0_73 = arith.constant 0 : index
    %c0_74 = arith.constant 0 : index
    %45 = vector.load %arg7[%c0_73, %c0_74] : memref<128x72xf32, #tpu.memory_space<vmem>>, vector<128x36xf32>
    %c0_75 = arith.constant 0 : index
    %c0_76 = arith.constant 0 : index
    %46 = vector.load %arg2[%c0_75, %c0_76] : memref<36x8xf32, #tpu.memory_space<vmem>>, vector<36x8xf32>
    %cst_77 = arith.constant dense<0.000000e+00> : vector<128x8xf32>
    %47 = tpu.matmul %45, %46, %cst_77 {dimension_numbers = #tpu.dot_dimension_numbers<[1], [0], [0], [1], [0, 0, 1, 1], [], []>} : vector<128x36xf32>, vector<36x8xf32>, vector<128x8xf32> -> vector<128x8xf32>
    %48 = vector.shape_cast %47 : vector<128x8xf32> to vector<2x64x8xf32>
    %cst_78 = arith.constant dense<0.000000e+00> : vector<2x8xf32>
    %49 = vector.multi_reduction <add>, %48, %cst_78 [1] : vector<2x64x8xf32> to vector<2x8xf32>
    %50 = vector.shape_cast %49 : vector<2x8xf32> to vector<2x1x8xf32>
    %cst_79 = arith.constant 1.562500e-02 : f32
    %51 = vector.broadcast %cst_79 : f32 to vector<2x1x8xf32>
    %52 = arith.mulf %50, %51 : vector<2x1x8xf32>
    %53 = arith.mulf %48, %48 : vector<2x64x8xf32>
    %cst_80 = arith.constant dense<0.000000e+00> : vector<2x8xf32>
    %54 = vector.multi_reduction <add>, %53, %cst_80 [1] : vector<2x64x8xf32> to vector<2x8xf32>
    %55 = vector.shape_cast %54 : vector<2x8xf32> to vector<2x1x8xf32>
    %cst_81 = arith.constant 1.562500e-02 : f32
    %56 = vector.broadcast %cst_81 : f32 to vector<2x1x8xf32>
    %57 = arith.mulf %55, %56 : vector<2x1x8xf32>
    %58 = arith.mulf %52, %52 : vector<2x1x8xf32>
    %59 = arith.subf %57, %58 : vector<2x1x8xf32>
    %cst_82 = arith.constant 0.000000e+00 : f32
    %60 = vector.broadcast %cst_82 : f32 to vector<2x1x8xf32>
    %61 = arith.maximumf %59, %60 : vector<2x1x8xf32>
    %62 = vector.broadcast %52 : vector<2x1x8xf32> to vector<2x64x8xf32>
    %63 = arith.subf %48, %62 : vector<2x64x8xf32>
    %cst_83 = arith.constant 9.99999974E-6 : f32
    %64 = vector.broadcast %cst_83 : f32 to vector<2x1x8xf32>
    %65 = arith.addf %61, %64 : vector<2x1x8xf32>
    %66 = math.rsqrt %65 : vector<2x1x8xf32>
    %67 = vector.broadcast %66 : vector<2x1x8xf32> to vector<2x64x8xf32>
    %68 = arith.mulf %63, %67 : vector<2x64x8xf32>
    %cst_84 = arith.constant 0.000000e+00 : f32
    %69 = vector.broadcast %cst_84 : f32 to vector<2x64x8xf32>
    %70 = arith.maximumf %68, %69 : vector<2x64x8xf32>
    %71 = vector.shape_cast %70 : vector<2x64x8xf32> to vector<2x8x8x8xf32>
    %cst_85 = arith.constant 0.000000e+00 : f32
    %72 = vector.broadcast %cst_85 : f32 to vector<2x1x10x8xf32>
    %c0_86 = arith.constant 0 : index
    %c0_87 = arith.constant 0 : index
    %c0_88 = arith.constant 0 : index
    %c0_89 = arith.constant 0 : index
    %73 = vector.load %arg6[%c0_86, %c0_87, %c0_88, %c0_89] : memref<2x10x10x8xf32, #tpu.memory_space<vmem>>, vector<2x1x10x8xf32>
    tpu.vector_store %arg6[%c0_86, %c0_87, %c0_88, %c0_89], %72 {strides = array<i32>} : memref<2x10x10x8xf32, #tpu.memory_space<vmem>>, vector<2x1x10x8xf32>,
    %cst_90 = arith.constant 0.000000e+00 : f32
    %74 = vector.broadcast %cst_90 : f32 to vector<2x1x10x8xf32>
    %c0_91 = arith.constant 0 : index
    %c9_92 = arith.constant 9 : index
    %c0_93 = arith.constant 0 : index
    %c0_94 = arith.constant 0 : index
    %75 = vector.load %arg6[%c0_91, %c9_92, %c0_93, %c0_94] : memref<2x10x10x8xf32, #tpu.memory_space<vmem>>, vector<2x1x10x8xf32>
    tpu.vector_store %arg6[%c0_91, %c9_92, %c0_93, %c0_94], %74 {strides = array<i32>} : memref<2x10x10x8xf32, #tpu.memory_space<vmem>>, vector<2x1x10x8xf32>,
    %cst_95 = arith.constant 0.000000e+00 : f32
    %76 = vector.broadcast %cst_95 : f32 to vector<2x10x1x8xf32>
    %c0_96 = arith.constant 0 : index
    %c0_97 = arith.constant 0 : index
    %c0_98 = arith.constant 0 : index
    %c0_99 = arith.constant 0 : index
    %77 = vector.load %arg6[%c0_96, %c0_97, %c0_98, %c0_99] : memref<2x10x10x8xf32, #tpu.memory_space<vmem>>, vector<2x10x1x8xf32>
    tpu.vector_store %arg6[%c0_96, %c0_97, %c0_98, %c0_99], %76 {strides = array<i32>} : memref<2x10x10x8xf32, #tpu.memory_space<vmem>>, vector<2x10x1x8xf32>,
    %cst_100 = arith.constant 0.000000e+00 : f32
    %78 = vector.broadcast %cst_100 : f32 to vector<2x10x1x8xf32>
    %c0_101 = arith.constant 0 : index
    %c0_102 = arith.constant 0 : index
    %c9_103 = arith.constant 9 : index
    %c0_104 = arith.constant 0 : index
    %79 = vector.load %arg6[%c0_101, %c0_102, %c9_103, %c0_104] : memref<2x10x10x8xf32, #tpu.memory_space<vmem>>, vector<2x10x1x8xf32>
    tpu.vector_store %arg6[%c0_101, %c0_102, %c9_103, %c0_104], %78 {strides = array<i32>} : memref<2x10x10x8xf32, #tpu.memory_space<vmem>>, vector<2x10x1x8xf32>,
    %c0_105 = arith.constant 0 : index
    %c1_106 = arith.constant 1 : index
    %c1_107 = arith.constant 1 : index
    %c0_108 = arith.constant 0 : index
    %80 = vector.load %arg6[%c0_105, %c1_106, %c1_107, %c0_108] : memref<2x10x10x8xf32, #tpu.memory_space<vmem>>, vector<2x8x8x8xf32>
    tpu.vector_store %arg6[%c0_105, %c1_106, %c1_107, %c0_108], %71 {strides = array<i32>} : memref<2x10x10x8xf32, #tpu.memory_space<vmem>>, vector<2x8x8x8xf32>,
    %c0_109 = arith.constant 0 : index
    %c0_110 = arith.constant 0 : index
    %c0_111 = arith.constant 0 : index
    %c0_112 = arith.constant 0 : index
    %81 = vector.load %arg6[%c0_109, %c0_110, %c0_111, %c0_112] : memref<2x10x10x8xf32, #tpu.memory_space<vmem>>, vector<2x8x8x8xf32>
    %82 = vector.shape_cast %81 : vector<2x8x8x8xf32> to vector<128x8xf32>
    %c0_113 = arith.constant 0 : index
    %c0_114 = arith.constant 0 : index
    %83 = vector.load %arg7[%c0_113, %c0_114] : memref<128x72xf32, #tpu.memory_space<vmem>>, vector<128x8xf32>
    tpu.vector_store %arg7[%c0_113, %c0_114], %82 {strides = array<i32>} : memref<128x72xf32, #tpu.memory_space<vmem>>, vector<128x8xf32>,
    %c0_115 = arith.constant 0 : index
    %c0_116 = arith.constant 0 : index
    %c1_117 = arith.constant 1 : index
    %c0_118 = arith.constant 0 : index
    %84 = vector.load %arg6[%c0_115, %c0_116, %c1_117, %c0_118] : memref<2x10x10x8xf32, #tpu.memory_space<vmem>>, vector<2x8x8x8xf32>
    %85 = vector.shape_cast %84 : vector<2x8x8x8xf32> to vector<128x8xf32>
    %c0_119 = arith.constant 0 : index
    %c8_120 = arith.constant 8 : index
    %86 = vector.load %arg7[%c0_119, %c8_120] : memref<128x72xf32, #tpu.memory_space<vmem>>, vector<128x8xf32>
    tpu.vector_store %arg7[%c0_119, %c8_120], %85 {strides = array<i32>} : memref<128x72xf32, #tpu.memory_space<vmem>>, vector<128x8xf32>,
    %c0_121 = arith.constant 0 : index
    %c0_122 = arith.constant 0 : index
    %c2_123 = arith.constant 2 : index
    %c0_124 = arith.constant 0 : index
    %87 = vector.load %arg6[%c0_121, %c0_122, %c2_123, %c0_124] : memref<2x10x10x8xf32, #tpu.memory_space<vmem>>, vector<2x8x8x8xf32>
    %88 = vector.shape_cast %87 : vector<2x8x8x8xf32> to vector<128x8xf32>
    %c0_125 = arith.constant 0 : index
    %c16_126 = arith.constant 16 : index
    %89 = vector.load %arg7[%c0_125, %c16_126] : memref<128x72xf32, #tpu.memory_space<vmem>>, vector<128x8xf32>
    tpu.vector_store %arg7[%c0_125, %c16_126], %88 {strides = array<i32>} : memref<128x72xf32, #tpu.memory_space<vmem>>, vector<128x8xf32>,
    %c0_127 = arith.constant 0 : index
    %c1_128 = arith.constant 1 : index
    %c0_129 = arith.constant 0 : index
    %c0_130 = arith.constant 0 : index
    %90 = vector.load %arg6[%c0_127, %c1_128, %c0_129, %c0_130] : memref<2x10x10x8xf32, #tpu.memory_space<vmem>>, vector<2x8x8x8xf32>
    %91 = vector.shape_cast %90 : vector<2x8x8x8xf32> to vector<128x8xf32>
    %c0_131 = arith.constant 0 : index
    %c24_132 = arith.constant 24 : index
    %92 = vector.load %arg7[%c0_131, %c24_132] : memref<128x72xf32, #tpu.memory_space<vmem>>, vector<128x8xf32>
    tpu.vector_store %arg7[%c0_131, %c24_132], %91 {strides = array<i32>} : memref<128x72xf32, #tpu.memory_space<vmem>>, vector<128x8xf32>,
    %c0_133 = arith.constant 0 : index
    %c1_134 = arith.constant 1 : index
    %c1_135 = arith.constant 1 : index
    %c0_136 = arith.constant 0 : index
    %93 = vector.load %arg6[%c0_133, %c1_134, %c1_135, %c0_136] : memref<2x10x10x8xf32, #tpu.memory_space<vmem>>, vector<2x8x8x8xf32>
    %94 = vector.shape_cast %93 : vector<2x8x8x8xf32> to vector<128x8xf32>
    %c0_137 = arith.constant 0 : index
    %c32_138 = arith.constant 32 : index
    %95 = vector.load %arg7[%c0_137, %c32_138] : memref<128x72xf32, #tpu.memory_space<vmem>>, vector<128x8xf32>
    tpu.vector_store %arg7[%c0_137, %c32_138], %94 {strides = array<i32>} : memref<128x72xf32, #tpu.memory_space<vmem>>, vector<128x8xf32>,
    %c0_139 = arith.constant 0 : index
    %c1_140 = arith.constant 1 : index
    %c2_141 = arith.constant 2 : index
    %c0_142 = arith.constant 0 : index
    %96 = vector.load %arg6[%c0_139, %c1_140, %c2_141, %c0_142] : memref<2x10x10x8xf32, #tpu.memory_space<vmem>>, vector<2x8x8x8xf32>
    %97 = vector.shape_cast %96 : vector<2x8x8x8xf32> to vector<128x8xf32>
    %c0_143 = arith.constant 0 : index
    %c40 = arith.constant 40 : index
    %98 = vector.load %arg7[%c0_143, %c40] : memref<128x72xf32, #tpu.memory_space<vmem>>, vector<128x8xf32>
    tpu.vector_store %arg7[%c0_143, %c40], %97 {strides = array<i32>} : memref<128x72xf32, #tpu.memory_space<vmem>>, vector<128x8xf32>,
    %c0_144 = arith.constant 0 : index
    %c2_145 = arith.constant 2 : index
    %c0_146 = arith.constant 0 : index
    %c0_147 = arith.constant 0 : index
    %99 = vector.load %arg6[%c0_144, %c2_145, %c0_146, %c0_147] : memref<2x10x10x8xf32, #tpu.memory_space<vmem>>, vector<2x8x8x8xf32>
    %100 = vector.shape_cast %99 : vector<2x8x8x8xf32> to vector<128x8xf32>
    %c0_148 = arith.constant 0 : index
    %c48 = arith.constant 48 : index
    %101 = vector.load %arg7[%c0_148, %c48] : memref<128x72xf32, #tpu.memory_space<vmem>>, vector<128x8xf32>
    tpu.vector_store %arg7[%c0_148, %c48], %100 {strides = array<i32>} : memref<128x72xf32, #tpu.memory_space<vmem>>, vector<128x8xf32>,
    %c0_149 = arith.constant 0 : index
    %c2_150 = arith.constant 2 : index
    %c1_151 = arith.constant 1 : index
    %c0_152 = arith.constant 0 : index
    %102 = vector.load %arg6[%c0_149, %c2_150, %c1_151, %c0_152] : memref<2x10x10x8xf32, #tpu.memory_space<vmem>>, vector<2x8x8x8xf32>
    %103 = vector.shape_cast %102 : vector<2x8x8x8xf32> to vector<128x8xf32>
    %c0_153 = arith.constant 0 : index
    %c56 = arith.constant 56 : index
    %104 = vector.load %arg7[%c0_153, %c56] : memref<128x72xf32, #tpu.memory_space<vmem>>, vector<128x8xf32>
    tpu.vector_store %arg7[%c0_153, %c56], %103 {strides = array<i32>} : memref<128x72xf32, #tpu.memory_space<vmem>>, vector<128x8xf32>,
    %c0_154 = arith.constant 0 : index
    %c2_155 = arith.constant 2 : index
    %c2_156 = arith.constant 2 : index
    %c0_157 = arith.constant 0 : index
    %105 = vector.load %arg6[%c0_154, %c2_155, %c2_156, %c0_157] : memref<2x10x10x8xf32, #tpu.memory_space<vmem>>, vector<2x8x8x8xf32>
    %106 = vector.shape_cast %105 : vector<2x8x8x8xf32> to vector<128x8xf32>
    %c0_158 = arith.constant 0 : index
    %c64 = arith.constant 64 : index
    %107 = vector.load %arg7[%c0_158, %c64] : memref<128x72xf32, #tpu.memory_space<vmem>>, vector<128x8xf32>
    tpu.vector_store %arg7[%c0_158, %c64], %106 {strides = array<i32>} : memref<128x72xf32, #tpu.memory_space<vmem>>, vector<128x8xf32>,
    %c0_159 = arith.constant 0 : index
    %c0_160 = arith.constant 0 : index
    %108 = vector.load %arg7[%c0_159, %c0_160] : memref<128x72xf32, #tpu.memory_space<vmem>>, vector<128x72xf32>
    %c0_161 = arith.constant 0 : index
    %c0_162 = arith.constant 0 : index
    %109 = vector.load %arg3[%c0_161, %c0_162] : memref<72x8xf32, #tpu.memory_space<vmem>>, vector<72x8xf32>
    %cst_163 = arith.constant dense<0.000000e+00> : vector<128x8xf32>
    %110 = tpu.matmul %108, %109, %cst_163 {dimension_numbers = #tpu.dot_dimension_numbers<[1], [0], [0], [1], [0, 0, 1, 1], [], []>} : vector<128x72xf32>, vector<72x8xf32>, vector<128x8xf32> -> vector<128x8xf32>
    %111 = vector.shape_cast %110 : vector<128x8xf32> to vector<2x64x8xf32>
    %cst_164 = arith.constant dense<0.000000e+00> : vector<2x8xf32>
    %112 = vector.multi_reduction <add>, %111, %cst_164 [1] : vector<2x64x8xf32> to vector<2x8xf32>
    %113 = vector.shape_cast %112 : vector<2x8xf32> to vector<2x1x8xf32>
    %cst_165 = arith.constant 1.562500e-02 : f32
    %114 = vector.broadcast %cst_165 : f32 to vector<2x1x8xf32>
    %115 = arith.mulf %113, %114 : vector<2x1x8xf32>
    %116 = arith.mulf %111, %111 : vector<2x64x8xf32>
    %cst_166 = arith.constant dense<0.000000e+00> : vector<2x8xf32>
    %117 = vector.multi_reduction <add>, %116, %cst_166 [1] : vector<2x64x8xf32> to vector<2x8xf32>
    %118 = vector.shape_cast %117 : vector<2x8xf32> to vector<2x1x8xf32>
    %cst_167 = arith.constant 1.562500e-02 : f32
    %119 = vector.broadcast %cst_167 : f32 to vector<2x1x8xf32>
    %120 = arith.mulf %118, %119 : vector<2x1x8xf32>
    %121 = arith.mulf %115, %115 : vector<2x1x8xf32>
    %122 = arith.subf %120, %121 : vector<2x1x8xf32>
    %cst_168 = arith.constant 0.000000e+00 : f32
    %123 = vector.broadcast %cst_168 : f32 to vector<2x1x8xf32>
    %124 = arith.maximumf %122, %123 : vector<2x1x8xf32>
    %125 = vector.broadcast %115 : vector<2x1x8xf32> to vector<2x64x8xf32>
    %126 = arith.subf %111, %125 : vector<2x64x8xf32>
    %cst_169 = arith.constant 9.99999974E-6 : f32
    %127 = vector.broadcast %cst_169 : f32 to vector<2x1x8xf32>
    %128 = arith.addf %124, %127 : vector<2x1x8xf32>
    %129 = math.rsqrt %128 : vector<2x1x8xf32>
    %130 = vector.broadcast %129 : vector<2x1x8xf32> to vector<2x64x8xf32>
    %131 = arith.mulf %126, %130 : vector<2x64x8xf32>
    %cst_170 = arith.constant 0.000000e+00 : f32
    %132 = vector.broadcast %cst_170 : f32 to vector<2x64x8xf32>
    %133 = arith.maximumf %131, %132 : vector<2x64x8xf32>
    %134 = vector.extract_strided_slice %133 {offsets = [0, 0, 0], sizes = [1, 64, 8], strides = [1, 1, 1]} : vector<2x64x8xf32> to vector<1x64x8xf32>
    %135 = vector.shape_cast %134 : vector<1x64x8xf32> to vector<64x8xf32>
    %136 = tpu.transpose %135, [1, 0] : vector<64x8xf32> -> vector<8x64xf32>
    %c0_171 = arith.constant 0 : index
    %c0_172 = arith.constant 0 : index
    %c0_173 = arith.constant 0 : index
    %137 = vector.load %arg4[%c0_171, %c0_172, %c0_173] : memref<2x8x64xf32, #tpu.memory_space<vmem>>, vector<1x8x64xf32>
    %138 = vector.shape_cast %137 : vector<1x8x64xf32> to vector<8x64xf32>
    %139 = vector.shape_cast %136 : vector<8x64xf32> to vector<1x8x64xf32>
    tpu.vector_store %arg4[%c0_171, %c0_172, %c0_173], %139 {strides = array<i32>} : memref<2x8x64xf32, #tpu.memory_space<vmem>>, vector<1x8x64xf32>,
    %140 = vector.extract_strided_slice %133 {offsets = [1, 0, 0], sizes = [1, 64, 8], strides = [1, 1, 1]} : vector<2x64x8xf32> to vector<1x64x8xf32>
    %141 = vector.shape_cast %140 : vector<1x64x8xf32> to vector<64x8xf32>
    %142 = tpu.transpose %141, [1, 0] : vector<64x8xf32> -> vector<8x64xf32>
    %c1_174 = arith.constant 1 : index
    %c0_175 = arith.constant 0 : index
    %c0_176 = arith.constant 0 : index
    %143 = vector.load %arg4[%c1_174, %c0_175, %c0_176] : memref<2x8x64xf32, #tpu.memory_space<vmem>>, vector<1x8x64xf32>
    %144 = vector.shape_cast %143 : vector<1x8x64xf32> to vector<8x64xf32>
    %145 = vector.shape_cast %142 : vector<8x64xf32> to vector<1x8x64xf32>
    tpu.vector_store %arg4[%c1_174, %c0_175, %c0_176], %145 {strides = array<i32>} : memref<2x8x64xf32, #tpu.memory_space<vmem>>, vector<1x8x64xf32>,
    return
  }
  func.func @transform_0(%arg0: i32) -> (i32, i32, i32, i32) {
    %c0_i32 = arith.constant 0 : i32
    %c0_i32_0 = arith.constant 0 : i32
    %c0_i32_1 = arith.constant 0 : i32
    %c0_i32_2 = arith.constant 0 : i32
    return %arg0, %c0_i32, %c0_i32_0, %c0_i32_1 : i32, i32, i32, i32
  }
  func.func @transform_1(%arg0: i32) -> (i32, i32) {
    %c0_i32 = arith.constant 0 : i32
    %c0_i32_0 = arith.constant 0 : i32
    %c0_i32_1 = arith.constant 0 : i32
    return %c0_i32, %c0_i32_0 : i32, i32
  }
  func.func @transform_2(%arg0: i32) -> (i32, i32) {
    %c0_i32 = arith.constant 0 : i32
    %c0_i32_0 = arith.constant 0 : i32
    %c0_i32_1 = arith.constant 0 : i32
    return %c0_i32, %c0_i32_0 : i32, i32
  }
  func.func @transform_3(%arg0: i32) -> (i32, i32, i32) {
    %c0_i32 = arith.constant 0 : i32
    %c0_i32_0 = arith.constant 0 : i32
    %c0_i32_1 = arith.constant 0 : i32
    return %arg0, %c0_i32, %c0_i32_0 : i32, i32, i32
  }
}

</mosaic_0001>

<llo_original>
// kernel: tpu_custom_call.1
$region0: #{tpu_custom_call.1}
  #allocation0 [shape = 'u32[]', space=smem, size = 0x4, offset = 0x4, fixed_abs, tag = 'smem constant byte address 0x4 - core index']
  #allocation1 [shape = 'u32[144,128]{1,0:T(1,128)}', space=vmem, size = 0x12000, scoped, tag = 'internal scratch']
  #allocation2 [shape = 'f32[2,10,10,4]{3,2,1,0:T(8,128)}', space=vmem, size = 0x28000, scoped, tag = 'scratch operand']
  #allocation3 [shape = 'f32[2,10,10,8]{3,2,1,0:T(8,128)}', space=vmem, size = 0x28000, scoped, tag = 'scratch operand']
  #allocation4 [shape = 'f32[128,72]{1,0:T(8,128)}', space=vmem, size = 0x10000, scoped, tag = 'scratch operand']
  %s0 = inlined_call_operand.vmem [shape: f32[2,16,16,4], index: 0, kind: input, shape index: {}]
  %s1 = inlined_call_operand.vmem [shape: f32[36,8], index: 1, kind: input, shape index: {}]
  %s2 = inlined_call_operand.vmem [shape: f32[72,8], index: 2, kind: input, shape index: {}]
  %s3 = inlined_call_operand.hbm [shape: f32[2,8,64], index: 3, kind: output, shape index: {}]
  %s4 = sld [smem:[#allocation0]]
  $region22: #{tpu_custom_call.1} parent=0
    _
  %s6 = ssub.s32 1, %s4
  %s7 = scalar_select 0, %s6, %s4
  $region1: #{tpu_custom_call.1} parent=0
    #allocation5 [shape = 'u8[8192]{0}', space=vmem, size = 0x2000, scoped, tag = 'output window, operand 0, single buffered']
    #allocation6 [shape = 's32[1]{0}', space=sflag, size = 0x4, scoped, tag = 'scoped memory for tpu_custom_call.1']
    %8 = vsyncpa [#allocation6], 0
    // Predicated region
    $region2: #{tpu_custom_call.1} parent=1 // pred_check
      _
    $region3: #{tpu_custom_call.1} parent=1 // pred_check_branch
      %10 = sbr.rel (0) target = $region5
    $region4: #{tpu_custom_call.1} parent=1 // pred_region
      _
    $region5: #{tpu_custom_call.1} parent=1 // pred_fallthru
      _
    // Predicated region
    $region6: #{tpu_custom_call.1} parent=1 // pred_check
      _
    $region7: #{tpu_custom_call.1} parent=1 // pred_check_branch
      %12 = sbr.rel (0) target = $region9
    $region8: #{tpu_custom_call.1} parent=1 // pred_region
      _
    $region9: #{tpu_custom_call.1} parent=1 // pred_fallthru
      _
    // Predicated region
    $region10: #{tpu_custom_call.1} parent=1 // pred_check
      _
    $region11: #{tpu_custom_call.1} parent=1 // pred_check_branch
      %14 = sbr.rel (0) target = $region13
    $region12: #{tpu_custom_call.1} parent=1 // pred_region
      _
    $region13: #{tpu_custom_call.1} parent=1 // pred_fallthru
      _
    %v15 = vld [vmem:[%s0] ss:$2 sm:$0xff]
    %s16 = scalar_lea.vmem %s0, 16
    %v17 = vld [vmem:[%s16] ss:$2 sm:$0xff]
    %s18 = scalar_lea.vmem %s0, 32
    %v19 = vld [vmem:[%s18] ss:$2 sm:$0xff]
    %s20 = scalar_lea.vmem %s0, 48
    %v21 = vld [vmem:[%s20] ss:$2 sm:$0xff]
    %s22 = scalar_lea.vmem %s0, 64
    %v23 = vld [vmem:[%s22] ss:$2 sm:$0xff]
    %s24 = scalar_lea.vmem %s0, 80
    %v25 = vld [vmem:[%s24] ss:$2 sm:$0xff]
    %s26 = scalar_lea.vmem %s0, 96
    %v27 = vld [vmem:[%s26] ss:$2 sm:$0xff]
    %s28 = scalar_lea.vmem %s0, 112
    %v29 = vld [vmem:[%s28] ss:$2 sm:$0xff]
    %s30 = scalar_lea.vmem %s0, 128
    %v31 = vld [vmem:[%s30] ss:$2 sm:$0xff]
    %s32 = scalar_lea.vmem %s0, 144
    %v33 = vld [vmem:[%s32] ss:$2 sm:$0xff]
    %s34 = scalar_lea.vmem %s0, 160
    %v35 = vld [vmem:[%s34] ss:$2 sm:$0xff]
    %s36 = scalar_lea.vmem %s0, 176
    %v37 = vld [vmem:[%s36] ss:$2 sm:$0xff]
    %s38 = scalar_lea.vmem %s0, 192
    %v39 = vld [vmem:[%s38] ss:$2 sm:$0xff]
    %s40 = scalar_lea.vmem %s0, 208
    %v41 = vld [vmem:[%s40] ss:$2 sm:$0xff]
    %s42 = scalar_lea.vmem %s0, 224
    %v43 = vld [vmem:[%s42] ss:$2 sm:$0xff]
    %s44 = scalar_lea.vmem %s0, 240
    %v45 = vld [vmem:[%s44] ss:$2 sm:$0xff]
    %s46 = scalar_lea.vmem %s0, 256
    %v47 = vld [vmem:[%s46] ss:$2 sm:$0xff]
    %s48 = scalar_lea.vmem %s0, 272
    %v49 = vld [vmem:[%s48] ss:$2 sm:$0xff]
    %s50 = scalar_lea.vmem %s0, 288
    %v51 = vld [vmem:[%s50] ss:$2 sm:$0xff]
    %s52 = scalar_lea.vmem %s0, 304
    %v53 = vld [vmem:[%s52] ss:$2 sm:$0xff]
    %s54 = scalar_lea.vmem %s0, 320
    %v55 = vld [vmem:[%s54] ss:$2 sm:$0xff]
    %s56 = scalar_lea.vmem %s0, 336
    %v57 = vld [vmem:[%s56] ss:$2 sm:$0xff]
    %s58 = scalar_lea.vmem %s0, 352
    %v59 = vld [vmem:[%s58] ss:$2 sm:$0xff]
    %s60 = scalar_lea.vmem %s0, 368
    %v61 = vld [vmem:[%s60] ss:$2 sm:$0xff]
    %s62 = scalar_lea.vmem %s0, 384
    %v63 = vld [vmem:[%s62] ss:$2 sm:$0xff]
    %s64 = scalar_lea.vmem %s0, 400
    %v65 = vld [vmem:[%s64] ss:$2 sm:$0xff]
    %s66 = scalar_lea.vmem %s0, 416
    %v67 = vld [vmem:[%s66] ss:$2 sm:$0xff]
    %s68 = scalar_lea.vmem %s0, 432
    %v69 = vld [vmem:[%s68] ss:$2 sm:$0xff]
    %s70 = scalar_lea.vmem %s0, 448
    %v71 = vld [vmem:[%s70] ss:$2 sm:$0xff]
    %s72 = scalar_lea.vmem %s0, 464
    %v73 = vld [vmem:[%s72] ss:$2 sm:$0xff]
    %s74 = scalar_lea.vmem %s0, 480
    %v75 = vld [vmem:[%s74] ss:$2 sm:$0xff]
    %s76 = scalar_lea.vmem %s0, 496
    %v77 = vld [vmem:[%s76] ss:$2 sm:$0xff]
    %s78 = scalar_lea.vmem %s0, 1
    %v79 = vld [vmem:[%s78] ss:$2 sm:$0xff]
    %s80 = scalar_lea.vmem %s0, 17
    %v81 = vld [vmem:[%s80] ss:$2 sm:$0xff]
    %s82 = scalar_lea.vmem %s0, 33
    %v83 = vld [vmem:[%s82] ss:$2 sm:$0xff]
    %s84 = scalar_lea.vmem %s0, 49
    %v85 = vld [vmem:[%s84] ss:$2 sm:$0xff]
    %s86 = scalar_lea.vmem %s0, 65
    %v87 = vld [vmem:[%s86] ss:$2 sm:$0xff]
    %s88 = scalar_lea.vmem %s0, 81
    %v89 = vld [vmem:[%s88] ss:$2 sm:$0xff]
    %s90 = scalar_lea.vmem %s0, 97
    %v91 = vld [vmem:[%s90] ss:$2 sm:$0xff]
    %s92 = scalar_lea.vmem %s0, 113
    %v93 = vld [vmem:[%s92] ss:$2 sm:$0xff]
    %s94 = scalar_lea.vmem %s0, 129
    %v95 = vld [vmem:[%s94] ss:$2 sm:$0xff]
    %s96 = scalar_lea.vmem %s0, 145
    %v97 = vld [vmem:[%s96] ss:$2 sm:$0xff]
    %s98 = scalar_lea.vmem %s0, 161
    %v99 = vld [vmem:[%s98] ss:$2 sm:$0xff]
    %s100 = scalar_lea.vmem %s0, 177
    %v101 = vld [vmem:[%s100] ss:$2 sm:$0xff]
    %s102 = scalar_lea.vmem %s0, 193
    %v103 = vld [vmem:[%s102] ss:$2 sm:$0xff]
    %s104 = scalar_lea.vmem %s0, 209
    %v105 = vld [vmem:[%s104] ss:$2 sm:$0xff]
    %s106 = scalar_lea.vmem %s0, 225
    %v107 = vld [vmem:[%s106] ss:$2 sm:$0xff]
    %s108 = scalar_lea.vmem %s0, 241
    %v109 = vld [vmem:[%s108] ss:$2 sm:$0xff]
    %s110 = scalar_lea.vmem %s0, 257
    %v111 = vld [vmem:[%s110] ss:$2 sm:$0xff]
    %s112 = scalar_lea.vmem %s0, 273
    %v113 = vld [vmem:[%s112] ss:$2 sm:$0xff]
    %s114 = scalar_lea.vmem %s0, 289
    %v115 = vld [vmem:[%s114] ss:$2 sm:$0xff]
    %s116 = scalar_lea.vmem %s0, 305
    %v117 = vld [vmem:[%s116] ss:$2 sm:$0xff]
    %s118 = scalar_lea.vmem %s0, 321
    %v119 = vld [vmem:[%s118] ss:$2 sm:$0xff]
    %s120 = scalar_lea.vmem %s0, 337
    %v121 = vld [vmem:[%s120] ss:$2 sm:$0xff]
    %s122 = scalar_lea.vmem %s0, 353
    %v123 = vld [vmem:[%s122] ss:$2 sm:$0xff]
    %s124 = scalar_lea.vmem %s0, 369
    %v125 = vld [vmem:[%s124] ss:$2 sm:$0xff]
    %s126 = scalar_lea.vmem %s0, 385
    %v127 = vld [vmem:[%s126] ss:$2 sm:$0xff]
    %s128 = scalar_lea.vmem %s0, 401
    %v129 = vld [vmem:[%s128] ss:$2 sm:$0xff]
    %s130 = scalar_lea.vmem %s0, 417
    %v131 = vld [vmem:[%s130] ss:$2 sm:$0xff]
    %s132 = scalar_lea.vmem %s0, 433
    %v133 = vld [vmem:[%s132] ss:$2 sm:$0xff]
    %s134 = scalar_lea.vmem %s0, 449
    %v135 = vld [vmem:[%s134] ss:$2 sm:$0xff]
    %s136 = scalar_lea.vmem %s0, 465
    %v137 = vld [vmem:[%s136] ss:$2 sm:$0xff]
    %s138 = scalar_lea.vmem %s0, 481
    %v139 = vld [vmem:[%s138] ss:$2 sm:$0xff]
    %s140 = scalar_lea.vmem %s0, 497
    %v141 = vld [vmem:[%s140] ss:$2 sm:$0xff]
    %v142 = vmax.f32 %v15, %v79
    %v143 = vmax.f32 %v17, %v81
    %v144 = vmax.f32 %v19, %v83
    %v145 = vmax.f32 %v21, %v85
    %v146 = vmax.f32 %v23, %v87
    %v147 = vmax.f32 %v25, %v89
    %v148 = vmax.f32 %v27, %v91
    %v149 = vmax.f32 %v29, %v93
    %v150 = vmax.f32 %v31, %v95
    %v151 = vmax.f32 %v33, %v97
    %v152 = vmax.f32 %v35, %v99
    %v153 = vmax.f32 %v37, %v101
    %v154 = vmax.f32 %v39, %v103
    %v155 = vmax.f32 %v41, %v105
    %v156 = vmax.f32 %v43, %v107
    %v157 = vmax.f32 %v45, %v109
    %v158 = vmax.f32 %v47, %v111
    %v159 = vmax.f32 %v49, %v113
    %v160 = vmax.f32 %v51, %v115
    %v161 = vmax.f32 %v53, %v117
    %v162 = vmax.f32 %v55, %v119
    %v163 = vmax.f32 %v57, %v121
    %v164 = vmax.f32 %v59, %v123
    %v165 = vmax.f32 %v61, %v125
    %v166 = vmax.f32 %v63, %v127
    %v167 = vmax.f32 %v65, %v129
    %v168 = vmax.f32 %v67, %v131
    %v169 = vmax.f32 %v69, %v133
    %v170 = vmax.f32 %v71, %v135
    %v171 = vmax.f32 %v73, %v137
    %v172 = vmax.f32 %v75, %v139
    %v173 = vmax.f32 %v77, %v141
    %v174 = vmax.f32 %v142, %v143
    %v175 = vmax.f32 %v144, %v145
    %v176 = vmax.f32 %v146, %v147
    %v177 = vmax.f32 %v148, %v149
    %v178 = vmax.f32 %v150, %v151
    %v179 = vmax.f32 %v152, %v153
    %v180 = vmax.f32 %v154, %v155
    %v181 = vmax.f32 %v156, %v157
    %v182 = vmax.f32 %v158, %v159
    %v183 = vmax.f32 %v160, %v161
    %v184 = vmax.f32 %v162, %v163
    %v185 = vmax.f32 %v164, %v165
    %v186 = vmax.f32 %v166, %v167
    %v187 = vmax.f32 %v168, %v169
    %v188 = vmax.f32 %v170, %v171
    %v189 = vmax.f32 %v172, %v173
    %vm190 = vcmask 31744
    %191 = vst.msk [vmem:[#allocation2] sm:$0xff] %vm190, 0.0
    %vm192 = vcmask 25600
    %193 = vst.msk [vmem:[#allocation2 + $0x8] sm:$0x3] %vm192, 0.0
    %194 = vst.msk [vmem:[#allocation2 + $0xa0] sm:$0xff] %vm190, 0.0
    %195 = vst.msk [vmem:[#allocation2 + $0xa8] sm:$0x3] %vm192, 0.0
    %s196 = scalar_lea.vmem [#allocation2], 144
    %197 = vst.msk [vmem:[%s196] sm:$0xff] %vm190, 0.0
    %198 = vst.msk [vmem:[%s196 + $0x8] sm:$0x3] %vm192, 0.0
    %199 = vst.msk [vmem:[%s196 + $0xa0] sm:$0xff] %vm190, 0.0
    %200 = vst.msk [vmem:[%s196 + $0xa8] sm:$0x3] %vm192, 0.0
    %vm201 = vcmask 24576
    %202 = vst.msk [vmem:[#allocation2] sm:$0x1] %vm201, 0.0
    %203 = vst.msk [vmem:[#allocation2 + $0x10] sm:$0x1] %vm201, 0.0
    %204 = vst.msk [vmem:[#allocation2 + $0x20] sm:$0x1] %vm201, 0.0
    %205 = vst.msk [vmem:[#allocation2 + $0x30] sm:$0x1] %vm201, 0.0
    %206 = vst.msk [vmem:[#allocation2 + $0x40] sm:$0x1] %vm201, 0.0
    %207 = vst.msk [vmem:[#allocation2 + $0x50] sm:$0x1] %vm201, 0.0
    %208 = vst.msk [vmem:[#allocation2 + $0x60] sm:$0x1] %vm201, 0.0
    %209 = vst.msk [vmem:[#allocation2 + $0x70] sm:$0x1] %vm201, 0.0
    %210 = vst.msk [vmem:[#allocation2 + $0x80] sm:$0x1] %vm201, 0.0
    %211 = vst.msk [vmem:[#allocation2 + $0x90] sm:$0x1] %vm201, 0.0
    %212 = vst.msk [vmem:[#allocation2 + $0xa0] sm:$0x1] %vm201, 0.0
    %213 = vst.msk [vmem:[#allocation2 + $0xb0] sm:$0x1] %vm201, 0.0
    %214 = vst.msk [vmem:[#allocation2 + $0xc0] sm:$0x1] %vm201, 0.0
    %215 = vst.msk [vmem:[#allocation2 + $0xd0] sm:$0x1] %vm201, 0.0
    %216 = vst.msk [vmem:[#allocation2 + $0xe0] sm:$0x1] %vm201, 0.0
    %217 = vst.msk [vmem:[#allocation2 + $0xf0] sm:$0x1] %vm201, 0.0
    %218 = vst.msk [vmem:[#allocation2 + $0x100] sm:$0x1] %vm201, 0.0
    %219 = vst.msk [vmem:[#allocation2 + $0x110] sm:$0x1] %vm201, 0.0
    %220 = vst.msk [vmem:[#allocation2 + $0x120] sm:$0x1] %vm201, 0.0
    %221 = vst.msk [vmem:[#allocation2 + $0x130] sm:$0x1] %vm201, 0.0
    %222 = vst.msk [vmem:[#allocation2 + $0x9] sm:$0x1] %vm201, 0.0
    %223 = vst.msk [vmem:[#allocation2 + $0x19] sm:$0x1] %vm201, 0.0
    %224 = vst.msk [vmem:[#allocation2 + $0x29] sm:$0x1] %vm201, 0.0
    %225 = vst.msk [vmem:[#allocation2 + $0x39] sm:$0x1] %vm201, 0.0
    %226 = vst.msk [vmem:[#allocation2 + $0x49] sm:$0x1] %vm201, 0.0
    %227 = vst.msk [vmem:[#allocation2 + $0x59] sm:$0x1] %vm201, 0.0
    %228 = vst.msk [vmem:[#allocation2 + $0x69] sm:$0x1] %vm201, 0.0
    %229 = vst.msk [vmem:[#allocation2 + $0x79] sm:$0x1] %vm201, 0.0
    %230 = vst.msk [vmem:[#allocation2 + $0x89] sm:$0x1] %vm201, 0.0
    %231 = vst.msk [vmem:[#allocation2 + $0x99] sm:$0x1] %vm201, 0.0
    %232 = vst.msk [vmem:[#allocation2 + $0xa9] sm:$0x1] %vm201, 0.0
    %233 = vst.msk [vmem:[#allocation2 + $0xb9] sm:$0x1] %vm201, 0.0
    %234 = vst.msk [vmem:[#allocation2 + $0xc9] sm:$0x1] %vm201, 0.0
    %235 = vst.msk [vmem:[#allocation2 + $0xd9] sm:$0x1] %vm201, 0.0
    %236 = vst.msk [vmem:[#allocation2 + $0xe9] sm:$0x1] %vm201, 0.0
    %237 = vst.msk [vmem:[#allocation2 + $0xf9] sm:$0x1] %vm201, 0.0
    %238 = vst.msk [vmem:[#allocation2 + $0x109] sm:$0x1] %vm201, 0.0
    %239 = vst.msk [vmem:[#allocation2 + $0x119] sm:$0x1] %vm201, 0.0
    %240 = vst.msk [vmem:[#allocation2 + $0x129] sm:$0x1] %vm201, 0.0
    %241 = vst.msk [vmem:[#allocation2 + $0x139] sm:$0x1] %vm201, 0.0
    %s242 = scalar_lea.vmem [#allocation2], 16
    %243 = vst.msk [vmem:[%s242 + $0x1] sm:$0xff] %vm190, %v174
    %244 = vst.msk [vmem:[%s242 + $0x11] sm:$0xff] %vm190, %v175
    %245 = vst.msk [vmem:[%s242 + $0x21] sm:$0xff] %vm190, %v176
    %246 = vst.msk [vmem:[%s242 + $0x31] sm:$0xff] %vm190, %v177
    %247 = vst.msk [vmem:[%s242 + $0x41] sm:$0xff] %vm190, %v178
    %248 = vst.msk [vmem:[%s242 + $0x51] sm:$0xff] %vm190, %v179
    %249 = vst.msk [vmem:[%s242 + $0x61] sm:$0xff] %vm190, %v180
    %250 = vst.msk [vmem:[%s242 + $0x71] sm:$0xff] %vm190, %v181
    %251 = vst.msk [vmem:[%s242 + $0xa1] sm:$0xff] %vm190, %v182
    %252 = vst.msk [vmem:[%s242 + $0xb1] sm:$0xff] %vm190, %v183
    %253 = vst.msk [vmem:[%s242 + $0xc1] sm:$0xff] %vm190, %v184
    %254 = vst.msk [vmem:[%s242 + $0xd1] sm:$0xff] %vm190, %v185
    %255 = vst.msk [vmem:[%s242 + $0xe1] sm:$0xff] %vm190, %v186
    %256 = vst.msk [vmem:[%s242 + $0xf1] sm:$0xff] %vm190, %v187
    %257 = vst.msk [vmem:[%s242 + $0x101] sm:$0xff] %vm190, %v188
    %258 = vst.msk [vmem:[%s242 + $0x111] sm:$0xff] %vm190, %v189
    %v259 = vld [vmem:[#allocation2] sm:$0xff]
    %v260 = vld [vmem:[#allocation2 + $0x10] sm:$0xff]
    %v261 = vld [vmem:[#allocation2 + $0x20] sm:$0xff]
    %v262 = vld [vmem:[#allocation2 + $0x30] sm:$0xff]
    %v263 = vld [vmem:[#allocation2 + $0x40] sm:$0xff]
    %v264 = vld [vmem:[#allocation2 + $0x50] sm:$0xff]
    %v265 = vld [vmem:[#allocation2 + $0x60] sm:$0xff]
    %v266 = vld [vmem:[#allocation2 + $0x70] sm:$0xff]
    %v267 = vld [vmem:[#allocation2 + $0xa0] sm:$0xff]
    %v268 = vld [vmem:[#allocation2 + $0xb0] sm:$0xff]
    %v269 = vld [vmem:[#allocation2 + $0xc0] sm:$0xff]
    %v270 = vld [vmem:[#allocation2 + $0xd0] sm:$0xff]
    %v271 = vld [vmem:[#allocation2 + $0xe0] sm:$0xff]
    %v272 = vld [vmem:[#allocation2 + $0xf0] sm:$0xff]
    %v273 = vld [vmem:[#allocation2 + $0x100] sm:$0xff]
    %v274 = vld [vmem:[#allocation2 + $0x110] sm:$0xff]
    %275 = vst.msk [vmem:[#allocation4] sm:$0xff] %vm190, %v259
    %276 = vst.msk [vmem:[#allocation4 + $0x8] sm:$0xff] %vm190, %v260
    %277 = vst.msk [vmem:[#allocation4 + $0x10] sm:$0xff] %vm190, %v261
    %278 = vst.msk [vmem:[#allocation4 + $0x18] sm:$0xff] %vm190, %v262
    %279 = vst.msk [vmem:[#allocation4 + $0x20] sm:$0xff] %vm190, %v263
    %280 = vst.msk [vmem:[#allocation4 + $0x28] sm:$0xff] %vm190, %v264
    %281 = vst.msk [vmem:[#allocation4 + $0x30] sm:$0xff] %vm190, %v265
    %282 = vst.msk [vmem:[#allocation4 + $0x38] sm:$0xff] %vm190, %v266
    %283 = vst.msk [vmem:[#allocation4 + $0x40] sm:$0xff] %vm190, %v267
    %284 = vst.msk [vmem:[#allocation4 + $0x48] sm:$0xff] %vm190, %v268
    %285 = vst.msk [vmem:[#allocation4 + $0x50] sm:$0xff] %vm190, %v269
    %286 = vst.msk [vmem:[#allocation4 + $0x58] sm:$0xff] %vm190, %v270
    %287 = vst.msk [vmem:[#allocation4 + $0x60] sm:$0xff] %vm190, %v271
    %288 = vst.msk [vmem:[#allocation4 + $0x68] sm:$0xff] %vm190, %v272
    %289 = vst.msk [vmem:[#allocation4 + $0x70] sm:$0xff] %vm190, %v273
    %290 = vst.msk [vmem:[#allocation4 + $0x78] sm:$0xff] %vm190, %v274
    %v291 = vld [vmem:[#allocation2 + $0x1] sm:$0xff]
    %v292 = vld [vmem:[#allocation2 + $0x11] sm:$0xff]
    %v293 = vld [vmem:[#allocation2 + $0x21] sm:$0xff]
    %v294 = vld [vmem:[#allocation2 + $0x31] sm:$0xff]
    %v295 = vld [vmem:[#allocation2 + $0x41] sm:$0xff]
    %v296 = vld [vmem:[#allocation2 + $0x51] sm:$0xff]
    %v297 = vld [vmem:[#allocation2 + $0x61] sm:$0xff]
    %v298 = vld [vmem:[#allocation2 + $0x71] sm:$0xff]
    %v299 = vld [vmem:[#allocation2 + $0xa1] sm:$0xff]
    %v300 = vld [vmem:[#allocation2 + $0xb1] sm:$0xff]
    %v301 = vld [vmem:[#allocation2 + $0xc1] sm:$0xff]
    %v302 = vld [vmem:[#allocation2 + $0xd1] sm:$0xff]
    %v303 = vld [vmem:[#allocation2 + $0xe1] sm:$0xff]
    %v304 = vld [vmem:[#allocation2 + $0xf1] sm:$0xff]
    %v305 = vld [vmem:[#allocation2 + $0x101] sm:$0xff]
    %v306 = vld [vmem:[#allocation2 + $0x111] sm:$0xff]
    %323 = vrot.lane.b32.xlu0 %v291, 4
    %v324 = vpop.permute.xlu0 %323
    %325 = vrot.lane.b32.xlu0 %v292, 4
    %v326 = vpop.permute.xlu0 %325
    %327 = vrot.lane.b32.xlu0 %v293, 4
    %v328 = vpop.permute.xlu0 %327
    %329 = vrot.lane.b32.xlu0 %v294, 4
    %v330 = vpop.permute.xlu0 %329
    %331 = vrot.lane.b32.xlu0 %v295, 4
    %v332 = vpop.permute.xlu0 %331
    %333 = vrot.lane.b32.xlu0 %v296, 4
    %v334 = vpop.permute.xlu0 %333
    %335 = vrot.lane.b32.xlu0 %v297, 4
    %v336 = vpop.permute.xlu0 %335
    %337 = vrot.lane.b32.xlu0 %v298, 4
    %v338 = vpop.permute.xlu0 %337
    %339 = vrot.lane.b32.xlu0 %v299, 4
    %v340 = vpop.permute.xlu0 %339
    %341 = vrot.lane.b32.xlu0 %v300, 4
    %v342 = vpop.permute.xlu0 %341
    %343 = vrot.lane.b32.xlu0 %v301, 4
    %v344 = vpop.permute.xlu0 %343
    %345 = vrot.lane.b32.xlu0 %v302, 4
    %v346 = vpop.permute.xlu0 %345
    %347 = vrot.lane.b32.xlu0 %v303, 4
    %v348 = vpop.permute.xlu0 %347
    %349 = vrot.lane.b32.xlu0 %v304, 4
    %v350 = vpop.permute.xlu0 %349
    %351 = vrot.lane.b32.xlu0 %v305, 4
    %v352 = vpop.permute.xlu0 %351
    %353 = vrot.lane.b32.xlu0 %v306, 4
    %v354 = vpop.permute.xlu0 %353
    %vm371 = vcmask 64544
    %372 = vst.msk [vmem:[#allocation4] sm:$0xff] %vm371, %v324
    %373 = vst.msk [vmem:[#allocation4 + $0x8] sm:$0xff] %vm371, %v326
    %374 = vst.msk [vmem:[#allocation4 + $0x10] sm:$0xff] %vm371, %v328
    %375 = vst.msk [vmem:[#allocation4 + $0x18] sm:$0xff] %vm371, %v330
    %376 = vst.msk [vmem:[#allocation4 + $0x20] sm:$0xff] %vm371, %v332
    %377 = vst.msk [vmem:[#allocation4 + $0x28] sm:$0xff] %vm371, %v334
    %378 = vst.msk [vmem:[#allocation4 + $0x30] sm:$0xff] %vm371, %v336
    %379 = vst.msk [vmem:[#allocation4 + $0x38] sm:$0xff] %vm371, %v338
    %380 = vst.msk [vmem:[#allocation4 + $0x40] sm:$0xff] %vm371, %v340
    %381 = vst.msk [vmem:[#allocation4 + $0x48] sm:$0xff] %vm371, %v342
    %382 = vst.msk [vmem:[#allocation4 + $0x50] sm:$0xff] %vm371, %v344
    %383 = vst.msk [vmem:[#allocation4 + $0x58] sm:$0xff] %vm371, %v346
    %384 = vst.msk [vmem:[#allocation4 + $0x60] sm:$0xff] %vm371, %v348
    %385 = vst.msk [vmem:[#allocation4 + $0x68] sm:$0xff] %vm371, %v350
    %386 = vst.msk [vmem:[#allocation4 + $0x70] sm:$0xff] %vm371, %v352
    %387 = vst.msk [vmem:[#allocation4 + $0x78] sm:$0xff] %vm371, %v354
    %v388 = vld [vmem:[#allocation2 + $0x2] sm:$0xff]
    %v389 = vld [vmem:[#allocation2 + $0x12] sm:$0xff]
    %v390 = vld [vmem:[#allocation2 + $0x22] sm:$0xff]
    %v391 = vld [vmem:[#allocation2 + $0x32] sm:$0xff]
    %v392 = vld [vmem:[#allocation2 + $0x42] sm:$0xff]
    %v393 = vld [vmem:[#allocation2 + $0x52] sm:$0xff]
    %v394 = vld [vmem:[#allocation2 + $0x62] sm:$0xff]
    %v395 = vld [vmem:[#allocation2 + $0x72] sm:$0xff]
    %v396 = vld [vmem:[#allocation2 + $0xa2] sm:$0xff]
    %v397 = vld [vmem:[#allocation2 + $0xb2] sm:$0xff]
    %v398 = vld [vmem:[#allocation2 + $0xc2] sm:$0xff]
    %v399 = vld [vmem:[#allocation2 + $0xd2] sm:$0xff]
    %v400 = vld [vmem:[#allocation2 + $0xe2] sm:$0xff]
    %v401 = vld [vmem:[#allocation2 + $0xf2] sm:$0xff]
    %v402 = vld [vmem:[#allocation2 + $0x102] sm:$0xff]
    %v403 = vld [vmem:[#allocation2 + $0x112] sm:$0xff]
    %420 = vrot.lane.b32.xlu0 %v388, 8
    %v421 = vpop.permute.xlu0 %420
    %422 = vrot.lane.b32.xlu0 %v389, 8
    %v423 = vpop.permute.xlu0 %422
    %424 = vrot.lane.b32.xlu0 %v390, 8
    %v425 = vpop.permute.xlu0 %424
    %426 = vrot.lane.b32.xlu0 %v391, 8
    %v427 = vpop.permute.xlu0 %426
    %428 = vrot.lane.b32.xlu0 %v392, 8
    %v429 = vpop.permute.xlu0 %428
    %430 = vrot.lane.b32.xlu0 %v393, 8
    %v431 = vpop.permute.xlu0 %430
    %432 = vrot.lane.b32.xlu0 %v394, 8
    %v433 = vpop.permute.xlu0 %432
    %434 = vrot.lane.b32.xlu0 %v395, 8
    %v435 = vpop.permute.xlu0 %434
    %436 = vrot.lane.b32.xlu0 %v396, 8
    %v437 = vpop.permute.xlu0 %436
    %438 = vrot.lane.b32.xlu0 %v397, 8
    %v439 = vpop.permute.xlu0 %438
    %440 = vrot.lane.b32.xlu0 %v398, 8
    %v441 = vpop.permute.xlu0 %440
    %442 = vrot.lane.b32.xlu0 %v399, 8
    %v443 = vpop.permute.xlu0 %442
    %444 = vrot.lane.b32.xlu0 %v400, 8
    %v445 = vpop.permute.xlu0 %444
    %446 = vrot.lane.b32.xlu0 %v401, 8
    %v447 = vpop.permute.xlu0 %446
    %448 = vrot.lane.b32.xlu0 %v402, 8
    %v449 = vpop.permute.xlu0 %448
    %450 = vrot.lane.b32.xlu0 %v403, 8
    %v451 = vpop.permute.xlu0 %450
    %vm468 = vcmask 97344
    %469 = vst.msk [vmem:[#allocation4] sm:$0xff] %vm468, %v421
    %470 = vst.msk [vmem:[#allocation4 + $0x8] sm:$0xff] %vm468, %v423
    %471 = vst.msk [vmem:[#allocation4 + $0x10] sm:$0xff] %vm468, %v425
    %472 = vst.msk [vmem:[#allocation4 + $0x18] sm:$0xff] %vm468, %v427
    %473 = vst.msk [vmem:[#allocation4 + $0x20] sm:$0xff] %vm468, %v429
    %474 = vst.msk [vmem:[#allocation4 + $0x28] sm:$0xff] %vm468, %v431
    %475 = vst.msk [vmem:[#allocation4 + $0x30] sm:$0xff] %vm468, %v433
    %476 = vst.msk [vmem:[#allocation4 + $0x38] sm:$0xff] %vm468, %v435
    %477 = vst.msk [vmem:[#allocation4 + $0x40] sm:$0xff] %vm468, %v437
    %478 = vst.msk [vmem:[#allocation4 + $0x48] sm:$0xff] %vm468, %v439
    %479 = vst.msk [vmem:[#allocation4 + $0x50] sm:$0xff] %vm468, %v441
    %480 = vst.msk [vmem:[#allocation4 + $0x58] sm:$0xff] %vm468, %v443
    %481 = vst.msk [vmem:[#allocation4 + $0x60] sm:$0xff] %vm468, %v445
    %482 = vst.msk [vmem:[#allocation4 + $0x68] sm:$0xff] %vm468, %v447
    %483 = vst.msk [vmem:[#allocation4 + $0x70] sm:$0xff] %vm468, %v449
    %484 = vst.msk [vmem:[#allocation4 + $0x78] sm:$0xff] %vm468, %v451
    %v485 = vld [vmem:[%s242] sm:$0xff]
    %v486 = vld [vmem:[%s242 + $0x10] sm:$0xff]
    %v487 = vld [vmem:[%s242 + $0x20] sm:$0xff]
    %v488 = vld [vmem:[%s242 + $0x30] sm:$0xff]
    %v489 = vld [vmem:[%s242 + $0x40] sm:$0xff]
    %v490 = vld [vmem:[%s242 + $0x50] sm:$0xff]
    %v491 = vld [vmem:[%s242 + $0x60] sm:$0xff]
    %v492 = vld [vmem:[%s242 + $0x70] sm:$0xff]
    %v493 = vld [vmem:[%s242 + $0xa0] sm:$0xff]
    %v494 = vld [vmem:[%s242 + $0xb0] sm:$0xff]
    %v495 = vld [vmem:[%s242 + $0xc0] sm:$0xff]
    %v496 = vld [vmem:[%s242 + $0xd0] sm:$0xff]
    %v497 = vld [vmem:[%s242 + $0xe0] sm:$0xff]
    %v498 = vld [vmem:[%s242 + $0xf0] sm:$0xff]
    %v499 = vld [vmem:[%s242 + $0x100] sm:$0xff]
    %v500 = vld [vmem:[%s242 + $0x110] sm:$0xff]
    %517 = vrot.lane.b32.xlu0 %v485, 12
    %v518 = vpop.permute.xlu0 %517
    %519 = vrot.lane.b32.xlu0 %v486, 12
    %v520 = vpop.permute.xlu0 %519
    %521 = vrot.lane.b32.xlu0 %v487, 12
    %v522 = vpop.permute.xlu0 %521
    %523 = vrot.lane.b32.xlu0 %v488, 12
    %v524 = vpop.permute.xlu0 %523
    %525 = vrot.lane.b32.xlu0 %v489, 12
    %v526 = vpop.permute.xlu0 %525
    %527 = vrot.lane.b32.xlu0 %v490, 12
    %v528 = vpop.permute.xlu0 %527
    %529 = vrot.lane.b32.xlu0 %v491, 12
    %v530 = vpop.permute.xlu0 %529
    %531 = vrot.lane.b32.xlu0 %v492, 12
    %v532 = vpop.permute.xlu0 %531
    %533 = vrot.lane.b32.xlu0 %v493, 12
    %v534 = vpop.permute.xlu0 %533
    %535 = vrot.lane.b32.xlu0 %v494, 12
    %v536 = vpop.permute.xlu0 %535
    %537 = vrot.lane.b32.xlu0 %v495, 12
    %v538 = vpop.permute.xlu0 %537
    %539 = vrot.lane.b32.xlu0 %v496, 12
    %v540 = vpop.permute.xlu0 %539
    %541 = vrot.lane.b32.xlu0 %v497, 12
    %v542 = vpop.permute.xlu0 %541
    %543 = vrot.lane.b32.xlu0 %v498, 12
    %v544 = vpop.permute.xlu0 %543
    %545 = vrot.lane.b32.xlu0 %v499, 12
    %v546 = vpop.permute.xlu0 %545
    %547 = vrot.lane.b32.xlu0 %v500, 12
    %v548 = vpop.permute.xlu0 %547
    %vm565 = vcmask 130144
    %566 = vst.msk [vmem:[#allocation4] sm:$0xff] %vm565, %v518
    %567 = vst.msk [vmem:[#allocation4 + $0x8] sm:$0xff] %vm565, %v520
    %568 = vst.msk [vmem:[#allocation4 + $0x10] sm:$0xff] %vm565, %v522
    %569 = vst.msk [vmem:[#allocation4 + $0x18] sm:$0xff] %vm565, %v524
    %570 = vst.msk [vmem:[#allocation4 + $0x20] sm:$0xff] %vm565, %v526
    %571 = vst.msk [vmem:[#allocation4 + $0x28] sm:$0xff] %vm565, %v528
    %572 = vst.msk [vmem:[#allocation4 + $0x30] sm:$0xff] %vm565, %v530
    %573 = vst.msk [vmem:[#allocation4 + $0x38] sm:$0xff] %vm565, %v532
    %574 = vst.msk [vmem:[#allocation4 + $0x40] sm:$0xff] %vm565, %v534
    %575 = vst.msk [vmem:[#allocation4 + $0x48] sm:$0xff] %vm565, %v536
    %576 = vst.msk [vmem:[#allocation4 + $0x50] sm:$0xff] %vm565, %v538
    %577 = vst.msk [vmem:[#allocation4 + $0x58] sm:$0xff] %vm565, %v540
    %578 = vst.msk [vmem:[#allocation4 + $0x60] sm:$0xff] %vm565, %v542
    %579 = vst.msk [vmem:[#allocation4 + $0x68] sm:$0xff] %vm565, %v544
    %580 = vst.msk [vmem:[#allocation4 + $0x70] sm:$0xff] %vm565, %v546
    %581 = vst.msk [vmem:[#allocation4 + $0x78] sm:$0xff] %vm565, %v548
    %v582 = vld [vmem:[%s242 + $0x1] sm:$0xff]
    %v583 = vld [vmem:[%s242 + $0x11] sm:$0xff]
    %v584 = vld [vmem:[%s242 + $0x21] sm:$0xff]
    %v585 = vld [vmem:[%s242 + $0x31] sm:$0xff]
    %v586 = vld [vmem:[%s242 + $0x41] sm:$0xff]
    %v587 = vld [vmem:[%s242 + $0x51] sm:$0xff]
    %v588 = vld [vmem:[%s242 + $0x61] sm:$0xff]
    %v589 = vld [vmem:[%s242 + $0x71] sm:$0xff]
    %v590 = vld [vmem:[%s242 + $0xa1] sm:$0xff]
    %v591 = vld [vmem:[%s242 + $0xb1] sm:$0xff]
    %v592 = vld [vmem:[%s242 + $0xc1] sm:$0xff]
    %v593 = vld [vmem:[%s242 + $0xd1] sm:$0xff]
    %v594 = vld [vmem:[%s242 + $0xe1] sm:$0xff]
    %v595 = vld [vmem:[%s242 + $0xf1] sm:$0xff]
    %v596 = vld [vmem:[%s242 + $0x101] sm:$0xff]
    %v597 = vld [vmem:[%s242 + $0x111] sm:$0xff]
    %614 = vrot.lane.b32.xlu0 %v582, 16
    %v615 = vpop.permute.xlu0 %614
    %616 = vrot.lane.b32.xlu0 %v583, 16
    %v617 = vpop.permute.xlu0 %616
    %618 = vrot.lane.b32.xlu0 %v584, 16
    %v619 = vpop.permute.xlu0 %618
    %620 = vrot.lane.b32.xlu0 %v585, 16
    %v621 = vpop.permute.xlu0 %620
    %622 = vrot.lane.b32.xlu0 %v586, 16
    %v623 = vpop.permute.xlu0 %622
    %624 = vrot.lane.b32.xlu0 %v587, 16
    %v625 = vpop.permute.xlu0 %624
    %626 = vrot.lane.b32.xlu0 %v588, 16
    %v627 = vpop.permute.xlu0 %626
    %628 = vrot.lane.b32.xlu0 %v589, 16
    %v629 = vpop.permute.xlu0 %628
    %630 = vrot.lane.b32.xlu0 %v590, 16
    %v631 = vpop.permute.xlu0 %630
    %632 = vrot.lane.b32.xlu0 %v591, 16
    %v633 = vpop.permute.xlu0 %632
    %634 = vrot.lane.b32.xlu0 %v592, 16
    %v635 = vpop.permute.xlu0 %634
    %636 = vrot.lane.b32.xlu0 %v593, 16
    %v637 = vpop.permute.xlu0 %636
    %638 = vrot.lane.b32.xlu0 %v594, 16
    %v639 = vpop.permute.xlu0 %638
    %640 = vrot.lane.b32.xlu0 %v595, 16
    %v641 = vpop.permute.xlu0 %640
    %642 = vrot.lane.b32.xlu0 %v596, 16
    %v643 = vpop.permute.xlu0 %642
    %644 = vrot.lane.b32.xlu0 %v597, 16
    %v645 = vpop.permute.xlu0 %644
    %vm662 = vcmask 162944
    %663 = vst.msk [vmem:[#allocation4] sm:$0xff] %vm662, %v615
    %664 = vst.msk [vmem:[#allocation4 + $0x8] sm:$0xff] %vm662, %v617
    %665 = vst.msk [vmem:[#allocation4 + $0x10] sm:$0xff] %vm662, %v619
    %666 = vst.msk [vmem:[#allocation4 + $0x18] sm:$0xff] %vm662, %v621
    %667 = vst.msk [vmem:[#allocation4 + $0x20] sm:$0xff] %vm662, %v623
    %668 = vst.msk [vmem:[#allocation4 + $0x28] sm:$0xff] %vm662, %v625
    %669 = vst.msk [vmem:[#allocation4 + $0x30] sm:$0xff] %vm662, %v627
    %670 = vst.msk [vmem:[#allocation4 + $0x38] sm:$0xff] %vm662, %v629
    %671 = vst.msk [vmem:[#allocation4 + $0x40] sm:$0xff] %vm662, %v631
    %672 = vst.msk [vmem:[#allocation4 + $0x48] sm:$0xff] %vm662, %v633
    %673 = vst.msk [vmem:[#allocation4 + $0x50] sm:$0xff] %vm662, %v635
    %674 = vst.msk [vmem:[#allocation4 + $0x58] sm:$0xff] %vm662, %v637
    %675 = vst.msk [vmem:[#allocation4 + $0x60] sm:$0xff] %vm662, %v639
    %676 = vst.msk [vmem:[#allocation4 + $0x68] sm:$0xff] %vm662, %v641
    %677 = vst.msk [vmem:[#allocation4 + $0x70] sm:$0xff] %vm662, %v643
    %678 = vst.msk [vmem:[#allocation4 + $0x78] sm:$0xff] %vm662, %v645
    %v679 = vld [vmem:[%s242 + $0x2] sm:$0xff]
    %v680 = vld [vmem:[%s242 + $0x12] sm:$0xff]
    %v681 = vld [vmem:[%s242 + $0x22] sm:$0xff]
    %v682 = vld [vmem:[%s242 + $0x32] sm:$0xff]
    %v683 = vld [vmem:[%s242 + $0x42] sm:$0xff]
    %v684 = vld [vmem:[%s242 + $0x52] sm:$0xff]
    %v685 = vld [vmem:[%s242 + $0x62] sm:$0xff]
    %v686 = vld [vmem:[%s242 + $0x72] sm:$0xff]
    %v687 = vld [vmem:[%s242 + $0xa2] sm:$0xff]
    %v688 = vld [vmem:[%s242 + $0xb2] sm:$0xff]
    %v689 = vld [vmem:[%s242 + $0xc2] sm:$0xff]
    %v690 = vld [vmem:[%s242 + $0xd2] sm:$0xff]
    %v691 = vld [vmem:[%s242 + $0xe2] sm:$0xff]
    %v692 = vld [vmem:[%s242 + $0xf2] sm:$0xff]
    %v693 = vld [vmem:[%s242 + $0x102] sm:$0xff]
    %v694 = vld [vmem:[%s242 + $0x112] sm:$0xff]
    %711 = vrot.lane.b32.xlu0 %v679, 20
    %v712 = vpop.permute.xlu0 %711
    %713 = vrot.lane.b32.xlu0 %v680, 20
    %v714 = vpop.permute.xlu0 %713
    %715 = vrot.lane.b32.xlu0 %v681, 20
    %v716 = vpop.permute.xlu0 %715
    %717 = vrot.lane.b32.xlu0 %v682, 20
    %v718 = vpop.permute.xlu0 %717
    %719 = vrot.lane.b32.xlu0 %v683, 20
    %v720 = vpop.permute.xlu0 %719
    %721 = vrot.lane.b32.xlu0 %v684, 20
    %v722 = vpop.permute.xlu0 %721
    %723 = vrot.lane.b32.xlu0 %v685, 20
    %v724 = vpop.permute.xlu0 %723
    %725 = vrot.lane.b32.xlu0 %v686, 20
    %v726 = vpop.permute.xlu0 %725
    %727 = vrot.lane.b32.xlu0 %v687, 20
    %v728 = vpop.permute.xlu0 %727
    %729 = vrot.lane.b32.xlu0 %v688, 20
    %v730 = vpop.permute.xlu0 %729
    %731 = vrot.lane.b32.xlu0 %v689, 20
    %v732 = vpop.permute.xlu0 %731
    %733 = vrot.lane.b32.xlu0 %v690, 20
    %v734 = vpop.permute.xlu0 %733
    %735 = vrot.lane.b32.xlu0 %v691, 20
    %v736 = vpop.permute.xlu0 %735
    %737 = vrot.lane.b32.xlu0 %v692, 20
    %v738 = vpop.permute.xlu0 %737
    %739 = vrot.lane.b32.xlu0 %v693, 20
    %v740 = vpop.permute.xlu0 %739
    %741 = vrot.lane.b32.xlu0 %v694, 20
    %v742 = vpop.permute.xlu0 %741
    %vm759 = vcmask 195744
    %760 = vst.msk [vmem:[#allocation4] sm:$0xff] %vm759, %v712
    %761 = vst.msk [vmem:[#allocation4 + $0x8] sm:$0xff] %vm759, %v714
    %762 = vst.msk [vmem:[#allocation4 + $0x10] sm:$0xff] %vm759, %v716
    %763 = vst.msk [vmem:[#allocation4 + $0x18] sm:$0xff] %vm759, %v718
    %764 = vst.msk [vmem:[#allocation4 + $0x20] sm:$0xff] %vm759, %v720
    %765 = vst.msk [vmem:[#allocation4 + $0x28] sm:$0xff] %vm759, %v722
    %766 = vst.msk [vmem:[#allocation4 + $0x30] sm:$0xff] %vm759, %v724
    %767 = vst.msk [vmem:[#allocation4 + $0x38] sm:$0xff] %vm759, %v726
    %768 = vst.msk [vmem:[#allocation4 + $0x40] sm:$0xff] %vm759, %v728
    %769 = vst.msk [vmem:[#allocation4 + $0x48] sm:$0xff] %vm759, %v730
    %770 = vst.msk [vmem:[#allocation4 + $0x50] sm:$0xff] %vm759, %v732
    %771 = vst.msk [vmem:[#allocation4 + $0x58] sm:$0xff] %vm759, %v734
    %772 = vst.msk [vmem:[#allocation4 + $0x60] sm:$0xff] %vm759, %v736
    %773 = vst.msk [vmem:[#allocation4 + $0x68] sm:$0xff] %vm759, %v738
    %774 = vst.msk [vmem:[#allocation4 + $0x70] sm:$0xff] %vm759, %v740
    %775 = vst.msk [vmem:[#allocation4 + $0x78] sm:$0xff] %vm759, %v742
    %s776 = scalar_lea.vmem [#allocation2], 32
    %v777 = vld [vmem:[%s776] sm:$0xff]
    %v778 = vld [vmem:[%s776 + $0x10] sm:$0xff]
    %v779 = vld [vmem:[%s776 + $0x20] sm:$0xff]
    %v780 = vld [vmem:[%s776 + $0x30] sm:$0xff]
    %v781 = vld [vmem:[%s776 + $0x40] sm:$0xff]
    %v782 = vld [vmem:[%s776 + $0x50] sm:$0xff]
    %v783 = vld [vmem:[%s776 + $0x60] sm:$0xff]
    %v784 = vld [vmem:[%s776 + $0x70] sm:$0xff]
    %v785 = vld [vmem:[%s776 + $0xa0] sm:$0xff]
    %v786 = vld [vmem:[%s776 + $0xb0] sm:$0xff]
    %v787 = vld [vmem:[%s776 + $0xc0] sm:$0xff]
    %v788 = vld [vmem:[%s776 + $0xd0] sm:$0xff]
    %v789 = vld [vmem:[%s776 + $0xe0] sm:$0xff]
    %v790 = vld [vmem:[%s776 + $0xf0] sm:$0xff]
    %v791 = vld [vmem:[%s776 + $0x100] sm:$0xff]
    %v792 = vld [vmem:[%s776 + $0x110] sm:$0xff]
    %809 = vrot.lane.b32.xlu0 %v777, 24
    %v810 = vpop.permute.xlu0 %809
    %811 = vrot.lane.b32.xlu0 %v778, 24
    %v812 = vpop.permute.xlu0 %811
    %813 = vrot.lane.b32.xlu0 %v779, 24
    %v814 = vpop.permute.xlu0 %813
    %815 = vrot.lane.b32.xlu0 %v780, 24
    %v816 = vpop.permute.xlu0 %815
    %817 = vrot.lane.b32.xlu0 %v781, 24
    %v818 = vpop.permute.xlu0 %817
    %819 = vrot.lane.b32.xlu0 %v782, 24
    %v820 = vpop.permute.xlu0 %819
    %821 = vrot.lane.b32.xlu0 %v783, 24
    %v822 = vpop.permute.xlu0 %821
    %823 = vrot.lane.b32.xlu0 %v784, 24
    %v824 = vpop.permute.xlu0 %823
    %825 = vrot.lane.b32.xlu0 %v785, 24
    %v826 = vpop.permute.xlu0 %825
    %827 = vrot.lane.b32.xlu0 %v786, 24
    %v828 = vpop.permute.xlu0 %827
    %829 = vrot.lane.b32.xlu0 %v787, 24
    %v830 = vpop.permute.xlu0 %829
    %831 = vrot.lane.b32.xlu0 %v788, 24
    %v832 = vpop.permute.xlu0 %831
    %833 = vrot.lane.b32.xlu0 %v789, 24
    %v834 = vpop.permute.xlu0 %833
    %835 = vrot.lane.b32.xlu0 %v790, 24
    %v836 = vpop.permute.xlu0 %835
    %837 = vrot.lane.b32.xlu0 %v791, 24
    %v838 = vpop.permute.xlu0 %837
    %839 = vrot.lane.b32.xlu0 %v792, 24
    %v840 = vpop.permute.xlu0 %839
    %vm857 = vcmask 228544
    %858 = vst.msk [vmem:[#allocation4] sm:$0xff] %vm857, %v810
    %859 = vst.msk [vmem:[#allocation4 + $0x8] sm:$0xff] %vm857, %v812
    %860 = vst.msk [vmem:[#allocation4 + $0x10] sm:$0xff] %vm857, %v814
    %861 = vst.msk [vmem:[#allocation4 + $0x18] sm:$0xff] %vm857, %v816
    %862 = vst.msk [vmem:[#allocation4 + $0x20] sm:$0xff] %vm857, %v818
    %863 = vst.msk [vmem:[#allocation4 + $0x28] sm:$0xff] %vm857, %v820
    %864 = vst.msk [vmem:[#allocation4 + $0x30] sm:$0xff] %vm857, %v822
    %865 = vst.msk [vmem:[#allocation4 + $0x38] sm:$0xff] %vm857, %v824
    %866 = vst.msk [vmem:[#allocation4 + $0x40] sm:$0xff] %vm857, %v826
    %867 = vst.msk [vmem:[#allocation4 + $0x48] sm:$0xff] %vm857, %v828
    %868 = vst.msk [vmem:[#allocation4 + $0x50] sm:$0xff] %vm857, %v830
    %869 = vst.msk [vmem:[#allocation4 + $0x58] sm:$0xff] %vm857, %v832
    %870 = vst.msk [vmem:[#allocation4 + $0x60] sm:$0xff] %vm857, %v834
    %871 = vst.msk [vmem:[#allocation4 + $0x68] sm:$0xff] %vm857, %v836
    %872 = vst.msk [vmem:[#allocation4 + $0x70] sm:$0xff] %vm857, %v838
    %873 = vst.msk [vmem:[#allocation4 + $0x78] sm:$0xff] %vm857, %v840
    %v874 = vld [vmem:[%s776 + $0x1] sm:$0xff]
    %v875 = vld [vmem:[%s776 + $0x11] sm:$0xff]
    %v876 = vld [vmem:[%s776 + $0x21] sm:$0xff]
    %v877 = vld [vmem:[%s776 + $0x31] sm:$0xff]
    %v878 = vld [vmem:[%s776 + $0x41] sm:$0xff]
    %v879 = vld [vmem:[%s776 + $0x51] sm:$0xff]
    %v880 = vld [vmem:[%s776 + $0x61] sm:$0xff]
    %v881 = vld [vmem:[%s776 + $0x71] sm:$0xff]
    %v882 = vld [vmem:[%s776 + $0xa1] sm:$0xff]
    %v883 = vld [vmem:[%s776 + $0xb1] sm:$0xff]
    %v884 = vld [vmem:[%s776 + $0xc1] sm:$0xff]
    %v885 = vld [vmem:[%s776 + $0xd1] sm:$0xff]
    %v886 = vld [vmem:[%s776 + $0xe1] sm:$0xff]
    %v887 = vld [vmem:[%s776 + $0xf1] sm:$0xff]
    %v888 = vld [vmem:[%s776 + $0x101] sm:$0xff]
    %v889 = vld [vmem:[%s776 + $0x111] sm:$0xff]
    %906 = vrot.lane.b32.xlu0 %v874, 28
    %v907 = vpop.permute.xlu0 %906
    %908 = vrot.lane.b32.xlu0 %v875, 28
    %v909 = vpop.permute.xlu0 %908
    %910 = vrot.lane.b32.xlu0 %v876, 28
    %v911 = vpop.permute.xlu0 %910
    %912 = vrot.lane.b32.xlu0 %v877, 28
    %v913 = vpop.permute.xlu0 %912
    %914 = vrot.lane.b32.xlu0 %v878, 28
    %v915 = vpop.permute.xlu0 %914
    %916 = vrot.lane.b32.xlu0 %v879, 28
    %v917 = vpop.permute.xlu0 %916
    %918 = vrot.lane.b32.xlu0 %v880, 28
    %v919 = vpop.permute.xlu0 %918
    %920 = vrot.lane.b32.xlu0 %v881, 28
    %v921 = vpop.permute.xlu0 %920
    %922 = vrot.lane.b32.xlu0 %v882, 28
    %v923 = vpop.permute.xlu0 %922
    %924 = vrot.lane.b32.xlu0 %v883, 28
    %v925 = vpop.permute.xlu0 %924
    %926 = vrot.lane.b32.xlu0 %v884, 28
    %v927 = vpop.permute.xlu0 %926
    %928 = vrot.lane.b32.xlu0 %v885, 28
    %v929 = vpop.permute.xlu0 %928
    %930 = vrot.lane.b32.xlu0 %v886, 28
    %v931 = vpop.permute.xlu0 %930
    %932 = vrot.lane.b32.xlu0 %v887, 28
    %v933 = vpop.permute.xlu0 %932
    %934 = vrot.lane.b32.xlu0 %v888, 28
    %v935 = vpop.permute.xlu0 %934
    %936 = vrot.lane.b32.xlu0 %v889, 28
    %v937 = vpop.permute.xlu0 %936
    %vm954 = vcmask 261344
    %955 = vst.msk [vmem:[#allocation4] sm:$0xff] %vm954, %v907
    %956 = vst.msk [vmem:[#allocation4 + $0x8] sm:$0xff] %vm954, %v909
    %957 = vst.msk [vmem:[#allocation4 + $0x10] sm:$0xff] %vm954, %v911
    %958 = vst.msk [vmem:[#allocation4 + $0x18] sm:$0xff] %vm954, %v913
    %959 = vst.msk [vmem:[#allocation4 + $0x20] sm:$0xff] %vm954, %v915
    %960 = vst.msk [vmem:[#allocation4 + $0x28] sm:$0xff] %vm954, %v917
    %961 = vst.msk [vmem:[#allocation4 + $0x30] sm:$0xff] %vm954, %v919
    %962 = vst.msk [vmem:[#allocation4 + $0x38] sm:$0xff] %vm954, %v921
    %963 = vst.msk [vmem:[#allocation4 + $0x40] sm:$0xff] %vm954, %v923
    %964 = vst.msk [vmem:[#allocation4 + $0x48] sm:$0xff] %vm954, %v925
    %965 = vst.msk [vmem:[#allocation4 + $0x50] sm:$0xff] %vm954, %v927
    %966 = vst.msk [vmem:[#allocation4 + $0x58] sm:$0xff] %vm954, %v929
    %967 = vst.msk [vmem:[#allocation4 + $0x60] sm:$0xff] %vm954, %v931
    %968 = vst.msk [vmem:[#allocation4 + $0x68] sm:$0xff] %vm954, %v933
    %969 = vst.msk [vmem:[#allocation4 + $0x70] sm:$0xff] %vm954, %v935
    %970 = vst.msk [vmem:[#allocation4 + $0x78] sm:$0xff] %vm954, %v937
    %v971 = vld [vmem:[%s776 + $0x2] sm:$0xff]
    %v972 = vld [vmem:[%s776 + $0x12] sm:$0xff]
    %v973 = vld [vmem:[%s776 + $0x22] sm:$0xff]
    %v974 = vld [vmem:[%s776 + $0x32] sm:$0xff]
    %v975 = vld [vmem:[%s776 + $0x42] sm:$0xff]
    %v976 = vld [vmem:[%s776 + $0x52] sm:$0xff]
    %v977 = vld [vmem:[%s776 + $0x62] sm:$0xff]
    %v978 = vld [vmem:[%s776 + $0x72] sm:$0xff]
    %v979 = vld [vmem:[%s776 + $0xa2] sm:$0xff]
    %v980 = vld [vmem:[%s776 + $0xb2] sm:$0xff]
    %v981 = vld [vmem:[%s776 + $0xc2] sm:$0xff]
    %v982 = vld [vmem:[%s776 + $0xd2] sm:$0xff]
    %v983 = vld [vmem:[%s776 + $0xe2] sm:$0xff]
    %v984 = vld [vmem:[%s776 + $0xf2] sm:$0xff]
    %v985 = vld [vmem:[%s776 + $0x102] sm:$0xff]
    %v986 = vld [vmem:[%s776 + $0x112] sm:$0xff]
    %1003 = vrot.lane.b32.xlu0 %v971, 32
    %v1004 = vpop.permute.xlu0 %1003
    %1005 = vrot.lane.b32.xlu0 %v972, 32
    %v1006 = vpop.permute.xlu0 %1005
    %1007 = vrot.lane.b32.xlu0 %v973, 32
    %v1008 = vpop.permute.xlu0 %1007
    %1009 = vrot.lane.b32.xlu0 %v974, 32
    %v1010 = vpop.permute.xlu0 %1009
    %1011 = vrot.lane.b32.xlu0 %v975, 32
    %v1012 = vpop.permute.xlu0 %1011
    %1013 = vrot.lane.b32.xlu0 %v976, 32
    %v1014 = vpop.permute.xlu0 %1013
    %1015 = vrot.lane.b32.xlu0 %v977, 32
    %v1016 = vpop.permute.xlu0 %1015
    %1017 = vrot.lane.b32.xlu0 %v978, 32
    %v1018 = vpop.permute.xlu0 %1017
    %1019 = vrot.lane.b32.xlu0 %v979, 32
    %v1020 = vpop.permute.xlu0 %1019
    %1021 = vrot.lane.b32.xlu0 %v980, 32
    %v1022 = vpop.permute.xlu0 %1021
    %1023 = vrot.lane.b32.xlu0 %v981, 32
    %v1024 = vpop.permute.xlu0 %1023
    %1025 = vrot.lane.b32.xlu0 %v982, 32
    %v1026 = vpop.permute.xlu0 %1025
    %1027 = vrot.lane.b32.xlu0 %v983, 32
    %v1028 = vpop.permute.xlu0 %1027
    %1029 = vrot.lane.b32.xlu0 %v984, 32
    %v1030 = vpop.permute.xlu0 %1029
    %1031 = vrot.lane.b32.xlu0 %v985, 32
    %v1032 = vpop.permute.xlu0 %1031
    %1033 = vrot.lane.b32.xlu0 %v986, 32
    %v1034 = vpop.permute.xlu0 %1033
    %vm1051 = vcmask 294144
    %1052 = vst.msk [vmem:[#allocation4] sm:$0xff] %vm1051, %v1004
    %1053 = vst.msk [vmem:[#allocation4 + $0x8] sm:$0xff] %vm1051, %v1006
    %1054 = vst.msk [vmem:[#allocation4 + $0x10] sm:$0xff] %vm1051, %v1008
    %1055 = vst.msk [vmem:[#allocation4 + $0x18] sm:$0xff] %vm1051, %v1010
    %1056 = vst.msk [vmem:[#allocation4 + $0x20] sm:$0xff] %vm1051, %v1012
    %1057 = vst.msk [vmem:[#allocation4 + $0x28] sm:$0xff] %vm1051, %v1014
    %1058 = vst.msk [vmem:[#allocation4 + $0x30] sm:$0xff] %vm1051, %v1016
    %1059 = vst.msk [vmem:[#allocation4 + $0x38] sm:$0xff] %vm1051, %v1018
    %1060 = vst.msk [vmem:[#allocation4 + $0x40] sm:$0xff] %vm1051, %v1020
    %1061 = vst.msk [vmem:[#allocation4 + $0x48] sm:$0xff] %vm1051, %v1022
    %1062 = vst.msk [vmem:[#allocation4 + $0x50] sm:$0xff] %vm1051, %v1024
    %1063 = vst.msk [vmem:[#allocation4 + $0x58] sm:$0xff] %vm1051, %v1026
    %1064 = vst.msk [vmem:[#allocation4 + $0x60] sm:$0xff] %vm1051, %v1028
    %1065 = vst.msk [vmem:[#allocation4 + $0x68] sm:$0xff] %vm1051, %v1030
    %1066 = vst.msk [vmem:[#allocation4 + $0x70] sm:$0xff] %vm1051, %v1032
    %1067 = vst.msk [vmem:[#allocation4 + $0x78] sm:$0xff] %vm1051, %v1034
    %v1068 = vld [vmem:[#allocation4] sm:$0xff]
    %v1069 = vld [vmem:[#allocation4 + $0x8] sm:$0xff]
    %v1070 = vld [vmem:[#allocation4 + $0x10] sm:$0xff]
    %v1071 = vld [vmem:[#allocation4 + $0x18] sm:$0xff]
    %v1072 = vld [vmem:[#allocation4 + $0x20] sm:$0xff]
    %v1073 = vld [vmem:[#allocation4 + $0x28] sm:$0xff]
    %v1074 = vld [vmem:[#allocation4 + $0x30] sm:$0xff]
    %v1075 = vld [vmem:[#allocation4 + $0x38] sm:$0xff]
    %v1076 = vld [vmem:[#allocation4 + $0x40] sm:$0xff]
    %v1077 = vld [vmem:[#allocation4 + $0x48] sm:$0xff]
    %v1078 = vld [vmem:[#allocation4 + $0x50] sm:$0xff]
    %v1079 = vld [vmem:[#allocation4 + $0x58] sm:$0xff]
    %v1080 = vld [vmem:[#allocation4 + $0x60] sm:$0xff]
    %v1081 = vld [vmem:[#allocation4 + $0x68] sm:$0xff]
    %v1082 = vld [vmem:[#allocation4 + $0x70] sm:$0xff]
    %v1083 = vld [vmem:[#allocation4 + $0x78] sm:$0xff]
    %v1084 = vld [vmem:[%s1] sm:$0xff]
    %v1085 = vld [vmem:[%s1 + $0x8] sm:$0xff]
    %v1086 = vld [vmem:[%s1 + $0x10] sm:$0xff]
    %v1087 = vld [vmem:[%s1 + $0x18] sm:$0xff]
    %v1088 = vld [vmem:[%s1 + $0x20] sm:$0xf]
    %vm1089 = vcmask 293888
    %v1091 = vsel %vm1089, %v1068, 0
    %v1094 = vsel %vm1089, %v1069, 0
    %v1097 = vsel %vm1089, %v1070, 0
    %v1100 = vsel %vm1089, %v1071, 0
    %v1103 = vsel %vm1089, %v1072, 0
    %v1106 = vsel %vm1089, %v1073, 0
    %v1109 = vsel %vm1089, %v1074, 0
    %v1112 = vsel %vm1089, %v1075, 0
    %v1115 = vsel %vm1089, %v1076, 0
    %v1118 = vsel %vm1089, %v1077, 0
    %v1121 = vsel %vm1089, %v1078, 0
    %v1124 = vsel %vm1089, %v1079, 0
    %v1127 = vsel %vm1089, %v1080, 0
    %v1130 = vsel %vm1089, %v1081, 0
    %v1133 = vsel %vm1089, %v1082, 0
    %v1136 = vsel %vm1089, %v1083, 0
    %vm1138 = vcmask 1043456
    %v1140 = vsel %vm1138, %v1088, 0
    %1142 = vmatprep.subr.mxu0 0.0
    %1143 = vmatpush1.msra.mxu0 %v1084
    %1144 = vmatprep.subr.mxu0 0.0
    %1145 = vmatpush1.msra.mxu0 %v1085
    %1146 = vmatprep.subr.mxu0 0.0
    %1147 = vmatpush1.msra.mxu0 %v1086
    %1148 = vmatprep.subr.mxu0 0.0
    %1149 = vmatpush1.msra.mxu0 %v1087
    %1150 = vmatprep.subr.mxu0 0.0
    %1151 = vmatpush1.msra.mxu0 %v1140
    %1152 = vmatprep.subr.mxu0 0.0
    %1153 = vmatpush1.msra.mxu0 0.0
    %1154 = vmatprep.subr.mxu0 0.0
    %1155 = vmatpush1.msra.mxu0 0.0
    %1156 = vmatprep.subr.mxu0 0.0
    %1157 = vmatpush1.msra.mxu0 0.0
    %1158 = vmatprep.subr.mxu0 0.0
    %1159 = vmatpush1.msra.mxu0 0.0
    %1160 = vmatprep.subr.mxu0 0.0
    %1161 = vmatpush1.msra.mxu0 0.0
    %1162 = vmatprep.subr.mxu0 0.0
    %1163 = vmatpush1.msra.mxu0 0.0
    %1164 = vmatprep.subr.mxu0 0.0
    %1165 = vmatpush1.msra.mxu0 0.0
    %1166 = vmatprep.subr.mxu0 0.0
    %1167 = vmatpush1.msra.mxu0 0.0
    %1168 = vmatprep.subr.mxu0 0.0
    %1169 = vmatpush1.msra.mxu0 0.0
    %1170 = vmatprep.subr.mxu0 0.0
    %1171 = vmatpush1.msra.mxu0 0.0
    %1172 = vmatprep.subr.mxu0 0.0
    %1173 = vmatpush1.msra.mxu0 0.0
    %1174 = vmatprep.subr.mxu0 0.0
    %1175 = vmatpush1.msra.mxu0 0.0
    %1176 = vmatprep.subr.mxu0 0.0
    %1177 = vmatpush1.msra.mxu0 0.0
    %1178 = vmatprep.subr.mxu0 0.0
    %1179 = vmatpush1.msra.mxu0 0.0
    %1180 = vmatprep.subr.mxu0 0.0
    %1181 = vmatpush1.msra.mxu0 0.0
    %1182 = vmatprep.subr.mxu0 0.0
    %1183 = vmatpush1.msra.mxu0 0.0
    %1184 = vmatprep.subr.mxu0 0.0
    %1185 = vmatpush1.msra.mxu0 0.0
    %1186 = vmatprep.subr.mxu0 0.0
    %1187 = vmatpush1.msra.mxu0 0.0
    %1188 = vmatprep.subr.mxu0 0.0
    %1189 = vmatpush1.msra.mxu0 0.0
    %1190 = vmatprep.subr.mxu0 0.0
    %1191 = vmatpush1.msra.mxu0 0.0
    %1192 = vmatprep.subr.mxu0 0.0
    %1193 = vmatpush1.msra.mxu0 0.0
    %1194 = vmatprep.subr.mxu0 0.0
    %1195 = vmatpush1.msra.mxu0 0.0
    %1196 = vmatprep.subr.mxu0 0.0
    %1197 = vmatpush1.msra.mxu0 0.0
    %1198 = vmatprep.subr.mxu0 0.0
    %1199 = vmatpush1.msra.mxu0 0.0
    %1200 = vmatprep.subr.mxu0 0.0
    %1201 = vmatpush1.msra.mxu0 0.0
    %1202 = vmatprep.subr.mxu0 0.0
    %1203 = vmatpush1.msra.mxu0 0.0
    %1204 = vmatprep.subr.mxu0 0.0
    %1205 = vmatpush1.msra.mxu0 0.0
    %1206 = vmatprep.mubr.f32.mxu0 0.0
    %1207 = vmatmul.mubr.f32.gmra.mrb[0].mxu0 %v1091
    %v1208 = vpop.f32.mrb[0].mxu0
    %v1209 = vadd.f32 0.0, %v1208
    %v1210 = vpop.f32.mrb[0].mxu0
    %1211 = vmatprep.mubr.f32.mxu0 0.0
    %1212 = vmatmul.mubr.f32.gmra.mrb[0].mxu0 %v1094
    %v1213 = vpop.f32.mrb[0].mxu0
    %v1214 = vadd.f32 0.0, %v1213
    %v1215 = vpop.f32.mrb[0].mxu0
    %1216 = vmatprep.mubr.f32.mxu0 0.0
    %1217 = vmatmul.mubr.f32.gmra.mrb[0].mxu0 %v1097
    %v1218 = vpop.f32.mrb[0].mxu0
    %v1219 = vadd.f32 0.0, %v1218
    %v1220 = vpop.f32.mrb[0].mxu0
    %1221 = vmatprep.mubr.f32.mxu0 0.0
    %1222 = vmatmul.mubr.f32.gmra.mrb[0].mxu0 %v1100
    %v1223 = vpop.f32.mrb[0].mxu0
    %v1224 = vadd.f32 0.0, %v1223
    %v1225 = vpop.f32.mrb[0].mxu0
    %1226 = vmatprep.mubr.f32.mxu0 0.0
    %1227 = vmatmul.mubr.f32.gmra.mrb[0].mxu0 %v1103
    %v1228 = vpop.f32.mrb[0].mxu0
    %v1229 = vadd.f32 0.0, %v1228
    %v1230 = vpop.f32.mrb[0].mxu0
    %1231 = vmatprep.mubr.f32.mxu0 0.0
    %1232 = vmatmul.mubr.f32.gmra.mrb[0].mxu0 %v1106
    %v1233 = vpop.f32.mrb[0].mxu0
    %v1234 = vadd.f32 0.0, %v1233
    %v1235 = vpop.f32.mrb[0].mxu0
    %1236 = vmatprep.mubr.f32.mxu0 0.0
    %1237 = vmatmul.mubr.f32.gmra.mrb[0].mxu0 %v1109
    %v1238 = vpop.f32.mrb[0].mxu0
    %v1239 = vadd.f32 0.0, %v1238
    %v1240 = vpop.f32.mrb[0].mxu0
    %1241 = vmatprep.mubr.f32.mxu0 0.0
    %1242 = vmatmul.mubr.f32.gmra.mrb[0].mxu0 %v1112
    %v1243 = vpop.f32.mrb[0].mxu0
    %v1244 = vadd.f32 0.0, %v1243
    %v1245 = vpop.f32.mrb[0].mxu0
    %1246 = vmatprep.mubr.f32.mxu0 0.0
    %1247 = vmatmul.mubr.f32.gmra.mrb[0].mxu0 %v1115
    %v1248 = vpop.f32.mrb[0].mxu0
    %v1249 = vadd.f32 0.0, %v1248
    %v1250 = vpop.f32.mrb[0].mxu0
    %1251 = vmatprep.mubr.f32.mxu0 0.0
    %1252 = vmatmul.mubr.f32.gmra.mrb[0].mxu0 %v1118
    %v1253 = vpop.f32.mrb[0].mxu0
    %v1254 = vadd.f32 0.0, %v1253
    %v1255 = vpop.f32.mrb[0].mxu0
    %1256 = vmatprep.mubr.f32.mxu0 0.0
    %1257 = vmatmul.mubr.f32.gmra.mrb[0].mxu0 %v1121
    %v1258 = vpop.f32.mrb[0].mxu0
    %v1259 = vadd.f32 0.0, %v1258
    %v1260 = vpop.f32.mrb[0].mxu0
    %1261 = vmatprep.mubr.f32.mxu0 0.0
    %1262 = vmatmul.mubr.f32.gmra.mrb[0].mxu0 %v1124
    %v1263 = vpop.f32.mrb[0].mxu0
    %v1264 = vadd.f32 0.0, %v1263
    %v1265 = vpop.f32.mrb[0].mxu0
    %1266 = vmatprep.mubr.f32.mxu0 0.0
    %1267 = vmatmul.mubr.f32.gmra.mrb[0].mxu0 %v1127
    %v1268 = vpop.f32.mrb[0].mxu0
    %v1269 = vadd.f32 0.0, %v1268
    %v1270 = vpop.f32.mrb[0].mxu0
    %1271 = vmatprep.mubr.f32.mxu0 0.0
    %1272 = vmatmul.mubr.f32.gmra.mrb[0].mxu0 %v1130
    %v1273 = vpop.f32.mrb[0].mxu0
    %v1274 = vadd.f32 0.0, %v1273
    %v1275 = vpop.f32.mrb[0].mxu0
    %1276 = vmatprep.mubr.f32.mxu0 0.0
    %1277 = vmatmul.mubr.f32.gmra.mrb[0].mxu0 %v1133
    %v1278 = vpop.f32.mrb[0].mxu0
    %v1279 = vadd.f32 0.0, %v1278
    %v1280 = vpop.f32.mrb[0].mxu0
    %1281 = vmatprep.mubr.f32.mxu0 0.0
    %1282 = vmatmul.mubr.f32.gmra.mrb[0].mxu0 %v1136
    %v1283 = vpop.f32.mrb[0].mxu0
    %v1284 = vadd.f32 0.0, %v1283
    %v1285 = vpop.f32.mrb[0].mxu0
    %1286 = vdwg.mxu0
    %vm1287 = vcmask 64512
    %v1288 = vsel %vm1287, %v1209, 0.0
    %v1289 = vsel %vm1287, %v1214, 0.0
    %v1290 = vadd.f32 %v1288, %v1289
    %v1291 = vsel %vm1287, %v1219, 0.0
    %v1292 = vadd.f32 %v1290, %v1291
    %v1293 = vsel %vm1287, %v1224, 0.0
    %v1294 = vadd.f32 %v1292, %v1293
    %v1295 = vsel %vm1287, %v1229, 0.0
    %v1296 = vadd.f32 %v1294, %v1295
    %v1297 = vsel %vm1287, %v1234, 0.0
    %v1298 = vadd.f32 %v1296, %v1297
    %v1299 = vsel %vm1287, %v1239, 0.0
    %v1300 = vadd.f32 %v1298, %v1299
    %v1301 = vsel %vm1287, %v1244, 0.0
    %v1302 = vadd.f32 %v1300, %v1301
    %v1303 = vrot.slane %v1302, 4
    %v1304 = vadd.f32 %v1302, %v1303
    %v1305 = vrot.slane %v1304, 2
    %v1306 = vadd.f32 %v1304, %v1305
    %v1307 = vrot.slane %v1306, 1
    %v1308 = vadd.f32 %v1306, %v1307
    %v1309 = vsel %vm1287, %v1249, 0.0
    %v1310 = vsel %vm1287, %v1254, 0.0
    %v1311 = vadd.f32 %v1309, %v1310
    %v1312 = vsel %vm1287, %v1259, 0.0
    %v1313 = vadd.f32 %v1311, %v1312
    %v1314 = vsel %vm1287, %v1264, 0.0
    %v1315 = vadd.f32 %v1313, %v1314
    %v1316 = vsel %vm1287, %v1269, 0.0
    %v1317 = vadd.f32 %v1315, %v1316
    %v1318 = vsel %vm1287, %v1274, 0.0
    %v1319 = vadd.f32 %v1317, %v1318
    %v1320 = vsel %vm1287, %v1279, 0.0
    %v1321 = vadd.f32 %v1319, %v1320
    %v1322 = vsel %vm1287, %v1284, 0.0
    %v1323 = vadd.f32 %v1321, %v1322
    %v1324 = vrot.slane %v1323, 4
    %v1325 = vadd.f32 %v1323, %v1324
    %v1326 = vrot.slane %v1325, 2
    %v1327 = vadd.f32 %v1325, %v1326
    %v1328 = vrot.slane %v1327, 1
    %v1329 = vadd.f32 %v1327, %v1328
    %v1330 = vmul.f32 %v1308, 0.015625
    %v1331 = vmul.f32 %v1329, 0.015625
    %v1332 = vmul.f32 %v1209, %v1209
    %v1333 = vmul.f32 %v1214, %v1214
    %v1334 = vmul.f32 %v1219, %v1219
    %v1335 = vmul.f32 %v1224, %v1224
    %v1336 = vmul.f32 %v1229, %v1229
    %v1337 = vmul.f32 %v1234, %v1234
    %v1338 = vmul.f32 %v1239, %v1239
    %v1339 = vmul.f32 %v1244, %v1244
    %v1340 = vmul.f32 %v1249, %v1249
    %v1341 = vmul.f32 %v1254, %v1254
    %v1342 = vmul.f32 %v1259, %v1259
    %v1343 = vmul.f32 %v1264, %v1264
    %v1344 = vmul.f32 %v1269, %v1269
    %v1345 = vmul.f32 %v1274, %v1274
    %v1346 = vmul.f32 %v1279, %v1279
    %v1347 = vmul.f32 %v1284, %v1284
    %v1348 = vsel %vm1287, %v1332, 0.0
    %v1349 = vsel %vm1287, %v1333, 0.0
    %v1350 = vadd.f32 %v1348, %v1349
    %v1351 = vsel %vm1287, %v1334, 0.0
    %v1352 = vadd.f32 %v1350, %v1351
    %v1353 = vsel %vm1287, %v1335, 0.0
    %v1354 = vadd.f32 %v1352, %v1353
    %v1355 = vsel %vm1287, %v1336, 0.0
    %v1356 = vadd.f32 %v1354, %v1355
    %v1357 = vsel %vm1287, %v1337, 0.0
    %v1358 = vadd.f32 %v1356, %v1357
    %v1359 = vsel %vm1287, %v1338, 0.0
    %v1360 = vadd.f32 %v1358, %v1359
    %v1361 = vsel %vm1287, %v1339, 0.0
    %v1362 = vadd.f32 %v1360, %v1361
    %v1363 = vrot.slane %v1362, 4
    %v1364 = vadd.f32 %v1362, %v1363
    %v1365 = vrot.slane %v1364, 2
    %v1366 = vadd.f32 %v1364, %v1365
    %v1367 = vrot.slane %v1366, 1
    %v1368 = vadd.f32 %v1366, %v1367
    %v1369 = vsel %vm1287, %v1340, 0.0
    %v1370 = vsel %vm1287, %v1341, 0.0
    %v1371 = vadd.f32 %v1369, %v1370
    %v1372 = vsel %vm1287, %v1342, 0.0
    %v1373 = vadd.f32 %v1371, %v1372
    %v1374 = vsel %vm1287, %v1343, 0.0
    %v1375 = vadd.f32 %v1373, %v1374
    %v1376 = vsel %vm1287, %v1344, 0.0
    %v1377 = vadd.f32 %v1375, %v1376
    %v1378 = vsel %vm1287, %v1345, 0.0
    %v1379 = vadd.f32 %v1377, %v1378
    %v1380 = vsel %vm1287, %v1346, 0.0
    %v1381 = vadd.f32 %v1379, %v1380
    %v1382 = vsel %vm1287, %v1347, 0.0
    %v1383 = vadd.f32 %v1381, %v1382
    %v1384 = vrot.slane %v1383, 4
    %v1385 = vadd.f32 %v1383, %v1384
    %v1386 = vrot.slane %v1385, 2
    %v1387 = vadd.f32 %v1385, %v1386
    %v1388 = vrot.slane %v1387, 1
    %v1389 = vadd.f32 %v1387, %v1388
    %v1390 = vmul.f32 %v1368, 0.015625
    %v1391 = vmul.f32 %v1389, 0.015625
    %v1392 = vmul.f32 %v1330, %v1330
    %v1393 = vmul.f32 %v1331, %v1331
    %v1394 = vsub.f32 %v1390, %v1392
    %v1395 = vsub.f32 %v1391, %v1393
    %v1396 = vmax.f32 %v1394, 0.0
    %v1397 = vmax.f32 %v1395, 0.0
    %v1398 = vsub.f32 %v1209, %v1330
    %v1399 = vsub.f32 %v1214, %v1330
    %v1400 = vsub.f32 %v1219, %v1330
    %v1401 = vsub.f32 %v1224, %v1330
    %v1402 = vsub.f32 %v1229, %v1330
    %v1403 = vsub.f32 %v1234, %v1330
    %v1404 = vsub.f32 %v1239, %v1330
    %v1405 = vsub.f32 %v1244, %v1330
    %v1406 = vsub.f32 %v1249, %v1331
    %v1407 = vsub.f32 %v1254, %v1331
    %v1408 = vsub.f32 %v1259, %v1331
    %v1409 = vsub.f32 %v1264, %v1331
    %v1410 = vsub.f32 %v1269, %v1331
    %v1411 = vsub.f32 %v1274, %v1331
    %v1412 = vsub.f32 %v1279, %v1331
    %v1413 = vsub.f32 %v1284, %v1331
    %v1414 = vadd.f32 %v1396, 1e-05
    %v1415 = vadd.f32 %v1397, 1e-05
    %v1416 = vrsqrt.pop %v1414
    %v1417 = vrsqrt.pop %v1415
    %v1418 = vmul.f32 %v1398, %v1416
    %v1419 = vmul.f32 %v1399, %v1416
    %v1420 = vmul.f32 %v1400, %v1416
    %v1421 = vmul.f32 %v1401, %v1416
    %v1422 = vmul.f32 %v1402, %v1416
    %v1423 = vmul.f32 %v1403, %v1416
    %v1424 = vmul.f32 %v1404, %v1416
    %v1425 = vmul.f32 %v1405, %v1416
    %v1426 = vmul.f32 %v1406, %v1417
    %v1427 = vmul.f32 %v1407, %v1417
    %v1428 = vmul.f32 %v1408, %v1417
    %v1429 = vmul.f32 %v1409, %v1417
    %v1430 = vmul.f32 %v1410, %v1417
    %v1431 = vmul.f32 %v1411, %v1417
    %v1432 = vmul.f32 %v1412, %v1417
    %v1433 = vmul.f32 %v1413, %v1417
    %v1434 = vmax.f32 %v1418, 0.0
    %v1435 = vmax.f32 %v1419, 0.0
    %v1436 = vmax.f32 %v1420, 0.0
    %v1437 = vmax.f32 %v1421, 0.0
    %v1438 = vmax.f32 %v1422, 0.0
    %v1439 = vmax.f32 %v1423, 0.0
    %v1440 = vmax.f32 %v1424, 0.0
    %v1441 = vmax.f32 %v1425, 0.0
    %v1442 = vmax.f32 %v1426, 0.0
    %v1443 = vmax.f32 %v1427, 0.0
    %v1444 = vmax.f32 %v1428, 0.0
    %v1445 = vmax.f32 %v1429, 0.0
    %v1446 = vmax.f32 %v1430, 0.0
    %v1447 = vmax.f32 %v1431, 0.0
    %v1448 = vmax.f32 %v1432, 0.0
    %v1449 = vmax.f32 %v1433, 0.0
    %1450 = vst.msk [vmem:[#allocation3] sm:$0xff] %vm1287, 0.0
    %vm1451 = vcmask 58368
    %1452 = vst.msk [vmem:[#allocation3 + $0x8] sm:$0x3] %vm1451, 0.0
    %1453 = vst.msk [vmem:[#allocation3 + $0xa0] sm:$0xff] %vm1287, 0.0
    %1454 = vst.msk [vmem:[#allocation3 + $0xa8] sm:$0x3] %vm1451, 0.0
    %s1455 = scalar_lea.vmem [#allocation3], 144
    %1456 = vst.msk [vmem:[%s1455] sm:$0xff] %vm1287, 0.0
    %1457 = vst.msk [vmem:[%s1455 + $0x8] sm:$0x3] %vm1451, 0.0
    %1458 = vst.msk [vmem:[%s1455 + $0xa0] sm:$0xff] %vm1287, 0.0
    %1459 = vst.msk [vmem:[%s1455 + $0xa8] sm:$0x3] %vm1451, 0.0
    %vm1460 = vcmask 57344
    %1461 = vst.msk [vmem:[#allocation3] sm:$0x1] %vm1460, 0.0
    %1462 = vst.msk [vmem:[#allocation3 + $0x10] sm:$0x1] %vm1460, 0.0
    %1463 = vst.msk [vmem:[#allocation3 + $0x20] sm:$0x1] %vm1460, 0.0
    %1464 = vst.msk [vmem:[#allocation3 + $0x30] sm:$0x1] %vm1460, 0.0
    %1465 = vst.msk [vmem:[#allocation3 + $0x40] sm:$0x1] %vm1460, 0.0
    %1466 = vst.msk [vmem:[#allocation3 + $0x50] sm:$0x1] %vm1460, 0.0
    %1467 = vst.msk [vmem:[#allocation3 + $0x60] sm:$0x1] %vm1460, 0.0
    %1468 = vst.msk [vmem:[#allocation3 + $0x70] sm:$0x1] %vm1460, 0.0
    %1469 = vst.msk [vmem:[#allocation3 + $0x80] sm:$0x1] %vm1460, 0.0
    %1470 = vst.msk [vmem:[#allocation3 + $0x90] sm:$0x1] %vm1460, 0.0
    %1471 = vst.msk [vmem:[#allocation3 + $0xa0] sm:$0x1] %vm1460, 0.0
    %1472 = vst.msk [vmem:[#allocation3 + $0xb0] sm:$0x1] %vm1460, 0.0
    %1473 = vst.msk [vmem:[#allocation3 + $0xc0] sm:$0x1] %vm1460, 0.0
    %1474 = vst.msk [vmem:[#allocation3 + $0xd0] sm:$0x1] %vm1460, 0.0
    %1475 = vst.msk [vmem:[#allocation3 + $0xe0] sm:$0x1] %vm1460, 0.0
    %1476 = vst.msk [vmem:[#allocation3 + $0xf0] sm:$0x1] %vm1460, 0.0
    %1477 = vst.msk [vmem:[#allocation3 + $0x100] sm:$0x1] %vm1460, 0.0
    %1478 = vst.msk [vmem:[#allocation3 + $0x110] sm:$0x1] %vm1460, 0.0
    %1479 = vst.msk [vmem:[#allocation3 + $0x120] sm:$0x1] %vm1460, 0.0
    %1480 = vst.msk [vmem:[#allocation3 + $0x130] sm:$0x1] %vm1460, 0.0
    %1481 = vst.msk [vmem:[#allocation3 + $0x9] sm:$0x1] %vm1460, 0.0
    %1482 = vst.msk [vmem:[#allocation3 + $0x19] sm:$0x1] %vm1460, 0.0
    %1483 = vst.msk [vmem:[#allocation3 + $0x29] sm:$0x1] %vm1460, 0.0
    %1484 = vst.msk [vmem:[#allocation3 + $0x39] sm:$0x1] %vm1460, 0.0
    %1485 = vst.msk [vmem:[#allocation3 + $0x49] sm:$0x1] %vm1460, 0.0
    %1486 = vst.msk [vmem:[#allocation3 + $0x59] sm:$0x1] %vm1460, 0.0
    %1487 = vst.msk [vmem:[#allocation3 + $0x69] sm:$0x1] %vm1460, 0.0
    %1488 = vst.msk [vmem:[#allocation3 + $0x79] sm:$0x1] %vm1460, 0.0
    %1489 = vst.msk [vmem:[#allocation3 + $0x89] sm:$0x1] %vm1460, 0.0
    %1490 = vst.msk [vmem:[#allocation3 + $0x99] sm:$0x1] %vm1460, 0.0
    %1491 = vst.msk [vmem:[#allocation3 + $0xa9] sm:$0x1] %vm1460, 0.0
    %1492 = vst.msk [vmem:[#allocation3 + $0xb9] sm:$0x1] %vm1460, 0.0
    %1493 = vst.msk [vmem:[#allocation3 + $0xc9] sm:$0x1] %vm1460, 0.0
    %1494 = vst.msk [vmem:[#allocation3 + $0xd9] sm:$0x1] %vm1460, 0.0
    %1495 = vst.msk [vmem:[#allocation3 + $0xe9] sm:$0x1] %vm1460, 0.0
    %1496 = vst.msk [vmem:[#allocation3 + $0xf9] sm:$0x1] %vm1460, 0.0
    %1497 = vst.msk [vmem:[#allocation3 + $0x109] sm:$0x1] %vm1460, 0.0
    %1498 = vst.msk [vmem:[#allocation3 + $0x119] sm:$0x1] %vm1460, 0.0
    %1499 = vst.msk [vmem:[#allocation3 + $0x129] sm:$0x1] %vm1460, 0.0
    %1500 = vst.msk [vmem:[#allocation3 + $0x139] sm:$0x1] %vm1460, 0.0
    %s1501 = scalar_lea.vmem [#allocation3], 16
    %1502 = vst.msk [vmem:[%s1501 + $0x1] sm:$0xff] %vm1287, %v1434
    %1503 = vst.msk [vmem:[%s1501 + $0x11] sm:$0xff] %vm1287, %v1435
    %1504 = vst.msk [vmem:[%s1501 + $0x21] sm:$0xff] %vm1287, %v1436
    %1505 = vst.msk [vmem:[%s1501 + $0x31] sm:$0xff] %vm1287, %v1437
    %1506 = vst.msk [vmem:[%s1501 + $0x41] sm:$0xff] %vm1287, %v1438
    %1507 = vst.msk [vmem:[%s1501 + $0x51] sm:$0xff] %vm1287, %v1439
    %1508 = vst.msk [vmem:[%s1501 + $0x61] sm:$0xff] %vm1287, %v1440
    %1509 = vst.msk [vmem:[%s1501 + $0x71] sm:$0xff] %vm1287, %v1441
    %1510 = vst.msk [vmem:[%s1501 + $0xa1] sm:$0xff] %vm1287, %v1442
    %1511 = vst.msk [vmem:[%s1501 + $0xb1] sm:$0xff] %vm1287, %v1443
    %1512 = vst.msk [vmem:[%s1501 + $0xc1] sm:$0xff] %vm1287, %v1444
    %1513 = vst.msk [vmem:[%s1501 + $0xd1] sm:$0xff] %vm1287, %v1445
    %1514 = vst.msk [vmem:[%s1501 + $0xe1] sm:$0xff] %vm1287, %v1446
    %1515 = vst.msk [vmem:[%s1501 + $0xf1] sm:$0xff] %vm1287, %v1447
    %1516 = vst.msk [vmem:[%s1501 + $0x101] sm:$0xff] %vm1287, %v1448
    %1517 = vst.msk [vmem:[%s1501 + $0x111] sm:$0xff] %vm1287, %v1449
    %v1518 = vld [vmem:[#allocation3] sm:$0xff]
    %v1519 = vld [vmem:[#allocation3 + $0x10] sm:$0xff]
    %v1520 = vld [vmem:[#allocation3 + $0x20] sm:$0xff]
    %v1521 = vld [vmem:[#allocation3 + $0x30] sm:$0xff]
    %v1522 = vld [vmem:[#allocation3 + $0x40] sm:$0xff]
    %v1523 = vld [vmem:[#allocation3 + $0x50] sm:$0xff]
    %v1524 = vld [vmem:[#allocation3 + $0x60] sm:$0xff]
    %v1525 = vld [vmem:[#allocation3 + $0x70] sm:$0xff]
    %v1526 = vld [vmem:[#allocation3 + $0xa0] sm:$0xff]
    %v1527 = vld [vmem:[#allocation3 + $0xb0] sm:$0xff]
    %v1528 = vld [vmem:[#allocation3 + $0xc0] sm:$0xff]
    %v1529 = vld [vmem:[#allocation3 + $0xd0] sm:$0xff]
    %v1530 = vld [vmem:[#allocation3 + $0xe0] sm:$0xff]
    %v1531 = vld [vmem:[#allocation3 + $0xf0] sm:$0xff]
    %v1532 = vld [vmem:[#allocation3 + $0x100] sm:$0xff]
    %v1533 = vld [vmem:[#allocation3 + $0x110] sm:$0xff]
    %1534 = vst.msk [vmem:[#allocation4] sm:$0xff] %vm1287, %v1518
    %1535 = vst.msk [vmem:[#allocation4 + $0x8] sm:$0xff] %vm1287, %v1519
    %1536 = vst.msk [vmem:[#allocation4 + $0x10] sm:$0xff] %vm1287, %v1520
    %1537 = vst.msk [vmem:[#allocation4 + $0x18] sm:$0xff] %vm1287, %v1521
    %1538 = vst.msk [vmem:[#allocation4 + $0x20] sm:$0xff] %vm1287, %v1522
    %1539 = vst.msk [vmem:[#allocation4 + $0x28] sm:$0xff] %vm1287, %v1523
    %1540 = vst.msk [vmem:[#allocation4 + $0x30] sm:$0xff] %vm1287, %v1524
    %1541 = vst.msk [vmem:[#allocation4 + $0x38] sm:$0xff] %vm1287, %v1525
    %1542 = vst.msk [vmem:[#allocation4 + $0x40] sm:$0xff] %vm1287, %v1526
    %1543 = vst.msk [vmem:[#allocation4 + $0x48] sm:$0xff] %vm1287, %v1527
    %1544 = vst.msk [vmem:[#allocation4 + $0x50] sm:$0xff] %vm1287, %v1528
    %1545 = vst.msk [vmem:[#allocation4 + $0x58] sm:$0xff] %vm1287, %v1529
    %1546 = vst.msk [vmem:[#allocation4 + $0x60] sm:$0xff] %vm1287, %v1530
    %1547 = vst.msk [vmem:[#allocation4 + $0x68] sm:$0xff] %vm1287, %v1531
    %1548 = vst.msk [vmem:[#allocation4 + $0x70] sm:$0xff] %vm1287, %v1532
    %1549 = vst.msk [vmem:[#allocation4 + $0x78] sm:$0xff] %vm1287, %v1533
    %v1550 = vld [vmem:[#allocation3 + $0x1] sm:$0xff]
    %v1551 = vld [vmem:[#allocation3 + $0x11] sm:$0xff]
    %v1552 = vld [vmem:[#allocation3 + $0x21] sm:$0xff]
    %v1553 = vld [vmem:[#allocation3 + $0x31] sm:$0xff]
    %v1554 = vld [vmem:[#allocation3 + $0x41] sm:$0xff]
    %v1555 = vld [vmem:[#allocation3 + $0x51] sm:$0xff]
    %v1556 = vld [vmem:[#allocation3 + $0x61] sm:$0xff]
    %v1557 = vld [vmem:[#allocation3 + $0x71] sm:$0xff]
    %v1558 = vld [vmem:[#allocation3 + $0xa1] sm:$0xff]
    %v1559 = vld [vmem:[#allocation3 + $0xb1] sm:$0xff]
    %v1560 = vld [vmem:[#allocation3 + $0xc1] sm:$0xff]
    %v1561 = vld [vmem:[#allocation3 + $0xd1] sm:$0xff]
    %v1562 = vld [vmem:[#allocation3 + $0xe1] sm:$0xff]
    %v1563 = vld [vmem:[#allocation3 + $0xf1] sm:$0xff]
    %v1564 = vld [vmem:[#allocation3 + $0x101] sm:$0xff]
    %v1565 = vld [vmem:[#allocation3 + $0x111] sm:$0xff]
    %1582 = vrot.lane.b32.xlu0 %v1550, 8
    %v1583 = vpop.permute.xlu0 %1582
    %1584 = vrot.lane.b32.xlu0 %v1551, 8
    %v1585 = vpop.permute.xlu0 %1584
    %1586 = vrot.lane.b32.xlu0 %v1552, 8
    %v1587 = vpop.permute.xlu0 %1586
    %1588 = vrot.lane.b32.xlu0 %v1553, 8
    %v1589 = vpop.permute.xlu0 %1588
    %1590 = vrot.lane.b32.xlu0 %v1554, 8
    %v1591 = vpop.permute.xlu0 %1590
    %1592 = vrot.lane.b32.xlu0 %v1555, 8
    %v1593 = vpop.permute.xlu0 %1592
    %1594 = vrot.lane.b32.xlu0 %v1556, 8
    %v1595 = vpop.permute.xlu0 %1594
    %1596 = vrot.lane.b32.xlu0 %v1557, 8
    %v1597 = vpop.permute.xlu0 %1596
    %1598 = vrot.lane.b32.xlu0 %v1558, 8
    %v1599 = vpop.permute.xlu0 %1598
    %1600 = vrot.lane.b32.xlu0 %v1559, 8
    %v1601 = vpop.permute.xlu0 %1600
    %1602 = vrot.lane.b32.xlu0 %v1560, 8
    %v1603 = vpop.permute.xlu0 %1602
    %1604 = vrot.lane.b32.xlu0 %v1561, 8
    %v1605 = vpop.permute.xlu0 %1604
    %1606 = vrot.lane.b32.xlu0 %v1562, 8
    %v1607 = vpop.permute.xlu0 %1606
    %1608 = vrot.lane.b32.xlu0 %v1563, 8
    %v1609 = vpop.permute.xlu0 %1608
    %1610 = vrot.lane.b32.xlu0 %v1564, 8
    %v1611 = vpop.permute.xlu0 %1610
    %1612 = vrot.lane.b32.xlu0 %v1565, 8
    %v1613 = vpop.permute.xlu0 %1612
    %vm1630 = vcmask 130112
    %1631 = vst.msk [vmem:[#allocation4] sm:$0xff] %vm1630, %v1583
    %1632 = vst.msk [vmem:[#allocation4 + $0x8] sm:$0xff] %vm1630, %v1585
    %1633 = vst.msk [vmem:[#allocation4 + $0x10] sm:$0xff] %vm1630, %v1587
    %1634 = vst.msk [vmem:[#allocation4 + $0x18] sm:$0xff] %vm1630, %v1589
    %1635 = vst.msk [vmem:[#allocation4 + $0x20] sm:$0xff] %vm1630, %v1591
    %1636 = vst.msk [vmem:[#allocation4 + $0x28] sm:$0xff] %vm1630, %v1593
    %1637 = vst.msk [vmem:[#allocation4 + $0x30] sm:$0xff] %vm1630, %v1595
    %1638 = vst.msk [vmem:[#allocation4 + $0x38] sm:$0xff] %vm1630, %v1597
    %1639 = vst.msk [vmem:[#allocation4 + $0x40] sm:$0xff] %vm1630, %v1599
    %1640 = vst.msk [vmem:[#allocation4 + $0x48] sm:$0xff] %vm1630, %v1601
    %1641 = vst.msk [vmem:[#allocation4 + $0x50] sm:$0xff] %vm1630, %v1603
    %1642 = vst.msk [vmem:[#allocation4 + $0x58] sm:$0xff] %vm1630, %v1605
    %1643 = vst.msk [vmem:[#allocation4 + $0x60] sm:$0xff] %vm1630, %v1607
    %1644 = vst.msk [vmem:[#allocation4 + $0x68] sm:$0xff] %vm1630, %v1609
    %1645 = vst.msk [vmem:[#allocation4 + $0x70] sm:$0xff] %vm1630, %v1611
    %1646 = vst.msk [vmem:[#allocation4 + $0x78] sm:$0xff] %vm1630, %v1613
    %v1647 = vld [vmem:[#allocation3 + $0x2] sm:$0xff]
    %v1648 = vld [vmem:[#allocation3 + $0x12] sm:$0xff]
    %v1649 = vld [vmem:[#allocation3 + $0x22] sm:$0xff]
    %v1650 = vld [vmem:[#allocation3 + $0x32] sm:$0xff]
    %v1651 = vld [vmem:[#allocation3 + $0x42] sm:$0xff]
    %v1652 = vld [vmem:[#allocation3 + $0x52] sm:$0xff]
    %v1653 = vld [vmem:[#allocation3 + $0x62] sm:$0xff]
    %v1654 = vld [vmem:[#allocation3 + $0x72] sm:$0xff]
    %v1655 = vld [vmem:[#allocation3 + $0xa2] sm:$0xff]
    %v1656 = vld [vmem:[#allocation3 + $0xb2] sm:$0xff]
    %v1657 = vld [vmem:[#allocation3 + $0xc2] sm:$0xff]
    %v1658 = vld [vmem:[#allocation3 + $0xd2] sm:$0xff]
    %v1659 = vld [vmem:[#allocation3 + $0xe2] sm:$0xff]
    %v1660 = vld [vmem:[#allocation3 + $0xf2] sm:$0xff]
    %v1661 = vld [vmem:[#allocation3 + $0x102] sm:$0xff]
    %v1662 = vld [vmem:[#allocation3 + $0x112] sm:$0xff]
    %1679 = vrot.lane.b32.xlu0 %v1647, 16
    %v1680 = vpop.permute.xlu0 %1679
    %1681 = vrot.lane.b32.xlu0 %v1648, 16
    %v1682 = vpop.permute.xlu0 %1681
    %1683 = vrot.lane.b32.xlu0 %v1649, 16
    %v1684 = vpop.permute.xlu0 %1683
    %1685 = vrot.lane.b32.xlu0 %v1650, 16
    %v1686 = vpop.permute.xlu0 %1685
    %1687 = vrot.lane.b32.xlu0 %v1651, 16
    %v1688 = vpop.permute.xlu0 %1687
    %1689 = vrot.lane.b32.xlu0 %v1652, 16
    %v1690 = vpop.permute.xlu0 %1689
    %1691 = vrot.lane.b32.xlu0 %v1653, 16
    %v1692 = vpop.permute.xlu0 %1691
    %1693 = vrot.lane.b32.xlu0 %v1654, 16
    %v1694 = vpop.permute.xlu0 %1693
    %1695 = vrot.lane.b32.xlu0 %v1655, 16
    %v1696 = vpop.permute.xlu0 %1695
    %1697 = vrot.lane.b32.xlu0 %v1656, 16
    %v1698 = vpop.permute.xlu0 %1697
    %1699 = vrot.lane.b32.xlu0 %v1657, 16
    %v1700 = vpop.permute.xlu0 %1699
    %1701 = vrot.lane.b32.xlu0 %v1658, 16
    %v1702 = vpop.permute.xlu0 %1701
    %1703 = vrot.lane.b32.xlu0 %v1659, 16
    %v1704 = vpop.permute.xlu0 %1703
    %1705 = vrot.lane.b32.xlu0 %v1660, 16
    %v1706 = vpop.permute.xlu0 %1705
    %1707 = vrot.lane.b32.xlu0 %v1661, 16
    %v1708 = vpop.permute.xlu0 %1707
    %1709 = vrot.lane.b32.xlu0 %v1662, 16
    %v1710 = vpop.permute.xlu0 %1709
    %vm1727 = vcmask 195712
    %1728 = vst.msk [vmem:[#allocation4] sm:$0xff] %vm1727, %v1680
    %1729 = vst.msk [vmem:[#allocation4 + $0x8] sm:$0xff] %vm1727, %v1682
    %1730 = vst.msk [vmem:[#allocation4 + $0x10] sm:$0xff] %vm1727, %v1684
    %1731 = vst.msk [vmem:[#allocation4 + $0x18] sm:$0xff] %vm1727, %v1686
    %1732 = vst.msk [vmem:[#allocation4 + $0x20] sm:$0xff] %vm1727, %v1688
    %1733 = vst.msk [vmem:[#allocation4 + $0x28] sm:$0xff] %vm1727, %v1690
    %1734 = vst.msk [vmem:[#allocation4 + $0x30] sm:$0xff] %vm1727, %v1692
    %1735 = vst.msk [vmem:[#allocation4 + $0x38] sm:$0xff] %vm1727, %v1694
    %1736 = vst.msk [vmem:[#allocation4 + $0x40] sm:$0xff] %vm1727, %v1696
    %1737 = vst.msk [vmem:[#allocation4 + $0x48] sm:$0xff] %vm1727, %v1698
    %1738 = vst.msk [vmem:[#allocation4 + $0x50] sm:$0xff] %vm1727, %v1700
    %1739 = vst.msk [vmem:[#allocation4 + $0x58] sm:$0xff] %vm1727, %v1702
    %1740 = vst.msk [vmem:[#allocation4 + $0x60] sm:$0xff] %vm1727, %v1704
    %1741 = vst.msk [vmem:[#allocation4 + $0x68] sm:$0xff] %vm1727, %v1706
    %1742 = vst.msk [vmem:[#allocation4 + $0x70] sm:$0xff] %vm1727, %v1708
    %1743 = vst.msk [vmem:[#allocation4 + $0x78] sm:$0xff] %vm1727, %v1710
    %v1744 = vld [vmem:[%s1501] sm:$0xff]
    %v1745 = vld [vmem:[%s1501 + $0x10] sm:$0xff]
    %v1746 = vld [vmem:[%s1501 + $0x20] sm:$0xff]
    %v1747 = vld [vmem:[%s1501 + $0x30] sm:$0xff]
    %v1748 = vld [vmem:[%s1501 + $0x40] sm:$0xff]
    %v1749 = vld [vmem:[%s1501 + $0x50] sm:$0xff]
    %v1750 = vld [vmem:[%s1501 + $0x60] sm:$0xff]
    %v1751 = vld [vmem:[%s1501 + $0x70] sm:$0xff]
    %v1752 = vld [vmem:[%s1501 + $0xa0] sm:$0xff]
    %v1753 = vld [vmem:[%s1501 + $0xb0] sm:$0xff]
    %v1754 = vld [vmem:[%s1501 + $0xc0] sm:$0xff]
    %v1755 = vld [vmem:[%s1501 + $0xd0] sm:$0xff]
    %v1756 = vld [vmem:[%s1501 + $0xe0] sm:$0xff]
    %v1757 = vld [vmem:[%s1501 + $0xf0] sm:$0xff]
    %v1758 = vld [vmem:[%s1501 + $0x100] sm:$0xff]
    %v1759 = vld [vmem:[%s1501 + $0x110] sm:$0xff]
    %1776 = vrot.lane.b32.xlu0 %v1744, 24
    %v1777 = vpop.permute.xlu0 %1776
    %1778 = vrot.lane.b32.xlu0 %v1745, 24
    %v1779 = vpop.permute.xlu0 %1778
    %1780 = vrot.lane.b32.xlu0 %v1746, 24
    %v1781 = vpop.permute.xlu0 %1780
    %1782 = vrot.lane.b32.xlu0 %v1747, 24
    %v1783 = vpop.permute.xlu0 %1782
    %1784 = vrot.lane.b32.xlu0 %v1748, 24
    %v1785 = vpop.permute.xlu0 %1784
    %1786 = vrot.lane.b32.xlu0 %v1749, 24
    %v1787 = vpop.permute.xlu0 %1786
    %1788 = vrot.lane.b32.xlu0 %v1750, 24
    %v1789 = vpop.permute.xlu0 %1788
    %1790 = vrot.lane.b32.xlu0 %v1751, 24
    %v1791 = vpop.permute.xlu0 %1790
    %1792 = vrot.lane.b32.xlu0 %v1752, 24
    %v1793 = vpop.permute.xlu0 %1792
    %1794 = vrot.lane.b32.xlu0 %v1753, 24
    %v1795 = vpop.permute.xlu0 %1794
    %1796 = vrot.lane.b32.xlu0 %v1754, 24
    %v1797 = vpop.permute.xlu0 %1796
    %1798 = vrot.lane.b32.xlu0 %v1755, 24
    %v1799 = vpop.permute.xlu0 %1798
    %1800 = vrot.lane.b32.xlu0 %v1756, 24
    %v1801 = vpop.permute.xlu0 %1800
    %1802 = vrot.lane.b32.xlu0 %v1757, 24
    %v1803 = vpop.permute.xlu0 %1802
    %1804 = vrot.lane.b32.xlu0 %v1758, 24
    %v1805 = vpop.permute.xlu0 %1804
    %1806 = vrot.lane.b32.xlu0 %v1759, 24
    %v1807 = vpop.permute.xlu0 %1806
    %vm1824 = vcmask 261312
    %1825 = vst.msk [vmem:[#allocation4] sm:$0xff] %vm1824, %v1777
    %1826 = vst.msk [vmem:[#allocation4 + $0x8] sm:$0xff] %vm1824, %v1779
    %1827 = vst.msk [vmem:[#allocation4 + $0x10] sm:$0xff] %vm1824, %v1781
    %1828 = vst.msk [vmem:[#allocation4 + $0x18] sm:$0xff] %vm1824, %v1783
    %1829 = vst.msk [vmem:[#allocation4 + $0x20] sm:$0xff] %vm1824, %v1785
    %1830 = vst.msk [vmem:[#allocation4 + $0x28] sm:$0xff] %vm1824, %v1787
    %1831 = vst.msk [vmem:[#allocation4 + $0x30] sm:$0xff] %vm1824, %v1789
    %1832 = vst.msk [vmem:[#allocation4 + $0x38] sm:$0xff] %vm1824, %v1791
    %1833 = vst.msk [vmem:[#allocation4 + $0x40] sm:$0xff] %vm1824, %v1793
    %1834 = vst.msk [vmem:[#allocation4 + $0x48] sm:$0xff] %vm1824, %v1795
    %1835 = vst.msk [vmem:[#allocation4 + $0x50] sm:$0xff] %vm1824, %v1797
    %1836 = vst.msk [vmem:[#allocation4 + $0x58] sm:$0xff] %vm1824, %v1799
    %1837 = vst.msk [vmem:[#allocation4 + $0x60] sm:$0xff] %vm1824, %v1801
    %1838 = vst.msk [vmem:[#allocation4 + $0x68] sm:$0xff] %vm1824, %v1803
    %1839 = vst.msk [vmem:[#allocation4 + $0x70] sm:$0xff] %vm1824, %v1805
    %1840 = vst.msk [vmem:[#allocation4 + $0x78] sm:$0xff] %vm1824, %v1807
    %v1841 = vld [vmem:[%s1501 + $0x1] sm:$0xff]
    %v1842 = vld [vmem:[%s1501 + $0x11] sm:$0xff]
    %v1843 = vld [vmem:[%s1501 + $0x21] sm:$0xff]
    %v1844 = vld [vmem:[%s1501 + $0x31] sm:$0xff]
    %v1845 = vld [vmem:[%s1501 + $0x41] sm:$0xff]
    %v1846 = vld [vmem:[%s1501 + $0x51] sm:$0xff]
    %v1847 = vld [vmem:[%s1501 + $0x61] sm:$0xff]
    %v1848 = vld [vmem:[%s1501 + $0x71] sm:$0xff]
    %v1849 = vld [vmem:[%s1501 + $0xa1] sm:$0xff]
    %v1850 = vld [vmem:[%s1501 + $0xb1] sm:$0xff]
    %v1851 = vld [vmem:[%s1501 + $0xc1] sm:$0xff]
    %v1852 = vld [vmem:[%s1501 + $0xd1] sm:$0xff]
    %v1853 = vld [vmem:[%s1501 + $0xe1] sm:$0xff]
    %v1854 = vld [vmem:[%s1501 + $0xf1] sm:$0xff]
    %v1855 = vld [vmem:[%s1501 + $0x101] sm:$0xff]
    %v1856 = vld [vmem:[%s1501 + $0x111] sm:$0xff]
    %1873 = vrot.lane.b32.xlu0 %v1841, 32
    %v1874 = vpop.permute.xlu0 %1873
    %1875 = vrot.lane.b32.xlu0 %v1842, 32
    %v1876 = vpop.permute.xlu0 %1875
    %1877 = vrot.lane.b32.xlu0 %v1843, 32
    %v1878 = vpop.permute.xlu0 %1877
    %1879 = vrot.lane.b32.xlu0 %v1844, 32
    %v1880 = vpop.permute.xlu0 %1879
    %1881 = vrot.lane.b32.xlu0 %v1845, 32
    %v1882 = vpop.permute.xlu0 %1881
    %1883 = vrot.lane.b32.xlu0 %v1846, 32
    %v1884 = vpop.permute.xlu0 %1883
    %1885 = vrot.lane.b32.xlu0 %v1847, 32
    %v1886 = vpop.permute.xlu0 %1885
    %1887 = vrot.lane.b32.xlu0 %v1848, 32
    %v1888 = vpop.permute.xlu0 %1887
    %1889 = vrot.lane.b32.xlu0 %v1849, 32
    %v1890 = vpop.permute.xlu0 %1889
    %1891 = vrot.lane.b32.xlu0 %v1850, 32
    %v1892 = vpop.permute.xlu0 %1891
    %1893 = vrot.lane.b32.xlu0 %v1851, 32
    %v1894 = vpop.permute.xlu0 %1893
    %1895 = vrot.lane.b32.xlu0 %v1852, 32
    %v1896 = vpop.permute.xlu0 %1895
    %1897 = vrot.lane.b32.xlu0 %v1853, 32
    %v1898 = vpop.permute.xlu0 %1897
    %1899 = vrot.lane.b32.xlu0 %v1854, 32
    %v1900 = vpop.permute.xlu0 %1899
    %1901 = vrot.lane.b32.xlu0 %v1855, 32
    %v1902 = vpop.permute.xlu0 %1901
    %1903 = vrot.lane.b32.xlu0 %v1856, 32
    %v1904 = vpop.permute.xlu0 %1903
    %vm1921 = vcmask 326912
    %1922 = vst.msk [vmem:[#allocation4] sm:$0xff] %vm1921, %v1874
    %1923 = vst.msk [vmem:[#allocation4 + $0x8] sm:$0xff] %vm1921, %v1876
    %1924 = vst.msk [vmem:[#allocation4 + $0x10] sm:$0xff] %vm1921, %v1878
    %1925 = vst.msk [vmem:[#allocation4 + $0x18] sm:$0xff] %vm1921, %v1880
    %1926 = vst.msk [vmem:[#allocation4 + $0x20] sm:$0xff] %vm1921, %v1882
    %1927 = vst.msk [vmem:[#allocation4 + $0x28] sm:$0xff] %vm1921, %v1884
    %1928 = vst.msk [vmem:[#allocation4 + $0x30] sm:$0xff] %vm1921, %v1886
    %1929 = vst.msk [vmem:[#allocation4 + $0x38] sm:$0xff] %vm1921, %v1888
    %1930 = vst.msk [vmem:[#allocation4 + $0x40] sm:$0xff] %vm1921, %v1890
    %1931 = vst.msk [vmem:[#allocation4 + $0x48] sm:$0xff] %vm1921, %v1892
    %1932 = vst.msk [vmem:[#allocation4 + $0x50] sm:$0xff] %vm1921, %v1894
    %1933 = vst.msk [vmem:[#allocation4 + $0x58] sm:$0xff] %vm1921, %v1896
    %1934 = vst.msk [vmem:[#allocation4 + $0x60] sm:$0xff] %vm1921, %v1898
    %1935 = vst.msk [vmem:[#allocation4 + $0x68] sm:$0xff] %vm1921, %v1900
    %1936 = vst.msk [vmem:[#allocation4 + $0x70] sm:$0xff] %vm1921, %v1902
    %1937 = vst.msk [vmem:[#allocation4 + $0x78] sm:$0xff] %vm1921, %v1904
    %v1938 = vld [vmem:[%s1501 + $0x2] sm:$0xff]
    %v1939 = vld [vmem:[%s1501 + $0x12] sm:$0xff]
    %v1940 = vld [vmem:[%s1501 + $0x22] sm:$0xff]
    %v1941 = vld [vmem:[%s1501 + $0x32] sm:$0xff]
    %v1942 = vld [vmem:[%s1501 + $0x42] sm:$0xff]
    %v1943 = vld [vmem:[%s1501 + $0x52] sm:$0xff]
    %v1944 = vld [vmem:[%s1501 + $0x62] sm:$0xff]
    %v1945 = vld [vmem:[%s1501 + $0x72] sm:$0xff]
    %v1946 = vld [vmem:[%s1501 + $0xa2] sm:$0xff]
    %v1947 = vld [vmem:[%s1501 + $0xb2] sm:$0xff]
    %v1948 = vld [vmem:[%s1501 + $0xc2] sm:$0xff]
    %v1949 = vld [vmem:[%s1501 + $0xd2] sm:$0xff]
    %v1950 = vld [vmem:[%s1501 + $0xe2] sm:$0xff]
    %v1951 = vld [vmem:[%s1501 + $0xf2] sm:$0xff]
    %v1952 = vld [vmem:[%s1501 + $0x102] sm:$0xff]
    %v1953 = vld [vmem:[%s1501 + $0x112] sm:$0xff]
    %1970 = vrot.lane.b32.xlu0 %v1938, 40
    %v1971 = vpop.permute.xlu0 %1970
    %1972 = vrot.lane.b32.xlu0 %v1939, 40
    %v1973 = vpop.permute.xlu0 %1972
    %1974 = vrot.lane.b32.xlu0 %v1940, 40
    %v1975 = vpop.permute.xlu0 %1974
    %1976 = vrot.lane.b32.xlu0 %v1941, 40
    %v1977 = vpop.permute.xlu0 %1976
    %1978 = vrot.lane.b32.xlu0 %v1942, 40
    %v1979 = vpop.permute.xlu0 %1978
    %1980 = vrot.lane.b32.xlu0 %v1943, 40
    %v1981 = vpop.permute.xlu0 %1980
    %1982 = vrot.lane.b32.xlu0 %v1944, 40
    %v1983 = vpop.permute.xlu0 %1982
    %1984 = vrot.lane.b32.xlu0 %v1945, 40
    %v1985 = vpop.permute.xlu0 %1984
    %1986 = vrot.lane.b32.xlu0 %v1946, 40
    %v1987 = vpop.permute.xlu0 %1986
    %1988 = vrot.lane.b32.xlu0 %v1947, 40
    %v1989 = vpop.permute.xlu0 %1988
    %1990 = vrot.lane.b32.xlu0 %v1948, 40
    %v1991 = vpop.permute.xlu0 %1990
    %1992 = vrot.lane.b32.xlu0 %v1949, 40
    %v1993 = vpop.permute.xlu0 %1992
    %1994 = vrot.lane.b32.xlu0 %v1950, 40
    %v1995 = vpop.permute.xlu0 %1994
    %1996 = vrot.lane.b32.xlu0 %v1951, 40
    %v1997 = vpop.permute.xlu0 %1996
    %1998 = vrot.lane.b32.xlu0 %v1952, 40
    %v1999 = vpop.permute.xlu0 %1998
    %2000 = vrot.lane.b32.xlu0 %v1953, 40
    %v2001 = vpop.permute.xlu0 %2000
    %vm2018 = vcmask 392512
    %2019 = vst.msk [vmem:[#allocation4] sm:$0xff] %vm2018, %v1971
    %2020 = vst.msk [vmem:[#allocation4 + $0x8] sm:$0xff] %vm2018, %v1973
    %2021 = vst.msk [vmem:[#allocation4 + $0x10] sm:$0xff] %vm2018, %v1975
    %2022 = vst.msk [vmem:[#allocation4 + $0x18] sm:$0xff] %vm2018, %v1977
    %2023 = vst.msk [vmem:[#allocation4 + $0x20] sm:$0xff] %vm2018, %v1979
    %2024 = vst.msk [vmem:[#allocation4 + $0x28] sm:$0xff] %vm2018, %v1981
    %2025 = vst.msk [vmem:[#allocation4 + $0x30] sm:$0xff] %vm2018, %v1983
    %2026 = vst.msk [vmem:[#allocation4 + $0x38] sm:$0xff] %vm2018, %v1985
    %2027 = vst.msk [vmem:[#allocation4 + $0x40] sm:$0xff] %vm2018, %v1987
    %2028 = vst.msk [vmem:[#allocation4 + $0x48] sm:$0xff] %vm2018, %v1989
    %2029 = vst.msk [vmem:[#allocation4 + $0x50] sm:$0xff] %vm2018, %v1991
    %2030 = vst.msk [vmem:[#allocation4 + $0x58] sm:$0xff] %vm2018, %v1993
    %2031 = vst.msk [vmem:[#allocation4 + $0x60] sm:$0xff] %vm2018, %v1995
    %2032 = vst.msk [vmem:[#allocation4 + $0x68] sm:$0xff] %vm2018, %v1997
    %2033 = vst.msk [vmem:[#allocation4 + $0x70] sm:$0xff] %vm2018, %v1999
    %2034 = vst.msk [vmem:[#allocation4 + $0x78] sm:$0xff] %vm2018, %v2001
    %s2035 = scalar_lea.vmem [#allocation3], 32
    %v2036 = vld [vmem:[%s2035] sm:$0xff]
    %v2037 = vld [vmem:[%s2035 + $0x10] sm:$0xff]
    %v2038 = vld [vmem:[%s2035 + $0x20] sm:$0xff]
    %v2039 = vld [vmem:[%s2035 + $0x30] sm:$0xff]
    %v2040 = vld [vmem:[%s2035 + $0x40] sm:$0xff]
    %v2041 = vld [vmem:[%s2035 + $0x50] sm:$0xff]
    %v2042 = vld [vmem:[%s2035 + $0x60] sm:$0xff]
    %v2043 = vld [vmem:[%s2035 + $0x70] sm:$0xff]
    %v2044 = vld [vmem:[%s2035 + $0xa0] sm:$0xff]
    %v2045 = vld [vmem:[%s2035 + $0xb0] sm:$0xff]
    %v2046 = vld [vmem:[%s2035 + $0xc0] sm:$0xff]
    %v2047 = vld [vmem:[%s2035 + $0xd0] sm:$0xff]
    %v2048 = vld [vmem:[%s2035 + $0xe0] sm:$0xff]
    %v2049 = vld [vmem:[%s2035 + $0xf0] sm:$0xff]
    %v2050 = vld [vmem:[%s2035 + $0x100] sm:$0xff]
    %v2051 = vld [vmem:[%s2035 + $0x110] sm:$0xff]
    %2068 = vrot.lane.b32.xlu0 %v2036, 48
    %v2069 = vpop.permute.xlu0 %2068
    %2070 = vrot.lane.b32.xlu0 %v2037, 48
    %v2071 = vpop.permute.xlu0 %2070
    %2072 = vrot.lane.b32.xlu0 %v2038, 48
    %v2073 = vpop.permute.xlu0 %2072
    %2074 = vrot.lane.b32.xlu0 %v2039, 48
    %v2075 = vpop.permute.xlu0 %2074
    %2076 = vrot.lane.b32.xlu0 %v2040, 48
    %v2077 = vpop.permute.xlu0 %2076
    %2078 = vrot.lane.b32.xlu0 %v2041, 48
    %v2079 = vpop.permute.xlu0 %2078
    %2080 = vrot.lane.b32.xlu0 %v2042, 48
    %v2081 = vpop.permute.xlu0 %2080
    %2082 = vrot.lane.b32.xlu0 %v2043, 48
    %v2083 = vpop.permute.xlu0 %2082
    %2084 = vrot.lane.b32.xlu0 %v2044, 48
    %v2085 = vpop.permute.xlu0 %2084
    %2086 = vrot.lane.b32.xlu0 %v2045, 48
    %v2087 = vpop.permute.xlu0 %2086
    %2088 = vrot.lane.b32.xlu0 %v2046, 48
    %v2089 = vpop.permute.xlu0 %2088
    %2090 = vrot.lane.b32.xlu0 %v2047, 48
    %v2091 = vpop.permute.xlu0 %2090
    %2092 = vrot.lane.b32.xlu0 %v2048, 48
    %v2093 = vpop.permute.xlu0 %2092
    %2094 = vrot.lane.b32.xlu0 %v2049, 48
    %v2095 = vpop.permute.xlu0 %2094
    %2096 = vrot.lane.b32.xlu0 %v2050, 48
    %v2097 = vpop.permute.xlu0 %2096
    %2098 = vrot.lane.b32.xlu0 %v2051, 48
    %v2099 = vpop.permute.xlu0 %2098
    %vm2116 = vcmask 458112
    %2117 = vst.msk [vmem:[#allocation4] sm:$0xff] %vm2116, %v2069
    %2118 = vst.msk [vmem:[#allocation4 + $0x8] sm:$0xff] %vm2116, %v2071
    %2119 = vst.msk [vmem:[#allocation4 + $0x10] sm:$0xff] %vm2116, %v2073
    %2120 = vst.msk [vmem:[#allocation4 + $0x18] sm:$0xff] %vm2116, %v2075
    %2121 = vst.msk [vmem:[#allocation4 + $0x20] sm:$0xff] %vm2116, %v2077
    %2122 = vst.msk [vmem:[#allocation4 + $0x28] sm:$0xff] %vm2116, %v2079
    %2123 = vst.msk [vmem:[#allocation4 + $0x30] sm:$0xff] %vm2116, %v2081
    %2124 = vst.msk [vmem:[#allocation4 + $0x38] sm:$0xff] %vm2116, %v2083
    %2125 = vst.msk [vmem:[#allocation4 + $0x40] sm:$0xff] %vm2116, %v2085
    %2126 = vst.msk [vmem:[#allocation4 + $0x48] sm:$0xff] %vm2116, %v2087
    %2127 = vst.msk [vmem:[#allocation4 + $0x50] sm:$0xff] %vm2116, %v2089
    %2128 = vst.msk [vmem:[#allocation4 + $0x58] sm:$0xff] %vm2116, %v2091
    %2129 = vst.msk [vmem:[#allocation4 + $0x60] sm:$0xff] %vm2116, %v2093
    %2130 = vst.msk [vmem:[#allocation4 + $0x68] sm:$0xff] %vm2116, %v2095
    %2131 = vst.msk [vmem:[#allocation4 + $0x70] sm:$0xff] %vm2116, %v2097
    %2132 = vst.msk [vmem:[#allocation4 + $0x78] sm:$0xff] %vm2116, %v2099
    %v2133 = vld [vmem:[%s2035 + $0x1] sm:$0xff]
    %v2134 = vld [vmem:[%s2035 + $0x11] sm:$0xff]
    %v2135 = vld [vmem:[%s2035 + $0x21] sm:$0xff]
    %v2136 = vld [vmem:[%s2035 + $0x31] sm:$0xff]
    %v2137 = vld [vmem:[%s2035 + $0x41] sm:$0xff]
    %v2138 = vld [vmem:[%s2035 + $0x51] sm:$0xff]
    %v2139 = vld [vmem:[%s2035 + $0x61] sm:$0xff]
    %v2140 = vld [vmem:[%s2035 + $0x71] sm:$0xff]
    %v2141 = vld [vmem:[%s2035 + $0xa1] sm:$0xff]
    %v2142 = vld [vmem:[%s2035 + $0xb1] sm:$0xff]
    %v2143 = vld [vmem:[%s2035 + $0xc1] sm:$0xff]
    %v2144 = vld [vmem:[%s2035 + $0xd1] sm:$0xff]
    %v2145 = vld [vmem:[%s2035 + $0xe1] sm:$0xff]
    %v2146 = vld [vmem:[%s2035 + $0xf1] sm:$0xff]
    %v2147 = vld [vmem:[%s2035 + $0x101] sm:$0xff]
    %v2148 = vld [vmem:[%s2035 + $0x111] sm:$0xff]
    %2165 = vrot.lane.b32.xlu0 %v2133, 56
    %v2166 = vpop.permute.xlu0 %2165
    %2167 = vrot.lane.b32.xlu0 %v2134, 56
    %v2168 = vpop.permute.xlu0 %2167
    %2169 = vrot.lane.b32.xlu0 %v2135, 56
    %v2170 = vpop.permute.xlu0 %2169
    %2171 = vrot.lane.b32.xlu0 %v2136, 56
    %v2172 = vpop.permute.xlu0 %2171
    %2173 = vrot.lane.b32.xlu0 %v2137, 56
    %v2174 = vpop.permute.xlu0 %2173
    %2175 = vrot.lane.b32.xlu0 %v2138, 56
    %v2176 = vpop.permute.xlu0 %2175
    %2177 = vrot.lane.b32.xlu0 %v2139, 56
    %v2178 = vpop.permute.xlu0 %2177
    %2179 = vrot.lane.b32.xlu0 %v2140, 56
    %v2180 = vpop.permute.xlu0 %2179
    %2181 = vrot.lane.b32.xlu0 %v2141, 56
    %v2182 = vpop.permute.xlu0 %2181
    %2183 = vrot.lane.b32.xlu0 %v2142, 56
    %v2184 = vpop.permute.xlu0 %2183
    %2185 = vrot.lane.b32.xlu0 %v2143, 56
    %v2186 = vpop.permute.xlu0 %2185
    %2187 = vrot.lane.b32.xlu0 %v2144, 56
    %v2188 = vpop.permute.xlu0 %2187
    %2189 = vrot.lane.b32.xlu0 %v2145, 56
    %v2190 = vpop.permute.xlu0 %2189
    %2191 = vrot.lane.b32.xlu0 %v2146, 56
    %v2192 = vpop.permute.xlu0 %2191
    %2193 = vrot.lane.b32.xlu0 %v2147, 56
    %v2194 = vpop.permute.xlu0 %2193
    %2195 = vrot.lane.b32.xlu0 %v2148, 56
    %v2196 = vpop.permute.xlu0 %2195
    %vm2213 = vcmask 523712
    %2214 = vst.msk [vmem:[#allocation4] sm:$0xff] %vm2213, %v2166
    %2215 = vst.msk [vmem:[#allocation4 + $0x8] sm:$0xff] %vm2213, %v2168
    %2216 = vst.msk [vmem:[#allocation4 + $0x10] sm:$0xff] %vm2213, %v2170
    %2217 = vst.msk [vmem:[#allocation4 + $0x18] sm:$0xff] %vm2213, %v2172
    %2218 = vst.msk [vmem:[#allocation4 + $0x20] sm:$0xff] %vm2213, %v2174
    %2219 = vst.msk [vmem:[#allocation4 + $0x28] sm:$0xff] %vm2213, %v2176
    %2220 = vst.msk [vmem:[#allocation4 + $0x30] sm:$0xff] %vm2213, %v2178
    %2221 = vst.msk [vmem:[#allocation4 + $0x38] sm:$0xff] %vm2213, %v2180
    %2222 = vst.msk [vmem:[#allocation4 + $0x40] sm:$0xff] %vm2213, %v2182
    %2223 = vst.msk [vmem:[#allocation4 + $0x48] sm:$0xff] %vm2213, %v2184
    %2224 = vst.msk [vmem:[#allocation4 + $0x50] sm:$0xff] %vm2213, %v2186
    %2225 = vst.msk [vmem:[#allocation4 + $0x58] sm:$0xff] %vm2213, %v2188
    %2226 = vst.msk [vmem:[#allocation4 + $0x60] sm:$0xff] %vm2213, %v2190
    %2227 = vst.msk [vmem:[#allocation4 + $0x68] sm:$0xff] %vm2213, %v2192
    %2228 = vst.msk [vmem:[#allocation4 + $0x70] sm:$0xff] %vm2213, %v2194
    %2229 = vst.msk [vmem:[#allocation4 + $0x78] sm:$0xff] %vm2213, %v2196
    %v2230 = vld [vmem:[%s2035 + $0x2] sm:$0xff]
    %v2231 = vld [vmem:[%s2035 + $0x12] sm:$0xff]
    %v2232 = vld [vmem:[%s2035 + $0x22] sm:$0xff]
    %v2233 = vld [vmem:[%s2035 + $0x32] sm:$0xff]
    %v2234 = vld [vmem:[%s2035 + $0x42] sm:$0xff]
    %v2235 = vld [vmem:[%s2035 + $0x52] sm:$0xff]
    %v2236 = vld [vmem:[%s2035 + $0x62] sm:$0xff]
    %v2237 = vld [vmem:[%s2035 + $0x72] sm:$0xff]
    %v2238 = vld [vmem:[%s2035 + $0xa2] sm:$0xff]
    %v2239 = vld [vmem:[%s2035 + $0xb2] sm:$0xff]
    %v2240 = vld [vmem:[%s2035 + $0xc2] sm:$0xff]
    %v2241 = vld [vmem:[%s2035 + $0xd2] sm:$0xff]
    %v2242 = vld [vmem:[%s2035 + $0xe2] sm:$0xff]
    %v2243 = vld [vmem:[%s2035 + $0xf2] sm:$0xff]
    %v2244 = vld [vmem:[%s2035 + $0x102] sm:$0xff]
    %v2245 = vld [vmem:[%s2035 + $0x112] sm:$0xff]
    %2262 = vrot.lane.b32.xlu0 %v2230, 64
    %v2263 = vpop.permute.xlu0 %2262
    %2264 = vrot.lane.b32.xlu0 %v2231, 64
    %v2265 = vpop.permute.xlu0 %2264
    %2266 = vrot.lane.b32.xlu0 %v2232, 64
    %v2267 = vpop.permute.xlu0 %2266
    %2268 = vrot.lane.b32.xlu0 %v2233, 64
    %v2269 = vpop.permute.xlu0 %2268
    %2270 = vrot.lane.b32.xlu0 %v2234, 64
    %v2271 = vpop.permute.xlu0 %2270
    %2272 = vrot.lane.b32.xlu0 %v2235, 64
    %v2273 = vpop.permute.xlu0 %2272
    %2274 = vrot.lane.b32.xlu0 %v2236, 64
    %v2275 = vpop.permute.xlu0 %2274
    %2276 = vrot.lane.b32.xlu0 %v2237, 64
    %v2277 = vpop.permute.xlu0 %2276
    %2278 = vrot.lane.b32.xlu0 %v2238, 64
    %v2279 = vpop.permute.xlu0 %2278
    %2280 = vrot.lane.b32.xlu0 %v2239, 64
    %v2281 = vpop.permute.xlu0 %2280
    %2282 = vrot.lane.b32.xlu0 %v2240, 64
    %v2283 = vpop.permute.xlu0 %2282
    %2284 = vrot.lane.b32.xlu0 %v2241, 64
    %v2285 = vpop.permute.xlu0 %2284
    %2286 = vrot.lane.b32.xlu0 %v2242, 64
    %v2287 = vpop.permute.xlu0 %2286
    %2288 = vrot.lane.b32.xlu0 %v2243, 64
    %v2289 = vpop.permute.xlu0 %2288
    %2290 = vrot.lane.b32.xlu0 %v2244, 64
    %v2291 = vpop.permute.xlu0 %2290
    %2292 = vrot.lane.b32.xlu0 %v2245, 64
    %v2293 = vpop.permute.xlu0 %2292
    %vm2310 = vcmask 589312
    %2311 = vst.msk [vmem:[#allocation4] sm:$0xff] %vm2310, %v2263
    %2312 = vst.msk [vmem:[#allocation4 + $0x8] sm:$0xff] %vm2310, %v2265
    %2313 = vst.msk [vmem:[#allocation4 + $0x10] sm:$0xff] %vm2310, %v2267
    %2314 = vst.msk [vmem:[#allocation4 + $0x18] sm:$0xff] %vm2310, %v2269
    %2315 = vst.msk [vmem:[#allocation4 + $0x20] sm:$0xff] %vm2310, %v2271
    %2316 = vst.msk [vmem:[#allocation4 + $0x28] sm:$0xff] %vm2310, %v2273
    %2317 = vst.msk [vmem:[#allocation4 + $0x30] sm:$0xff] %vm2310, %v2275
    %2318 = vst.msk [vmem:[#allocation4 + $0x38] sm:$0xff] %vm2310, %v2277
    %2319 = vst.msk [vmem:[#allocation4 + $0x40] sm:$0xff] %vm2310, %v2279
    %2320 = vst.msk [vmem:[#allocation4 + $0x48] sm:$0xff] %vm2310, %v2281
    %2321 = vst.msk [vmem:[#allocation4 + $0x50] sm:$0xff] %vm2310, %v2283
    %2322 = vst.msk [vmem:[#allocation4 + $0x58] sm:$0xff] %vm2310, %v2285
    %2323 = vst.msk [vmem:[#allocation4 + $0x60] sm:$0xff] %vm2310, %v2287
    %2324 = vst.msk [vmem:[#allocation4 + $0x68] sm:$0xff] %vm2310, %v2289
    %2325 = vst.msk [vmem:[#allocation4 + $0x70] sm:$0xff] %vm2310, %v2291
    %2326 = vst.msk [vmem:[#allocation4 + $0x78] sm:$0xff] %vm2310, %v2293
    %v2327 = vld [vmem:[#allocation4] sm:$0xff]
    %v2328 = vld [vmem:[#allocation4 + $0x8] sm:$0xff]
    %v2329 = vld [vmem:[#allocation4 + $0x10] sm:$0xff]
    %v2330 = vld [vmem:[#allocation4 + $0x18] sm:$0xff]
    %v2331 = vld [vmem:[#allocation4 + $0x20] sm:$0xff]
    %v2332 = vld [vmem:[#allocation4 + $0x28] sm:$0xff]
    %v2333 = vld [vmem:[#allocation4 + $0x30] sm:$0xff]
    %v2334 = vld [vmem:[#allocation4 + $0x38] sm:$0xff]
    %v2335 = vld [vmem:[#allocation4 + $0x40] sm:$0xff]
    %v2336 = vld [vmem:[#allocation4 + $0x48] sm:$0xff]
    %v2337 = vld [vmem:[#allocation4 + $0x50] sm:$0xff]
    %v2338 = vld [vmem:[#allocation4 + $0x58] sm:$0xff]
    %v2339 = vld [vmem:[#allocation4 + $0x60] sm:$0xff]
    %v2340 = vld [vmem:[#allocation4 + $0x68] sm:$0xff]
    %v2341 = vld [vmem:[#allocation4 + $0x70] sm:$0xff]
    %v2342 = vld [vmem:[#allocation4 + $0x78] sm:$0xff]
    %v2343 = vld [vmem:[%s2] sm:$0xff]
    %v2344 = vld [vmem:[%s2 + $0x8] sm:$0xff]
    %v2345 = vld [vmem:[%s2 + $0x10] sm:$0xff]
    %v2346 = vld [vmem:[%s2 + $0x18] sm:$0xff]
    %v2347 = vld [vmem:[%s2 + $0x20] sm:$0xff]
    %v2348 = vld [vmem:[%s2 + $0x28] sm:$0xff]
    %v2349 = vld [vmem:[%s2 + $0x30] sm:$0xff]
    %v2350 = vld [vmem:[%s2 + $0x38] sm:$0xff]
    %v2351 = vld [vmem:[%s2 + $0x40] sm:$0xff]
    %vm2352 = vcmask 588800
    %v2354 = vsel %vm2352, %v2327, 0
    %v2357 = vsel %vm2352, %v2328, 0
    %v2360 = vsel %vm2352, %v2329, 0
    %v2363 = vsel %vm2352, %v2330, 0
    %v2366 = vsel %vm2352, %v2331, 0
    %v2369 = vsel %vm2352, %v2332, 0
    %v2372 = vsel %vm2352, %v2333, 0
    %v2375 = vsel %vm2352, %v2334, 0
    %v2378 = vsel %vm2352, %v2335, 0
    %v2381 = vsel %vm2352, %v2336, 0
    %v2384 = vsel %vm2352, %v2337, 0
    %v2387 = vsel %vm2352, %v2338, 0
    %v2390 = vsel %vm2352, %v2339, 0
    %v2393 = vsel %vm2352, %v2340, 0
    %v2396 = vsel %vm2352, %v2341, 0
    %v2399 = vsel %vm2352, %v2342, 0
    %2401 = vmatprep.subr.mxu0 0.0
    %2402 = vmatpush1.msra.mxu0 %v2343
    %2403 = vmatprep.subr.mxu0 0.0
    %2404 = vmatpush1.msra.mxu0 %v2344
    %2405 = vmatprep.subr.mxu0 0.0
    %2406 = vmatpush1.msra.mxu0 %v2345
    %2407 = vmatprep.subr.mxu0 0.0
    %2408 = vmatpush1.msra.mxu0 %v2346
    %2409 = vmatprep.subr.mxu0 0.0
    %2410 = vmatpush1.msra.mxu0 %v2347
    %2411 = vmatprep.subr.mxu0 0.0
    %2412 = vmatpush1.msra.mxu0 %v2348
    %2413 = vmatprep.subr.mxu0 0.0
    %2414 = vmatpush1.msra.mxu0 %v2349
    %2415 = vmatprep.subr.mxu0 0.0
    %2416 = vmatpush1.msra.mxu0 %v2350
    %2417 = vmatprep.subr.mxu0 0.0
    %2418 = vmatpush1.msra.mxu0 %v2351
    %2419 = vmatprep.subr.mxu0 0.0
    %2420 = vmatpush1.msra.mxu0 0.0
    %2421 = vmatprep.subr.mxu0 0.0
    %2422 = vmatpush1.msra.mxu0 0.0
    %2423 = vmatprep.subr.mxu0 0.0
    %2424 = vmatpush1.msra.mxu0 0.0
    %2425 = vmatprep.subr.mxu0 0.0
    %2426 = vmatpush1.msra.mxu0 0.0
    %2427 = vmatprep.subr.mxu0 0.0
    %2428 = vmatpush1.msra.mxu0 0.0
    %2429 = vmatprep.subr.mxu0 0.0
    %2430 = vmatpush1.msra.mxu0 0.0
    %2431 = vmatprep.subr.mxu0 0.0
    %2432 = vmatpush1.msra.mxu0 0.0
    %2433 = vmatprep.subr.mxu0 0.0
    %2434 = vmatpush1.msra.mxu0 0.0
    %2435 = vmatprep.subr.mxu0 0.0
    %2436 = vmatpush1.msra.mxu0 0.0
    %2437 = vmatprep.subr.mxu0 0.0
    %2438 = vmatpush1.msra.mxu0 0.0
    %2439 = vmatprep.subr.mxu0 0.0
    %2440 = vmatpush1.msra.mxu0 0.0
    %2441 = vmatprep.subr.mxu0 0.0
    %2442 = vmatpush1.msra.mxu0 0.0
    %2443 = vmatprep.subr.mxu0 0.0
    %2444 = vmatpush1.msra.mxu0 0.0
    %2445 = vmatprep.subr.mxu0 0.0
    %2446 = vmatpush1.msra.mxu0 0.0
    %2447 = vmatprep.subr.mxu0 0.0
    %2448 = vmatpush1.msra.mxu0 0.0
    %2449 = vmatprep.subr.mxu0 0.0
    %2450 = vmatpush1.msra.mxu0 0.0
    %2451 = vmatprep.subr.mxu0 0.0
    %2452 = vmatpush1.msra.mxu0 0.0
    %2453 = vmatprep.subr.mxu0 0.0
    %2454 = vmatpush1.msra.mxu0 0.0
    %2455 = vmatprep.subr.mxu0 0.0
    %2456 = vmatpush1.msra.mxu0 0.0
    %2457 = vmatprep.subr.mxu0 0.0
    %2458 = vmatpush1.msra.mxu0 0.0
    %2459 = vmatprep.subr.mxu0 0.0
    %2460 = vmatpush1.msra.mxu0 0.0
    %2461 = vmatprep.subr.mxu0 0.0
    %2462 = vmatpush1.msra.mxu0 0.0
    %2463 = vmatprep.subr.mxu0 0.0
    %2464 = vmatpush1.msra.mxu0 0.0
    %2465 = vmatprep.mubr.f32.mxu0 0.0
    %2466 = vmatmul.mubr.f32.gmra.mrb[0].mxu0 %v2354
    %v2467 = vpop.f32.mrb[0].mxu0
    %v2468 = vadd.f32 0.0, %v2467
    %v2469 = vpop.f32.mrb[0].mxu0
    %2470 = vmatprep.mubr.f32.mxu0 0.0
    %2471 = vmatmul.mubr.f32.gmra.mrb[0].mxu0 %v2357
    %v2472 = vpop.f32.mrb[0].mxu0
    %v2473 = vadd.f32 0.0, %v2472
    %v2474 = vpop.f32.mrb[0].mxu0
    %2475 = vmatprep.mubr.f32.mxu0 0.0
    %2476 = vmatmul.mubr.f32.gmra.mrb[0].mxu0 %v2360
    %v2477 = vpop.f32.mrb[0].mxu0
    %v2478 = vadd.f32 0.0, %v2477
    %v2479 = vpop.f32.mrb[0].mxu0
    %2480 = vmatprep.mubr.f32.mxu0 0.0
    %2481 = vmatmul.mubr.f32.gmra.mrb[0].mxu0 %v2363
    %v2482 = vpop.f32.mrb[0].mxu0
    %v2483 = vadd.f32 0.0, %v2482
    %v2484 = vpop.f32.mrb[0].mxu0
    %2485 = vmatprep.mubr.f32.mxu0 0.0
    %2486 = vmatmul.mubr.f32.gmra.mrb[0].mxu0 %v2366
    %v2487 = vpop.f32.mrb[0].mxu0
    %v2488 = vadd.f32 0.0, %v2487
    %v2489 = vpop.f32.mrb[0].mxu0
    %2490 = vmatprep.mubr.f32.mxu0 0.0
    %2491 = vmatmul.mubr.f32.gmra.mrb[0].mxu0 %v2369
    %v2492 = vpop.f32.mrb[0].mxu0
    %v2493 = vadd.f32 0.0, %v2492
    %v2494 = vpop.f32.mrb[0].mxu0
    %2495 = vmatprep.mubr.f32.mxu0 0.0
    %2496 = vmatmul.mubr.f32.gmra.mrb[0].mxu0 %v2372
    %v2497 = vpop.f32.mrb[0].mxu0
    %v2498 = vadd.f32 0.0, %v2497
    %v2499 = vpop.f32.mrb[0].mxu0
    %2500 = vmatprep.mubr.f32.mxu0 0.0
    %2501 = vmatmul.mubr.f32.gmra.mrb[0].mxu0 %v2375
    %v2502 = vpop.f32.mrb[0].mxu0
    %v2503 = vadd.f32 0.0, %v2502
    %v2504 = vpop.f32.mrb[0].mxu0
    %2505 = vmatprep.mubr.f32.mxu0 0.0
    %2506 = vmatmul.mubr.f32.gmra.mrb[0].mxu0 %v2378
    %v2507 = vpop.f32.mrb[0].mxu0
    %v2508 = vadd.f32 0.0, %v2507
    %v2509 = vpop.f32.mrb[0].mxu0
    %2510 = vmatprep.mubr.f32.mxu0 0.0
    %2511 = vmatmul.mubr.f32.gmra.mrb[0].mxu0 %v2381
    %v2512 = vpop.f32.mrb[0].mxu0
    %v2513 = vadd.f32 0.0, %v2512
    %v2514 = vpop.f32.mrb[0].mxu0
    %2515 = vmatprep.mubr.f32.mxu0 0.0
    %2516 = vmatmul.mubr.f32.gmra.mrb[0].mxu0 %v2384
    %v2517 = vpop.f32.mrb[0].mxu0
    %v2518 = vadd.f32 0.0, %v2517
    %v2519 = vpop.f32.mrb[0].mxu0
    %2520 = vmatprep.mubr.f32.mxu0 0.0
    %2521 = vmatmul.mubr.f32.gmra.mrb[0].mxu0 %v2387
    %v2522 = vpop.f32.mrb[0].mxu0
    %v2523 = vadd.f32 0.0, %v2522
    %v2524 = vpop.f32.mrb[0].mxu0
    %2525 = vmatprep.mubr.f32.mxu0 0.0
    %2526 = vmatmul.mubr.f32.gmra.mrb[0].mxu0 %v2390
    %v2527 = vpop.f32.mrb[0].mxu0
    %v2528 = vadd.f32 0.0, %v2527
    %v2529 = vpop.f32.mrb[0].mxu0
    %2530 = vmatprep.mubr.f32.mxu0 0.0
    %2531 = vmatmul.mubr.f32.gmra.mrb[0].mxu0 %v2393
    %v2532 = vpop.f32.mrb[0].mxu0
    %v2533 = vadd.f32 0.0, %v2532
    %v2534 = vpop.f32.mrb[0].mxu0
    %2535 = vmatprep.mubr.f32.mxu0 0.0
    %2536 = vmatmul.mubr.f32.gmra.mrb[0].mxu0 %v2396
    %v2537 = vpop.f32.mrb[0].mxu0
    %v2538 = vadd.f32 0.0, %v2537
    %v2539 = vpop.f32.mrb[0].mxu0
    %2540 = vmatprep.mubr.f32.mxu0 0.0
    %2541 = vmatmul.mubr.f32.gmra.mrb[0].mxu0 %v2399
    %v2542 = vpop.f32.mrb[0].mxu0
    %v2543 = vadd.f32 0.0, %v2542
    %v2544 = vpop.f32.mrb[0].mxu0
    %2545 = vdwg.mxu0
    %v2546 = vsel %vm1287, %v2468, 0.0
    %v2547 = vsel %vm1287, %v2473, 0.0
    %v2548 = vadd.f32 %v2546, %v2547
    %v2549 = vsel %vm1287, %v2478, 0.0
    %v2550 = vadd.f32 %v2548, %v2549
    %v2551 = vsel %vm1287, %v2483, 0.0
    %v2552 = vadd.f32 %v2550, %v2551
    %v2553 = vsel %vm1287, %v2488, 0.0
    %v2554 = vadd.f32 %v2552, %v2553
    %v2555 = vsel %vm1287, %v2493, 0.0
    %v2556 = vadd.f32 %v2554, %v2555
    %v2557 = vsel %vm1287, %v2498, 0.0
    %v2558 = vadd.f32 %v2556, %v2557
    %v2559 = vsel %vm1287, %v2503, 0.0
    %v2560 = vadd.f32 %v2558, %v2559
    %v2561 = vrot.slane %v2560, 4
    %v2562 = vadd.f32 %v2560, %v2561
    %v2563 = vrot.slane %v2562, 2
    %v2564 = vadd.f32 %v2562, %v2563
    %v2565 = vrot.slane %v2564, 1
    %v2566 = vadd.f32 %v2564, %v2565
    %v2567 = vsel %vm1287, %v2508, 0.0
    %v2568 = vsel %vm1287, %v2513, 0.0
    %v2569 = vadd.f32 %v2567, %v2568
    %v2570 = vsel %vm1287, %v2518, 0.0
    %v2571 = vadd.f32 %v2569, %v2570
    %v2572 = vsel %vm1287, %v2523, 0.0
    %v2573 = vadd.f32 %v2571, %v2572
    %v2574 = vsel %vm1287, %v2528, 0.0
    %v2575 = vadd.f32 %v2573, %v2574
    %v2576 = vsel %vm1287, %v2533, 0.0
    %v2577 = vadd.f32 %v2575, %v2576
    %v2578 = vsel %vm1287, %v2538, 0.0
    %v2579 = vadd.f32 %v2577, %v2578
    %v2580 = vsel %vm1287, %v2543, 0.0
    %v2581 = vadd.f32 %v2579, %v2580
    %v2582 = vrot.slane %v2581, 4
    %v2583 = vadd.f32 %v2581, %v2582
    %v2584 = vrot.slane %v2583, 2
    %v2585 = vadd.f32 %v2583, %v2584
    %v2586 = vrot.slane %v2585, 1
    %v2587 = vadd.f32 %v2585, %v2586
    %v2588 = vmul.f32 %v2566, 0.015625
    %v2589 = vmul.f32 %v2587, 0.015625
    %v2590 = vmul.f32 %v2468, %v2468
    %v2591 = vmul.f32 %v2473, %v2473
    %v2592 = vmul.f32 %v2478, %v2478
    %v2593 = vmul.f32 %v2483, %v2483
    %v2594 = vmul.f32 %v2488, %v2488
    %v2595 = vmul.f32 %v2493, %v2493
    %v2596 = vmul.f32 %v2498, %v2498
    %v2597 = vmul.f32 %v2503, %v2503
    %v2598 = vmul.f32 %v2508, %v2508
    %v2599 = vmul.f32 %v2513, %v2513
    %v2600 = vmul.f32 %v2518, %v2518
    %v2601 = vmul.f32 %v2523, %v2523
    %v2602 = vmul.f32 %v2528, %v2528
    %v2603 = vmul.f32 %v2533, %v2533
    %v2604 = vmul.f32 %v2538, %v2538
    %v2605 = vmul.f32 %v2543, %v2543
    %v2606 = vsel %vm1287, %v2590, 0.0
    %v2607 = vsel %vm1287, %v2591, 0.0
    %v2608 = vadd.f32 %v2606, %v2607
    %v2609 = vsel %vm1287, %v2592, 0.0
    %v2610 = vadd.f32 %v2608, %v2609
    %v2611 = vsel %vm1287, %v2593, 0.0
    %v2612 = vadd.f32 %v2610, %v2611
    %v2613 = vsel %vm1287, %v2594, 0.0
    %v2614 = vadd.f32 %v2612, %v2613
    %v2615 = vsel %vm1287, %v2595, 0.0
    %v2616 = vadd.f32 %v2614, %v2615
    %v2617 = vsel %vm1287, %v2596, 0.0
    %v2618 = vadd.f32 %v2616, %v2617
    %v2619 = vsel %vm1287, %v2597, 0.0
    %v2620 = vadd.f32 %v2618, %v2619
    %v2621 = vrot.slane %v2620, 4
    %v2622 = vadd.f32 %v2620, %v2621
    %v2623 = vrot.slane %v2622, 2
    %v2624 = vadd.f32 %v2622, %v2623
    %v2625 = vrot.slane %v2624, 1
    %v2626 = vadd.f32 %v2624, %v2625
    %v2627 = vsel %vm1287, %v2598, 0.0
    %v2628 = vsel %vm1287, %v2599, 0.0
    %v2629 = vadd.f32 %v2627, %v2628
    %v2630 = vsel %vm1287, %v2600, 0.0
    %v2631 = vadd.f32 %v2629, %v2630
    %v2632 = vsel %vm1287, %v2601, 0.0
    %v2633 = vadd.f32 %v2631, %v2632
    %v2634 = vsel %vm1287, %v2602, 0.0
    %v2635 = vadd.f32 %v2633, %v2634
    %v2636 = vsel %vm1287, %v2603, 0.0
    %v2637 = vadd.f32 %v2635, %v2636
    %v2638 = vsel %vm1287, %v2604, 0.0
    %v2639 = vadd.f32 %v2637, %v2638
    %v2640 = vsel %vm1287, %v2605, 0.0
    %v2641 = vadd.f32 %v2639, %v2640
    %v2642 = vrot.slane %v2641, 4
    %v2643 = vadd.f32 %v2641, %v2642
    %v2644 = vrot.slane %v2643, 2
    %v2645 = vadd.f32 %v2643, %v2644
    %v2646 = vrot.slane %v2645, 1
    %v2647 = vadd.f32 %v2645, %v2646
    %v2648 = vmul.f32 %v2626, 0.015625
    %v2649 = vmul.f32 %v2647, 0.015625
    %v2650 = vmul.f32 %v2588, %v2588
    %v2651 = vmul.f32 %v2589, %v2589
    %v2652 = vsub.f32 %v2648, %v2650
    %v2653 = vsub.f32 %v2649, %v2651
    %v2654 = vmax.f32 %v2652, 0.0
    %v2655 = vmax.f32 %v2653, 0.0
    %v2656 = vsub.f32 %v2468, %v2588
    %v2657 = vsub.f32 %v2473, %v2588
    %v2658 = vsub.f32 %v2478, %v2588
    %v2659 = vsub.f32 %v2483, %v2588
    %v2660 = vsub.f32 %v2488, %v2588
    %v2661 = vsub.f32 %v2493, %v2588
    %v2662 = vsub.f32 %v2498, %v2588
    %v2663 = vsub.f32 %v2503, %v2588
    %v2664 = vsub.f32 %v2508, %v2589
    %v2665 = vsub.f32 %v2513, %v2589
    %v2666 = vsub.f32 %v2518, %v2589
    %v2667 = vsub.f32 %v2523, %v2589
    %v2668 = vsub.f32 %v2528, %v2589
    %v2669 = vsub.f32 %v2533, %v2589
    %v2670 = vsub.f32 %v2538, %v2589
    %v2671 = vsub.f32 %v2543, %v2589
    %v2672 = vadd.f32 %v2654, 1e-05
    %v2673 = vadd.f32 %v2655, 1e-05
    %v2674 = vrsqrt.pop %v2672
    %v2675 = vrsqrt.pop %v2673
    %v2676 = vmul.f32 %v2656, %v2674
    %v2677 = vmul.f32 %v2657, %v2674
    %v2678 = vmul.f32 %v2658, %v2674
    %v2679 = vmul.f32 %v2659, %v2674
    %v2680 = vmul.f32 %v2660, %v2674
    %v2681 = vmul.f32 %v2661, %v2674
    %v2682 = vmul.f32 %v2662, %v2674
    %v2683 = vmul.f32 %v2663, %v2674
    %v2684 = vmul.f32 %v2664, %v2675
    %v2685 = vmul.f32 %v2665, %v2675
    %v2686 = vmul.f32 %v2666, %v2675
    %v2687 = vmul.f32 %v2667, %v2675
    %v2688 = vmul.f32 %v2668, %v2675
    %v2689 = vmul.f32 %v2669, %v2675
    %v2690 = vmul.f32 %v2670, %v2675
    %v2691 = vmul.f32 %v2671, %v2675
    %v2692 = vmax.f32 %v2676, 0.0
    %v2693 = vmax.f32 %v2677, 0.0
    %v2694 = vmax.f32 %v2678, 0.0
    %v2695 = vmax.f32 %v2679, 0.0
    %v2696 = vmax.f32 %v2680, 0.0
    %v2697 = vmax.f32 %v2681, 0.0
    %v2698 = vmax.f32 %v2682, 0.0
    %v2699 = vmax.f32 %v2683, 0.0
    %v2700 = vmax.f32 %v2684, 0.0
    %v2701 = vmax.f32 %v2685, 0.0
    %v2702 = vmax.f32 %v2686, 0.0
    %v2703 = vmax.f32 %v2687, 0.0
    %v2704 = vmax.f32 %v2688, 0.0
    %v2705 = vmax.f32 %v2689, 0.0
    %v2706 = vmax.f32 %v2690, 0.0
    %v2707 = vmax.f32 %v2691, 0.0
    %2708 = vxpose.xlu0.b32.start [1/16] %v2692, 128
    %2709 = vxpose.xlu0.b32.cont [2/16] %v2693, 128
    %2710 = vxpose.xlu0.b32.cont [3/16] %v2694, 128
    %2711 = vxpose.xlu0.b32.cont [4/16] %v2695, 128
    %2712 = vxpose.xlu0.b32.cont [5/16] %v2696, 128
    %2713 = vxpose.xlu0.b32.cont [6/16] %v2697, 128
    %2714 = vxpose.xlu0.b32.cont [7/16] %v2698, 128
    %2715 = vxpose.xlu0.b32.cont [8/16] %v2699, 128
    %2716 = vxpose.xlu0.b32.cont [9/16] 0.0, 128
    %2717 = vxpose.xlu0.b32.cont [10/16] 0.0, 128
    %2718 = vxpose.xlu0.b32.cont [11/16] 0.0, 128
    %2719 = vxpose.xlu0.b32.cont [12/16] 0.0, 128
    %2720 = vxpose.xlu0.b32.cont [13/16] 0.0, 128
    %2721 = vxpose.xlu0.b32.cont [14/16] 0.0, 128
    %2722 = vxpose.xlu0.b32.cont [15/16] 0.0, 128
    %2723 = vxpose.xlu0.b32.end [16/16] 0.0, 128
    %v2724 = vpop.trf.xlu0
    %v2725 = vpop.trf.xlu0
    %v2726 = vpop.trf.xlu0
    %v2727 = vpop.trf.xlu0
    %v2728 = vpop.trf.xlu0
    %v2729 = vpop.trf.xlu0
    %v2730 = vpop.trf.xlu0
    %v2731 = vpop.trf.xlu0
    %v2732 = vpop.trf.xlu0
    %v2733 = vpop.trf.xlu0
    %v2734 = vpop.trf.xlu0
    %v2735 = vpop.trf.xlu0
    %v2736 = vpop.trf.xlu0
    %v2737 = vpop.trf.xlu0
    %v2738 = vpop.trf.xlu0
    %v2739 = vpop.trf.xlu0
    %vm2740 = vcmask 523264
    %2741 = vst.msk [vmem:[#allocation5] sm:$0xff] %vm2740, %v2724
    %2742 = vxpose.xlu0.b32.start [1/16] %v2700, 128
    %2743 = vxpose.xlu0.b32.cont [2/16] %v2701, 128
    %2744 = vxpose.xlu0.b32.cont [3/16] %v2702, 128
    %2745 = vxpose.xlu0.b32.cont [4/16] %v2703, 128
    %2746 = vxpose.xlu0.b32.cont [5/16] %v2704, 128
    %2747 = vxpose.xlu0.b32.cont [6/16] %v2705, 128
    %2748 = vxpose.xlu0.b32.cont [7/16] %v2706, 128
    %2749 = vxpose.xlu0.b32.cont [8/16] %v2707, 128
    %2750 = vxpose.xlu0.b32.cont [9/16] 0.0, 128
    %2751 = vxpose.xlu0.b32.cont [10/16] 0.0, 128
    %2752 = vxpose.xlu0.b32.cont [11/16] 0.0, 128
    %2753 = vxpose.xlu0.b32.cont [12/16] 0.0, 128
    %2754 = vxpose.xlu0.b32.cont [13/16] 0.0, 128
    %2755 = vxpose.xlu0.b32.cont [14/16] 0.0, 128
    %2756 = vxpose.xlu0.b32.cont [15/16] 0.0, 128
    %2757 = vxpose.xlu0.b32.end [16/16] 0.0, 128
    %v2758 = vpop.trf.xlu0
    %v2759 = vpop.trf.xlu0
    %v2760 = vpop.trf.xlu0
    %v2761 = vpop.trf.xlu0
    %v2762 = vpop.trf.xlu0
    %v2763 = vpop.trf.xlu0
    %v2764 = vpop.trf.xlu0
    %v2765 = vpop.trf.xlu0
    %v2766 = vpop.trf.xlu0
    %v2767 = vpop.trf.xlu0
    %v2768 = vpop.trf.xlu0
    %v2769 = vpop.trf.xlu0
    %v2770 = vpop.trf.xlu0
    %v2771 = vpop.trf.xlu0
    %v2772 = vpop.trf.xlu0
    %v2773 = vpop.trf.xlu0
    %s2774 = scalar_lea.vmem [#allocation5], 8
    %2775 = vst.msk [vmem:[%s2774] sm:$0xff] %vm2740, %v2758
    // Predicated region
    $region14: #{tpu_custom_call.1} parent=1 // pred_check
      _
    $region15: #{tpu_custom_call.1} parent=1 // pred_check_branch
      %2777 = sbr.rel (0) target = $region17
    $region16: #{tpu_custom_call.1} parent=1 // pred_region
      %s2779 = ssub.s32 256, 256
      %2780 = vsyncadd [#allocation6], %s2779
      %s2781 = sshll.u32 [#allocation5], 4
      %s2782 = int_to_ptr.vmem [resolvable:$true] %s2781
      %2787 = dma.vmem_to_hbm [thread:$0]  %s2782, 256, %s3, [#allocation6], 128, 128, 8
    $region17: #{tpu_custom_call.1} parent=1 // pred_fallthru
      _
    // Predicated region
    $region18: #{tpu_custom_call.1} parent=1 // pred_check
      _
    $region19: #{tpu_custom_call.1} parent=1 // pred_check_branch
      %2789 = sbr.rel (0) target = $region21
    $region20: #{tpu_custom_call.1} parent=1 // pred_region
      %2790 = dma.done [#allocation6], 256
    $region21: #{tpu_custom_call.1} parent=1 // pred_fallthru
      _
    %2791 = vsyncpa [#allocation6], 1

</llo_original>
